<compile_context>
chip_gen: v6e
topology: v6e:2x2x1
jax: 0.10.0
libtpu: 0.0.40
codegen_flags: <defaults>
</compile_context>

<pallas_src>
import jax
import jax.numpy as jnp
from jax.experimental import pallas as pl
from jax.experimental.pallas import tpu as pltpu


# ---------------------------------------------------------------------------
# Static network geometry (LeNet on 32x32 inputs, as in the PyTorch module).
# ---------------------------------------------------------------------------
K = 5                        # conv kernel size
H0 = W0 = 32                 # input spatial size
H1 = W1 = H0 - K + 1         # 28 : conv1 output
H1P = W1P = H1 // 2          # 14 : pool1 output
H2 = W2 = H1P - K + 1        # 10 : conv2 output
H2P = W2P = H2 // 2          # 5  : pool2 output

CIN, C1, C2 = 3, 6, 16
CPAD = 16                    # channel blocks padded to 16 (bf16 tile rows)
F1, F2, F3 = 120, 84, 10
F1_PAD, F2_PAD, F3_PAD = 128, 128, 16

# Per-sample flattened-lane lengths (channel-major layout, lanes = h*w grid).
L1 = (H1 - 1) * W0 + W1      # 892 : conv1 output window (row stride 32)
L1P = L1 - (W0 + 1)          # 859 : pool1 window
M1 = H1P * W1P               # 196 : pool1 compact grid
L2 = (H2 - 1) * W1P + W2     # 136 : conv2 output window (row stride 14)
L2P = L2 - (W1P + 1)         # 121 : pool2 window
M2 = H2P * W2P               # 25  : pool2 compact grid

KSTACK = K * K * CPAD        # 400 : stacked contraction depth
STACK_LANES = 896            # L1 rounded up to a lane-tile multiple
OUT_LANES = 128              # lane-dense output block


# ---------------------------------------------------------------------------
# The fused per-sample Pallas kernel (one grid step = one sample).
# ---------------------------------------------------------------------------
def _convnet_kernel(x_ref, w1_ref, b1_ref, s1_ref, w2_ref, b2_ref, s2_ref,
                    f1_ref, fb1_ref, f2_ref, fb2_ref, f3_ref, fb3_ref,
                    out_ref, stack_ref):
    f32 = jnp.float32
    bf16 = jnp.bfloat16

    # ---- conv1: stack the 25 shifted input windows, then ONE K=400 matmul ---
    xs = x_ref[0]                                        # (16, 1024) bf16
    for kh in range(K):
        for kw in range(K):
            t = kh * K + kw
            off = kh * W0 + kw
            stack_ref[t * CPAD:(t + 1) * CPAD, 0:L1] = xs[:, off:off + L1]
    c1 = jnp.dot(w1_ref[...], stack_ref[:, 0:L1],
                 preferred_element_type=f32)             # (16, 892) f32
    c1 = jnp.maximum(c1 + b1_ref[...], 0.0)

    # ---- pool1: 2x2 max of 4 shifted windows + per-sample 0/1 selection -----
    p1w = jnp.maximum(jnp.maximum(c1[:, 0:L1P], c1[:, 1:L1P + 1]),
                      jnp.maximum(c1[:, W0:W0 + L1P],
                                  c1[:, W0 + 1:W0 + 1 + L1P]))
    p1 = jnp.dot(p1w.astype(bf16), s1_ref[...],
                 preferred_element_type=f32).astype(bf16)  # (16, 196) compact

    # ---- conv2: same tap-stack trick on the compact 14x14 grid --------------
    for kh in range(K):
        for kw in range(K):
            t = kh * K + kw
            off = kh * W1P + kw
            stack_ref[t * CPAD:(t + 1) * CPAD, 0:L2] = p1[:, off:off + L2]
    c2 = jnp.dot(w2_ref[...], stack_ref[:, 0:L2],
                 preferred_element_type=f32)             # (16, 136) f32
    c2 = jnp.maximum(c2 + b2_ref[...], 0.0)

    # ---- pool2 ---------------------------------------------------------------
    p2w = jnp.maximum(jnp.maximum(c2[:, 0:L2P], c2[:, 1:L2P + 1]),
                      jnp.maximum(c2[:, W1P:W1P + L2P],
                                  c2[:, W1P + 1:W1P + 1 + L2P]))
    p2 = jnp.dot(p2w.astype(bf16), s2_ref[...],
                 preferred_element_type=f32).astype(bf16)  # (16, 25) compact

    # ---- fc1: stack the 25 pooled columns into a (400,1) feature vector -----
    for t in range(K * K):
        stack_ref[t * CPAD:(t + 1) * CPAD, 0:1] = p2[:, t:t + 1]
    h1 = jnp.dot(f1_ref[...], stack_ref[:, 0:1],
                 preferred_element_type=f32)             # (128, 1)
    h1 = jnp.maximum(h1 + fb1_ref[...], 0.0)

    # ---- fc2 / fc3 -----------------------------------------------------------
    h2 = jnp.maximum(
        jnp.dot(f2_ref[...], h1.astype(bf16), preferred_element_type=f32)
        + fb2_ref[...], 0.0)                             # (128, 1)
    y = (jnp.dot(f3_ref[...], h2.astype(bf16), preferred_element_type=f32)
         + fb3_ref[...])                                 # (16, 1)

    # Lane-dense output block (valid logits live in lane 0).
    out_ref[0] = jnp.broadcast_to(y, (F3_PAD, OUT_LANES))


# ---------------------------------------------------------------------------
# One-time parameter preparation (permute / pad / bf16; per-sample selection).
# ---------------------------------------------------------------------------
def _pool_select(w_src, ho, wo, n_rows):
    """Per-sample 0/1 matrix: picks flattened lanes 2i*w_src + 2j and compacts
    them onto an (ho, wo) grid (row stride wo).  Exact in bf16."""
    ii, jj = jnp.meshgrid(jnp.arange(ho), jnp.arange(wo), indexing="ij")
    src = (2 * ii * w_src + 2 * jj).ravel()
    dst = (ii * wo + jj).ravel()
    sel = jnp.zeros((n_rows, ho * wo), jnp.float32)
    return sel.at[src, dst].set(1.0).astype(jnp.bfloat16)


def prepare_params(params):
    f32, bf16 = jnp.float32, jnp.bfloat16

    # conv1: (6,3,5,5) -> stacked (16, 25*16) with columns [tap*16 + cin].
    w1 = jnp.zeros((CPAD, K * K, CPAD), f32)
    w1 = w1.at[:C1, :, :CIN].set(
        params["conv1_w"].transpose(0, 2, 3, 1).reshape(C1, K * K, CIN))
    w1 = w1.reshape(CPAD, KSTACK).astype(bf16)
    b1 = jnp.zeros((CPAD, 1), f32).at[:C1, 0].set(params["conv1_b"])

    # conv2: (16,6,5,5) -> stacked (16, 25*16).
    w2 = jnp.zeros((C2, K * K, CPAD), f32)
    w2 = w2.at[:, :, :C1].set(
        params["conv2_w"].transpose(0, 2, 3, 1).reshape(C2, K * K, C1))
    w2 = w2.reshape(C2, KSTACK).astype(bf16)
    b2 = params["conv2_b"].reshape(C2, 1).astype(f32)

    # fc1: PyTorch column order (c, i, j) -> stacked columns [tap*16 + c].
    f1 = jnp.zeros((F1_PAD, K * K, C2), f32)
    f1 = f1.at[:F1].set(
        params["fc1_w"].reshape(F1, C2, K * K).transpose(0, 2, 1))
    f1 = f1.reshape(F1_PAD, KSTACK).astype(bf16)
    fb1 = jnp.zeros((F1_PAD, 1), f32).at[:F1, 0].set(params["fc1_b"])

    f2 = (jnp.zeros((F2_PAD, F1_PAD), f32)
          .at[:F2, :F1].set(params["fc2_w"]).astype(bf16))
    fb2 = jnp.zeros((F2_PAD, 1), f32).at[:F2, 0].set(params["fc2_b"])
    f3 = (jnp.zeros((F3_PAD, F2_PAD), f32)
          .at[:F3, :F2].set(params["fc3_w"]).astype(bf16))
    fb3 = jnp.zeros((F3_PAD, 1), f32).at[:F3, 0].set(params["fc3_b"])

    s1 = _pool_select(W0, H1P, W1P, L1P)      # (859, 196) bf16, per-sample
    s2 = _pool_select(W1P, H2P, W2P, L2P)     # (121, 25)  bf16, per-sample

    return {"w1": w1, "b1": b1, "s1": s1, "w2": w2, "b2": b2, "s2": s2,
            "f1": f1, "fb1": fb1, "f2": f2, "fb2": fb2, "f3": f3, "fb3": fb3}


# ---------------------------------------------------------------------------
# Forward pass (single pallas_call, batch grid) and parameter init.
# ---------------------------------------------------------------------------
def convnet_forward_fn(prep, x):
    n = x.shape[0]
    assert x.shape[1:] == (CIN, H0, W0), x.shape

    # NCHW -> per-sample channel-major flattened, channels padded to 16, bf16.
    xf = x.astype(jnp.float32).reshape(n, CIN, H0 * W0)
    x16 = jnp.pad(xf, ((0, 0), (0, CPAD - CIN), (0, 0))).astype(jnp.bfloat16)

    def cspec(a):  # constant index map -> DMA'd once, stays VMEM-resident
        return pl.BlockSpec(a.shape, lambda b: (0,) * a.ndim)

    args = (x16, prep["w1"], prep["b1"], prep["s1"], prep["w2"], prep["b2"],
            prep["s2"], prep["f1"], prep["fb1"], prep["f2"], prep["fb2"],
            prep["f3"], prep["fb3"])
    in_specs = [pl.BlockSpec((1, CPAD, H0 * W0), lambda b: (b, 0, 0))]
    in_specs += [cspec(a) for a in args[1:]]

    y = pl.pallas_call(
        _convnet_kernel,
        out_shape=jax.ShapeDtypeStruct((n, F3_PAD, OUT_LANES), jnp.float32),
        grid=(n,),
        in_specs=in_specs,
        out_specs=pl.BlockSpec((1, F3_PAD, OUT_LANES), lambda b: (b, 0, 0)),
        scratch_shapes=[pltpu.VMEM((KSTACK, STACK_LANES), jnp.bfloat16)],
        compiler_params=pltpu.CompilerParams(
            dimension_semantics=("parallel",)),
    )(*args)

    # Valid logits sit in lane 0 of each sample's block; drop padded rows.
    return y[:, :F3, 0]


convnet_forward = jax.jit(convnet_forward_fn)


def init_params(key):
    def uinit(k, shape, fan_in):
        bound = 1.0 / jnp.sqrt(jnp.float32(fan_in))
        return jax.random.uniform(k, shape, jnp.float32, -bound, bound)

    ks = jax.random.split(key, 10)
    return {
        "conv1_w": uinit(ks[0], (C1, CIN, K, K), CIN * K * K),
        "conv1_b": uinit(ks[1], (C1,), CIN * K * K),
        "conv2_w": uinit(ks[2], (C2, C1, K, K), C1 * K * K),
        "conv2_b": uinit(ks[3], (C2,), C1 * K * K),
        "fc1_w": uinit(ks[4], (F1, C2 * K * K), C2 * K * K),
        "fc1_b": uinit(ks[5], (F1,), C2 * K * K),
        "fc2_w": uinit(ks[6], (F2, F1), F1),
        "fc2_b": uinit(ks[7], (F2,), F1),
        "fc3_w": uinit(ks[8], (F3, F2), F2),
        "fc3_b": uinit(ks[9], (F3,), F2),
    }


def reference_forward(params, x):
    """Plain-JAX (XLA) reference mirroring the PyTorch module exactly."""
    dn = ("NCHW", "OIHW", "NCHW")
    hp = jax.lax.Precision.HIGHEST
    y = jax.lax.conv_general_dilated(x, params["conv1_w"], (1, 1), "VALID",
                                     dimension_numbers=dn, precision=hp)
    y = jnp.maximum(y + params["conv1_b"].reshape(1, -1, 1, 1), 0.0)
    y = jax.lax.reduce_window(y, -jnp.inf, jax.lax.max,
                              (1, 1, 2, 2), (1, 1, 2, 2), "VALID")
    y = jax.lax.conv_general_dilated(y, params["conv2_w"], (1, 1), "VALID",
                                     dimension_numbers=dn, precision=hp)
    y = jnp.maximum(y + params["conv2_b"].reshape(1, -1, 1, 1), 0.0)
    y = jax.lax.reduce_window(y, -jnp.inf, jax.lax.max,
                              (1, 1, 2, 2), (1, 1, 2, 2), "VALID")
    y = y.reshape(y.shape[0], -1)
    y = jnp.maximum(jnp.dot(y, params["fc1_w"].T, precision=hp)
                    + params["fc1_b"], 0.0)
    y = jnp.maximum(jnp.dot(y, params["fc2_w"].T, precision=hp)
                    + params["fc2_b"], 0.0)
    return jnp.dot(y, params["fc3_w"].T, precision=hp) + params["fc3_b"]


if __name__ == "__main__":
    key = jax.random.PRNGKey(0)
    k_x, k_p = jax.random.split(key)
    # Spatial must be 32x32 so the 16*5*5 flatten in forward() is valid.
    x = jax.random.normal(k_x, (2, CIN, H0, W0), jnp.float32)
    params = init_params(k_p)
    prep = prepare_params(params)

    out = jax.block_until_ready(convnet_forward(prep, x))
    assert out.shape == (2, F3), out.shape
    assert bool(jnp.all(jnp.isfinite(out)))

    ref = reference_forward(params, x)
    max_err = float(jnp.max(jnp.abs(out - ref)))
    assert max_err < 5e-2, f"kernel mismatch vs reference: {max_err}"
    print("KERNEL_OK")
</pallas_src>

<mosaic_0001>
module attributes {stable_mosaic.version = 11 : i64} {
  func.func @_convnet_kernel(%arg0: i32, %arg1: memref<1x16x1024xbf16, #tpu.memory_space<vmem>>, %arg2: memref<16x400xbf16, #tpu.memory_space<vmem>>, %arg3: memref<16x1xf32, #tpu.memory_space<vmem>>, %arg4: memref<859x196xbf16, #tpu.memory_space<vmem>>, %arg5: memref<16x400xbf16, #tpu.memory_space<vmem>>, %arg6: memref<16x1xf32, #tpu.memory_space<vmem>>, %arg7: memref<121x25xbf16, #tpu.memory_space<vmem>>, %arg8: memref<128x400xbf16, #tpu.memory_space<vmem>>, %arg9: memref<128x1xf32, #tpu.memory_space<vmem>>, %arg10: memref<128x128xbf16, #tpu.memory_space<vmem>>, %arg11: memref<128x1xf32, #tpu.memory_space<vmem>>, %arg12: memref<16x128xbf16, #tpu.memory_space<vmem>>, %arg13: memref<16x1xf32, #tpu.memory_space<vmem>>, %arg14: memref<1x16x128xf32, #tpu.memory_space<vmem>>, %arg15: memref<400x896xbf16, #tpu.memory_space<vmem>>) attributes {dimension_semantics = [#tpu.dimension_semantics<parallel>], iteration_bounds = array<i64: 2>, scalar_prefetch = 0 : i64, scratch_operands = 1 : i64, tpu.core_type = #tpu.core_type<tc>, window_params = [{transform_indices = @transform_0, window_bounds = array<i64: 1, 16, 1024>}, {pipeline_mode = #tpu.pipeline_mode<synchronous>, transform_indices = @transform_1, window_bounds = array<i64: 16, 400>}, {pipeline_mode = #tpu.pipeline_mode<synchronous>, transform_indices = @transform_2, window_bounds = array<i64: 16, 1>}, {pipeline_mode = #tpu.pipeline_mode<synchronous>, transform_indices = @transform_3, window_bounds = array<i64: 859, 196>}, {pipeline_mode = #tpu.pipeline_mode<synchronous>, transform_indices = @transform_4, window_bounds = array<i64: 16, 400>}, {pipeline_mode = #tpu.pipeline_mode<synchronous>, transform_indices = @transform_5, window_bounds = array<i64: 16, 1>}, {pipeline_mode = #tpu.pipeline_mode<synchronous>, transform_indices = @transform_6, window_bounds = array<i64: 121, 25>}, {pipeline_mode = #tpu.pipeline_mode<synchronous>, transform_indices = @transform_7, window_bounds = array<i64: 128, 400>}, {pipeline_mode = #tpu.pipeline_mode<synchronous>, transform_indices = @transform_8, window_bounds = array<i64: 128, 1>}, {pipeline_mode = #tpu.pipeline_mode<synchronous>, transform_indices = @transform_9, window_bounds = array<i64: 128, 128>}, {pipeline_mode = #tpu.pipeline_mode<synchronous>, transform_indices = @transform_10, window_bounds = array<i64: 128, 1>}, {pipeline_mode = #tpu.pipeline_mode<synchronous>, transform_indices = @transform_11, window_bounds = array<i64: 16, 128>}, {pipeline_mode = #tpu.pipeline_mode<synchronous>, transform_indices = @transform_12, window_bounds = array<i64: 16, 1>}, {transform_indices = @transform_13, window_bounds = array<i64: 1, 16, 128>}]} {
    %c0 = arith.constant 0 : index
    %c0_0 = arith.constant 0 : index
    %c0_1 = arith.constant 0 : index
    %0 = vector.load %arg1[%c0, %c0_0, %c0_1] : memref<1x16x1024xbf16, #tpu.memory_space<vmem>>, vector<1x16x1024xbf16>
    %1 = vector.shape_cast %0 : vector<1x16x1024xbf16> to vector<16x1024xbf16>
    %2 = vector.extract_strided_slice %1 {offsets = [0, 0], sizes = [16, 892], strides = [1, 1]} : vector<16x1024xbf16> to vector<16x892xbf16>
    %c0_2 = arith.constant 0 : index
    %c0_3 = arith.constant 0 : index
    %3 = vector.load %arg15[%c0_2, %c0_3] : memref<400x896xbf16, #tpu.memory_space<vmem>>, vector<16x892xbf16>
    tpu.vector_store %arg15[%c0_2, %c0_3], %2 {strides = array<i32>} : memref<400x896xbf16, #tpu.memory_space<vmem>>, vector<16x892xbf16>,
    %4 = vector.extract_strided_slice %1 {offsets = [0, 1], sizes = [16, 892], strides = [1, 1]} : vector<16x1024xbf16> to vector<16x892xbf16>
    %c16 = arith.constant 16 : index
    %c0_4 = arith.constant 0 : index
    %5 = vector.load %arg15[%c16, %c0_4] : memref<400x896xbf16, #tpu.memory_space<vmem>>, vector<16x892xbf16>
    tpu.vector_store %arg15[%c16, %c0_4], %4 {strides = array<i32>} : memref<400x896xbf16, #tpu.memory_space<vmem>>, vector<16x892xbf16>,
    %6 = vector.extract_strided_slice %1 {offsets = [0, 2], sizes = [16, 892], strides = [1, 1]} : vector<16x1024xbf16> to vector<16x892xbf16>
    %c32 = arith.constant 32 : index
    %c0_5 = arith.constant 0 : index
    %7 = vector.load %arg15[%c32, %c0_5] : memref<400x896xbf16, #tpu.memory_space<vmem>>, vector<16x892xbf16>
    tpu.vector_store %arg15[%c32, %c0_5], %6 {strides = array<i32>} : memref<400x896xbf16, #tpu.memory_space<vmem>>, vector<16x892xbf16>,
    %8 = vector.extract_strided_slice %1 {offsets = [0, 3], sizes = [16, 892], strides = [1, 1]} : vector<16x1024xbf16> to vector<16x892xbf16>
    %c48 = arith.constant 48 : index
    %c0_6 = arith.constant 0 : index
    %9 = vector.load %arg15[%c48, %c0_6] : memref<400x896xbf16, #tpu.memory_space<vmem>>, vector<16x892xbf16>
    tpu.vector_store %arg15[%c48, %c0_6], %8 {strides = array<i32>} : memref<400x896xbf16, #tpu.memory_space<vmem>>, vector<16x892xbf16>,
    %10 = vector.extract_strided_slice %1 {offsets = [0, 4], sizes = [16, 892], strides = [1, 1]} : vector<16x1024xbf16> to vector<16x892xbf16>
    %c64 = arith.constant 64 : index
    %c0_7 = arith.constant 0 : index
    %11 = vector.load %arg15[%c64, %c0_7] : memref<400x896xbf16, #tpu.memory_space<vmem>>, vector<16x892xbf16>
    tpu.vector_store %arg15[%c64, %c0_7], %10 {strides = array<i32>} : memref<400x896xbf16, #tpu.memory_space<vmem>>, vector<16x892xbf16>,
    %12 = vector.extract_strided_slice %1 {offsets = [0, 32], sizes = [16, 892], strides = [1, 1]} : vector<16x1024xbf16> to vector<16x892xbf16>
    %c80 = arith.constant 80 : index
    %c0_8 = arith.constant 0 : index
    %13 = vector.load %arg15[%c80, %c0_8] : memref<400x896xbf16, #tpu.memory_space<vmem>>, vector<16x892xbf16>
    tpu.vector_store %arg15[%c80, %c0_8], %12 {strides = array<i32>} : memref<400x896xbf16, #tpu.memory_space<vmem>>, vector<16x892xbf16>,
    %14 = vector.extract_strided_slice %1 {offsets = [0, 33], sizes = [16, 892], strides = [1, 1]} : vector<16x1024xbf16> to vector<16x892xbf16>
    %c96 = arith.constant 96 : index
    %c0_9 = arith.constant 0 : index
    %15 = vector.load %arg15[%c96, %c0_9] : memref<400x896xbf16, #tpu.memory_space<vmem>>, vector<16x892xbf16>
    tpu.vector_store %arg15[%c96, %c0_9], %14 {strides = array<i32>} : memref<400x896xbf16, #tpu.memory_space<vmem>>, vector<16x892xbf16>,
    %16 = vector.extract_strided_slice %1 {offsets = [0, 34], sizes = [16, 892], strides = [1, 1]} : vector<16x1024xbf16> to vector<16x892xbf16>
    %c112 = arith.constant 112 : index
    %c0_10 = arith.constant 0 : index
    %17 = vector.load %arg15[%c112, %c0_10] : memref<400x896xbf16, #tpu.memory_space<vmem>>, vector<16x892xbf16>
    tpu.vector_store %arg15[%c112, %c0_10], %16 {strides = array<i32>} : memref<400x896xbf16, #tpu.memory_space<vmem>>, vector<16x892xbf16>,
    %18 = vector.extract_strided_slice %1 {offsets = [0, 35], sizes = [16, 892], strides = [1, 1]} : vector<16x1024xbf16> to vector<16x892xbf16>
    %c128 = arith.constant 128 : index
    %c0_11 = arith.constant 0 : index
    %19 = vector.load %arg15[%c128, %c0_11] : memref<400x896xbf16, #tpu.memory_space<vmem>>, vector<16x892xbf16>
    tpu.vector_store %arg15[%c128, %c0_11], %18 {strides = array<i32>} : memref<400x896xbf16, #tpu.memory_space<vmem>>, vector<16x892xbf16>,
    %20 = vector.extract_strided_slice %1 {offsets = [0, 36], sizes = [16, 892], strides = [1, 1]} : vector<16x1024xbf16> to vector<16x892xbf16>
    %c144 = arith.constant 144 : index
    %c0_12 = arith.constant 0 : index
    %21 = vector.load %arg15[%c144, %c0_12] : memref<400x896xbf16, #tpu.memory_space<vmem>>, vector<16x892xbf16>
    tpu.vector_store %arg15[%c144, %c0_12], %20 {strides = array<i32>} : memref<400x896xbf16, #tpu.memory_space<vmem>>, vector<16x892xbf16>,
    %22 = vector.extract_strided_slice %1 {offsets = [0, 64], sizes = [16, 892], strides = [1, 1]} : vector<16x1024xbf16> to vector<16x892xbf16>
    %c160 = arith.constant 160 : index
    %c0_13 = arith.constant 0 : index
    %23 = vector.load %arg15[%c160, %c0_13] : memref<400x896xbf16, #tpu.memory_space<vmem>>, vector<16x892xbf16>
    tpu.vector_store %arg15[%c160, %c0_13], %22 {strides = array<i32>} : memref<400x896xbf16, #tpu.memory_space<vmem>>, vector<16x892xbf16>,
    %24 = vector.extract_strided_slice %1 {offsets = [0, 65], sizes = [16, 892], strides = [1, 1]} : vector<16x1024xbf16> to vector<16x892xbf16>
    %c176 = arith.constant 176 : index
    %c0_14 = arith.constant 0 : index
    %25 = vector.load %arg15[%c176, %c0_14] : memref<400x896xbf16, #tpu.memory_space<vmem>>, vector<16x892xbf16>
    tpu.vector_store %arg15[%c176, %c0_14], %24 {strides = array<i32>} : memref<400x896xbf16, #tpu.memory_space<vmem>>, vector<16x892xbf16>,
    %26 = vector.extract_strided_slice %1 {offsets = [0, 66], sizes = [16, 892], strides = [1, 1]} : vector<16x1024xbf16> to vector<16x892xbf16>
    %c192 = arith.constant 192 : index
    %c0_15 = arith.constant 0 : index
    %27 = vector.load %arg15[%c192, %c0_15] : memref<400x896xbf16, #tpu.memory_space<vmem>>, vector<16x892xbf16>
    tpu.vector_store %arg15[%c192, %c0_15], %26 {strides = array<i32>} : memref<400x896xbf16, #tpu.memory_space<vmem>>, vector<16x892xbf16>,
    %28 = vector.extract_strided_slice %1 {offsets = [0, 67], sizes = [16, 892], strides = [1, 1]} : vector<16x1024xbf16> to vector<16x892xbf16>
    %c208 = arith.constant 208 : index
    %c0_16 = arith.constant 0 : index
    %29 = vector.load %arg15[%c208, %c0_16] : memref<400x896xbf16, #tpu.memory_space<vmem>>, vector<16x892xbf16>
    tpu.vector_store %arg15[%c208, %c0_16], %28 {strides = array<i32>} : memref<400x896xbf16, #tpu.memory_space<vmem>>, vector<16x892xbf16>,
    %30 = vector.extract_strided_slice %1 {offsets = [0, 68], sizes = [16, 892], strides = [1, 1]} : vector<16x1024xbf16> to vector<16x892xbf16>
    %c224 = arith.constant 224 : index
    %c0_17 = arith.constant 0 : index
    %31 = vector.load %arg15[%c224, %c0_17] : memref<400x896xbf16, #tpu.memory_space<vmem>>, vector<16x892xbf16>
    tpu.vector_store %arg15[%c224, %c0_17], %30 {strides = array<i32>} : memref<400x896xbf16, #tpu.memory_space<vmem>>, vector<16x892xbf16>,
    %32 = vector.extract_strided_slice %1 {offsets = [0, 96], sizes = [16, 892], strides = [1, 1]} : vector<16x1024xbf16> to vector<16x892xbf16>
    %c240 = arith.constant 240 : index
    %c0_18 = arith.constant 0 : index
    %33 = vector.load %arg15[%c240, %c0_18] : memref<400x896xbf16, #tpu.memory_space<vmem>>, vector<16x892xbf16>
    tpu.vector_store %arg15[%c240, %c0_18], %32 {strides = array<i32>} : memref<400x896xbf16, #tpu.memory_space<vmem>>, vector<16x892xbf16>,
    %34 = vector.extract_strided_slice %1 {offsets = [0, 97], sizes = [16, 892], strides = [1, 1]} : vector<16x1024xbf16> to vector<16x892xbf16>
    %c256 = arith.constant 256 : index
    %c0_19 = arith.constant 0 : index
    %35 = vector.load %arg15[%c256, %c0_19] : memref<400x896xbf16, #tpu.memory_space<vmem>>, vector<16x892xbf16>
    tpu.vector_store %arg15[%c256, %c0_19], %34 {strides = array<i32>} : memref<400x896xbf16, #tpu.memory_space<vmem>>, vector<16x892xbf16>,
    %36 = vector.extract_strided_slice %1 {offsets = [0, 98], sizes = [16, 892], strides = [1, 1]} : vector<16x1024xbf16> to vector<16x892xbf16>
    %c272 = arith.constant 272 : index
    %c0_20 = arith.constant 0 : index
    %37 = vector.load %arg15[%c272, %c0_20] : memref<400x896xbf16, #tpu.memory_space<vmem>>, vector<16x892xbf16>
    tpu.vector_store %arg15[%c272, %c0_20], %36 {strides = array<i32>} : memref<400x896xbf16, #tpu.memory_space<vmem>>, vector<16x892xbf16>,
    %38 = vector.extract_strided_slice %1 {offsets = [0, 99], sizes = [16, 892], strides = [1, 1]} : vector<16x1024xbf16> to vector<16x892xbf16>
    %c288 = arith.constant 288 : index
    %c0_21 = arith.constant 0 : index
    %39 = vector.load %arg15[%c288, %c0_21] : memref<400x896xbf16, #tpu.memory_space<vmem>>, vector<16x892xbf16>
    tpu.vector_store %arg15[%c288, %c0_21], %38 {strides = array<i32>} : memref<400x896xbf16, #tpu.memory_space<vmem>>, vector<16x892xbf16>,
    %40 = vector.extract_strided_slice %1 {offsets = [0, 100], sizes = [16, 892], strides = [1, 1]} : vector<16x1024xbf16> to vector<16x892xbf16>
    %c304 = arith.constant 304 : index
    %c0_22 = arith.constant 0 : index
    %41 = vector.load %arg15[%c304, %c0_22] : memref<400x896xbf16, #tpu.memory_space<vmem>>, vector<16x892xbf16>
    tpu.vector_store %arg15[%c304, %c0_22], %40 {strides = array<i32>} : memref<400x896xbf16, #tpu.memory_space<vmem>>, vector<16x892xbf16>,
    %42 = vector.extract_strided_slice %1 {offsets = [0, 128], sizes = [16, 892], strides = [1, 1]} : vector<16x1024xbf16> to vector<16x892xbf16>
    %c320 = arith.constant 320 : index
    %c0_23 = arith.constant 0 : index
    %43 = vector.load %arg15[%c320, %c0_23] : memref<400x896xbf16, #tpu.memory_space<vmem>>, vector<16x892xbf16>
    tpu.vector_store %arg15[%c320, %c0_23], %42 {strides = array<i32>} : memref<400x896xbf16, #tpu.memory_space<vmem>>, vector<16x892xbf16>,
    %44 = vector.extract_strided_slice %1 {offsets = [0, 129], sizes = [16, 892], strides = [1, 1]} : vector<16x1024xbf16> to vector<16x892xbf16>
    %c336 = arith.constant 336 : index
    %c0_24 = arith.constant 0 : index
    %45 = vector.load %arg15[%c336, %c0_24] : memref<400x896xbf16, #tpu.memory_space<vmem>>, vector<16x892xbf16>
    tpu.vector_store %arg15[%c336, %c0_24], %44 {strides = array<i32>} : memref<400x896xbf16, #tpu.memory_space<vmem>>, vector<16x892xbf16>,
    %46 = vector.extract_strided_slice %1 {offsets = [0, 130], sizes = [16, 892], strides = [1, 1]} : vector<16x1024xbf16> to vector<16x892xbf16>
    %c352 = arith.constant 352 : index
    %c0_25 = arith.constant 0 : index
    %47 = vector.load %arg15[%c352, %c0_25] : memref<400x896xbf16, #tpu.memory_space<vmem>>, vector<16x892xbf16>
    tpu.vector_store %arg15[%c352, %c0_25], %46 {strides = array<i32>} : memref<400x896xbf16, #tpu.memory_space<vmem>>, vector<16x892xbf16>,
    %48 = vector.extract_strided_slice %1 {offsets = [0, 131], sizes = [16, 892], strides = [1, 1]} : vector<16x1024xbf16> to vector<16x892xbf16>
    %c368 = arith.constant 368 : index
    %c0_26 = arith.constant 0 : index
    %49 = vector.load %arg15[%c368, %c0_26] : memref<400x896xbf16, #tpu.memory_space<vmem>>, vector<16x892xbf16>
    tpu.vector_store %arg15[%c368, %c0_26], %48 {strides = array<i32>} : memref<400x896xbf16, #tpu.memory_space<vmem>>, vector<16x892xbf16>,
    %50 = vector.extract_strided_slice %1 {offsets = [0, 132], sizes = [16, 892], strides = [1, 1]} : vector<16x1024xbf16> to vector<16x892xbf16>
    %c384 = arith.constant 384 : index
    %c0_27 = arith.constant 0 : index
    %51 = vector.load %arg15[%c384, %c0_27] : memref<400x896xbf16, #tpu.memory_space<vmem>>, vector<16x892xbf16>
    tpu.vector_store %arg15[%c384, %c0_27], %50 {strides = array<i32>} : memref<400x896xbf16, #tpu.memory_space<vmem>>, vector<16x892xbf16>,
    %c0_28 = arith.constant 0 : index
    %c0_29 = arith.constant 0 : index
    %52 = vector.load %arg2[%c0_28, %c0_29] : memref<16x400xbf16, #tpu.memory_space<vmem>>, vector<16x400xbf16>
    %c0_30 = arith.constant 0 : index
    %c0_31 = arith.constant 0 : index
    %53 = vector.load %arg15[%c0_30, %c0_31] : memref<400x896xbf16, #tpu.memory_space<vmem>>, vector<400x892xbf16>
    %cst = arith.constant dense<0.000000e+00> : vector<16x892xf32>
    %54 = tpu.matmul %52, %53, %cst {dimension_numbers = #tpu.dot_dimension_numbers<[1], [0], [0], [1], [0, 0, 1, 1], [], []>} : vector<16x400xbf16>, vector<400x892xbf16>, vector<16x892xf32> -> vector<16x892xf32>
    %c0_32 = arith.constant 0 : index
    %c0_33 = arith.constant 0 : index
    %55 = vector.load %arg3[%c0_32, %c0_33] : memref<16x1xf32, #tpu.memory_space<vmem>>, vector<16x1xf32>
    %56 = vector.broadcast %55 : vector<16x1xf32> to vector<16x892xf32>
    %57 = arith.addf %54, %56 : vector<16x892xf32>
    %cst_34 = arith.constant 0.000000e+00 : f32
    %58 = vector.broadcast %cst_34 : f32 to vector<16x892xf32>
    %59 = arith.maximumf %57, %58 : vector<16x892xf32>
    %60 = vector.extract_strided_slice %59 {offsets = [0, 0], sizes = [16, 859], strides = [1, 1]} : vector<16x892xf32> to vector<16x859xf32>
    %61 = vector.extract_strided_slice %59 {offsets = [0, 1], sizes = [16, 859], strides = [1, 1]} : vector<16x892xf32> to vector<16x859xf32>
    %62 = arith.maximumf %60, %61 : vector<16x859xf32>
    %63 = vector.extract_strided_slice %59 {offsets = [0, 32], sizes = [16, 859], strides = [1, 1]} : vector<16x892xf32> to vector<16x859xf32>
    %64 = vector.extract_strided_slice %59 {offsets = [0, 33], sizes = [16, 859], strides = [1, 1]} : vector<16x892xf32> to vector<16x859xf32>
    %65 = arith.maximumf %63, %64 : vector<16x859xf32>
    %66 = arith.maximumf %62, %65 : vector<16x859xf32>
    %67 = arith.truncf %66 : vector<16x859xf32> to vector<16x859xbf16>
    %c0_35 = arith.constant 0 : index
    %c0_36 = arith.constant 0 : index
    %68 = vector.load %arg4[%c0_35, %c0_36] : memref<859x196xbf16, #tpu.memory_space<vmem>>, vector<859x196xbf16>
    %cst_37 = arith.constant dense<0.000000e+00> : vector<16x196xf32>
    %69 = tpu.matmul %67, %68, %cst_37 {dimension_numbers = #tpu.dot_dimension_numbers<[1], [0], [0], [1], [0, 0, 1, 1], [], []>} : vector<16x859xbf16>, vector<859x196xbf16>, vector<16x196xf32> -> vector<16x196xf32>
    %70 = arith.truncf %69 : vector<16x196xf32> to vector<16x196xbf16>
    %71 = vector.extract_strided_slice %70 {offsets = [0, 0], sizes = [16, 136], strides = [1, 1]} : vector<16x196xbf16> to vector<16x136xbf16>
    %c0_38 = arith.constant 0 : index
    %c0_39 = arith.constant 0 : index
    %72 = vector.load %arg15[%c0_38, %c0_39] : memref<400x896xbf16, #tpu.memory_space<vmem>>, vector<16x136xbf16>
    tpu.vector_store %arg15[%c0_38, %c0_39], %71 {strides = array<i32>} : memref<400x896xbf16, #tpu.memory_space<vmem>>, vector<16x136xbf16>,
    %73 = vector.extract_strided_slice %70 {offsets = [0, 1], sizes = [16, 136], strides = [1, 1]} : vector<16x196xbf16> to vector<16x136xbf16>
    %c16_40 = arith.constant 16 : index
    %c0_41 = arith.constant 0 : index
    %74 = vector.load %arg15[%c16_40, %c0_41] : memref<400x896xbf16, #tpu.memory_space<vmem>>, vector<16x136xbf16>
    tpu.vector_store %arg15[%c16_40, %c0_41], %73 {strides = array<i32>} : memref<400x896xbf16, #tpu.memory_space<vmem>>, vector<16x136xbf16>,
    %75 = vector.extract_strided_slice %70 {offsets = [0, 2], sizes = [16, 136], strides = [1, 1]} : vector<16x196xbf16> to vector<16x136xbf16>
    %c32_42 = arith.constant 32 : index
    %c0_43 = arith.constant 0 : index
    %76 = vector.load %arg15[%c32_42, %c0_43] : memref<400x896xbf16, #tpu.memory_space<vmem>>, vector<16x136xbf16>
    tpu.vector_store %arg15[%c32_42, %c0_43], %75 {strides = array<i32>} : memref<400x896xbf16, #tpu.memory_space<vmem>>, vector<16x136xbf16>,
    %77 = vector.extract_strided_slice %70 {offsets = [0, 3], sizes = [16, 136], strides = [1, 1]} : vector<16x196xbf16> to vector<16x136xbf16>
    %c48_44 = arith.constant 48 : index
    %c0_45 = arith.constant 0 : index
    %78 = vector.load %arg15[%c48_44, %c0_45] : memref<400x896xbf16, #tpu.memory_space<vmem>>, vector<16x136xbf16>
    tpu.vector_store %arg15[%c48_44, %c0_45], %77 {strides = array<i32>} : memref<400x896xbf16, #tpu.memory_space<vmem>>, vector<16x136xbf16>,
    %79 = vector.extract_strided_slice %70 {offsets = [0, 4], sizes = [16, 136], strides = [1, 1]} : vector<16x196xbf16> to vector<16x136xbf16>
    %c64_46 = arith.constant 64 : index
    %c0_47 = arith.constant 0 : index
    %80 = vector.load %arg15[%c64_46, %c0_47] : memref<400x896xbf16, #tpu.memory_space<vmem>>, vector<16x136xbf16>
    tpu.vector_store %arg15[%c64_46, %c0_47], %79 {strides = array<i32>} : memref<400x896xbf16, #tpu.memory_space<vmem>>, vector<16x136xbf16>,
    %81 = vector.extract_strided_slice %70 {offsets = [0, 14], sizes = [16, 136], strides = [1, 1]} : vector<16x196xbf16> to vector<16x136xbf16>
    %c80_48 = arith.constant 80 : index
    %c0_49 = arith.constant 0 : index
    %82 = vector.load %arg15[%c80_48, %c0_49] : memref<400x896xbf16, #tpu.memory_space<vmem>>, vector<16x136xbf16>
    tpu.vector_store %arg15[%c80_48, %c0_49], %81 {strides = array<i32>} : memref<400x896xbf16, #tpu.memory_space<vmem>>, vector<16x136xbf16>,
    %83 = vector.extract_strided_slice %70 {offsets = [0, 15], sizes = [16, 136], strides = [1, 1]} : vector<16x196xbf16> to vector<16x136xbf16>
    %c96_50 = arith.constant 96 : index
    %c0_51 = arith.constant 0 : index
    %84 = vector.load %arg15[%c96_50, %c0_51] : memref<400x896xbf16, #tpu.memory_space<vmem>>, vector<16x136xbf16>
    tpu.vector_store %arg15[%c96_50, %c0_51], %83 {strides = array<i32>} : memref<400x896xbf16, #tpu.memory_space<vmem>>, vector<16x136xbf16>,
    %85 = vector.extract_strided_slice %70 {offsets = [0, 16], sizes = [16, 136], strides = [1, 1]} : vector<16x196xbf16> to vector<16x136xbf16>
    %c112_52 = arith.constant 112 : index
    %c0_53 = arith.constant 0 : index
    %86 = vector.load %arg15[%c112_52, %c0_53] : memref<400x896xbf16, #tpu.memory_space<vmem>>, vector<16x136xbf16>
    tpu.vector_store %arg15[%c112_52, %c0_53], %85 {strides = array<i32>} : memref<400x896xbf16, #tpu.memory_space<vmem>>, vector<16x136xbf16>,
    %87 = vector.extract_strided_slice %70 {offsets = [0, 17], sizes = [16, 136], strides = [1, 1]} : vector<16x196xbf16> to vector<16x136xbf16>
    %c128_54 = arith.constant 128 : index
    %c0_55 = arith.constant 0 : index
    %88 = vector.load %arg15[%c128_54, %c0_55] : memref<400x896xbf16, #tpu.memory_space<vmem>>, vector<16x136xbf16>
    tpu.vector_store %arg15[%c128_54, %c0_55], %87 {strides = array<i32>} : memref<400x896xbf16, #tpu.memory_space<vmem>>, vector<16x136xbf16>,
    %89 = vector.extract_strided_slice %70 {offsets = [0, 18], sizes = [16, 136], strides = [1, 1]} : vector<16x196xbf16> to vector<16x136xbf16>
    %c144_56 = arith.constant 144 : index
    %c0_57 = arith.constant 0 : index
    %90 = vector.load %arg15[%c144_56, %c0_57] : memref<400x896xbf16, #tpu.memory_space<vmem>>, vector<16x136xbf16>
    tpu.vector_store %arg15[%c144_56, %c0_57], %89 {strides = array<i32>} : memref<400x896xbf16, #tpu.memory_space<vmem>>, vector<16x136xbf16>,
    %91 = vector.extract_strided_slice %70 {offsets = [0, 28], sizes = [16, 136], strides = [1, 1]} : vector<16x196xbf16> to vector<16x136xbf16>
    %c160_58 = arith.constant 160 : index
    %c0_59 = arith.constant 0 : index
    %92 = vector.load %arg15[%c160_58, %c0_59] : memref<400x896xbf16, #tpu.memory_space<vmem>>, vector<16x136xbf16>
    tpu.vector_store %arg15[%c160_58, %c0_59], %91 {strides = array<i32>} : memref<400x896xbf16, #tpu.memory_space<vmem>>, vector<16x136xbf16>,
    %93 = vector.extract_strided_slice %70 {offsets = [0, 29], sizes = [16, 136], strides = [1, 1]} : vector<16x196xbf16> to vector<16x136xbf16>
    %c176_60 = arith.constant 176 : index
    %c0_61 = arith.constant 0 : index
    %94 = vector.load %arg15[%c176_60, %c0_61] : memref<400x896xbf16, #tpu.memory_space<vmem>>, vector<16x136xbf16>
    tpu.vector_store %arg15[%c176_60, %c0_61], %93 {strides = array<i32>} : memref<400x896xbf16, #tpu.memory_space<vmem>>, vector<16x136xbf16>,
    %95 = vector.extract_strided_slice %70 {offsets = [0, 30], sizes = [16, 136], strides = [1, 1]} : vector<16x196xbf16> to vector<16x136xbf16>
    %c192_62 = arith.constant 192 : index
    %c0_63 = arith.constant 0 : index
    %96 = vector.load %arg15[%c192_62, %c0_63] : memref<400x896xbf16, #tpu.memory_space<vmem>>, vector<16x136xbf16>
    tpu.vector_store %arg15[%c192_62, %c0_63], %95 {strides = array<i32>} : memref<400x896xbf16, #tpu.memory_space<vmem>>, vector<16x136xbf16>,
    %97 = vector.extract_strided_slice %70 {offsets = [0, 31], sizes = [16, 136], strides = [1, 1]} : vector<16x196xbf16> to vector<16x136xbf16>
    %c208_64 = arith.constant 208 : index
    %c0_65 = arith.constant 0 : index
    %98 = vector.load %arg15[%c208_64, %c0_65] : memref<400x896xbf16, #tpu.memory_space<vmem>>, vector<16x136xbf16>
    tpu.vector_store %arg15[%c208_64, %c0_65], %97 {strides = array<i32>} : memref<400x896xbf16, #tpu.memory_space<vmem>>, vector<16x136xbf16>,
    %99 = vector.extract_strided_slice %70 {offsets = [0, 32], sizes = [16, 136], strides = [1, 1]} : vector<16x196xbf16> to vector<16x136xbf16>
    %c224_66 = arith.constant 224 : index
    %c0_67 = arith.constant 0 : index
    %100 = vector.load %arg15[%c224_66, %c0_67] : memref<400x896xbf16, #tpu.memory_space<vmem>>, vector<16x136xbf16>
    tpu.vector_store %arg15[%c224_66, %c0_67], %99 {strides = array<i32>} : memref<400x896xbf16, #tpu.memory_space<vmem>>, vector<16x136xbf16>,
    %101 = vector.extract_strided_slice %70 {offsets = [0, 42], sizes = [16, 136], strides = [1, 1]} : vector<16x196xbf16> to vector<16x136xbf16>
    %c240_68 = arith.constant 240 : index
    %c0_69 = arith.constant 0 : index
    %102 = vector.load %arg15[%c240_68, %c0_69] : memref<400x896xbf16, #tpu.memory_space<vmem>>, vector<16x136xbf16>
    tpu.vector_store %arg15[%c240_68, %c0_69], %101 {strides = array<i32>} : memref<400x896xbf16, #tpu.memory_space<vmem>>, vector<16x136xbf16>,
    %103 = vector.extract_strided_slice %70 {offsets = [0, 43], sizes = [16, 136], strides = [1, 1]} : vector<16x196xbf16> to vector<16x136xbf16>
    %c256_70 = arith.constant 256 : index
    %c0_71 = arith.constant 0 : index
    %104 = vector.load %arg15[%c256_70, %c0_71] : memref<400x896xbf16, #tpu.memory_space<vmem>>, vector<16x136xbf16>
    tpu.vector_store %arg15[%c256_70, %c0_71], %103 {strides = array<i32>} : memref<400x896xbf16, #tpu.memory_space<vmem>>, vector<16x136xbf16>,
    %105 = vector.extract_strided_slice %70 {offsets = [0, 44], sizes = [16, 136], strides = [1, 1]} : vector<16x196xbf16> to vector<16x136xbf16>
    %c272_72 = arith.constant 272 : index
    %c0_73 = arith.constant 0 : index
    %106 = vector.load %arg15[%c272_72, %c0_73] : memref<400x896xbf16, #tpu.memory_space<vmem>>, vector<16x136xbf16>
    tpu.vector_store %arg15[%c272_72, %c0_73], %105 {strides = array<i32>} : memref<400x896xbf16, #tpu.memory_space<vmem>>, vector<16x136xbf16>,
    %107 = vector.extract_strided_slice %70 {offsets = [0, 45], sizes = [16, 136], strides = [1, 1]} : vector<16x196xbf16> to vector<16x136xbf16>
    %c288_74 = arith.constant 288 : index
    %c0_75 = arith.constant 0 : index
    %108 = vector.load %arg15[%c288_74, %c0_75] : memref<400x896xbf16, #tpu.memory_space<vmem>>, vector<16x136xbf16>
    tpu.vector_store %arg15[%c288_74, %c0_75], %107 {strides = array<i32>} : memref<400x896xbf16, #tpu.memory_space<vmem>>, vector<16x136xbf16>,
    %109 = vector.extract_strided_slice %70 {offsets = [0, 46], sizes = [16, 136], strides = [1, 1]} : vector<16x196xbf16> to vector<16x136xbf16>
    %c304_76 = arith.constant 304 : index
    %c0_77 = arith.constant 0 : index
    %110 = vector.load %arg15[%c304_76, %c0_77] : memref<400x896xbf16, #tpu.memory_space<vmem>>, vector<16x136xbf16>
    tpu.vector_store %arg15[%c304_76, %c0_77], %109 {strides = array<i32>} : memref<400x896xbf16, #tpu.memory_space<vmem>>, vector<16x136xbf16>,
    %111 = vector.extract_strided_slice %70 {offsets = [0, 56], sizes = [16, 136], strides = [1, 1]} : vector<16x196xbf16> to vector<16x136xbf16>
    %c320_78 = arith.constant 320 : index
    %c0_79 = arith.constant 0 : index
    %112 = vector.load %arg15[%c320_78, %c0_79] : memref<400x896xbf16, #tpu.memory_space<vmem>>, vector<16x136xbf16>
    tpu.vector_store %arg15[%c320_78, %c0_79], %111 {strides = array<i32>} : memref<400x896xbf16, #tpu.memory_space<vmem>>, vector<16x136xbf16>,
    %113 = vector.extract_strided_slice %70 {offsets = [0, 57], sizes = [16, 136], strides = [1, 1]} : vector<16x196xbf16> to vector<16x136xbf16>
    %c336_80 = arith.constant 336 : index
    %c0_81 = arith.constant 0 : index
    %114 = vector.load %arg15[%c336_80, %c0_81] : memref<400x896xbf16, #tpu.memory_space<vmem>>, vector<16x136xbf16>
    tpu.vector_store %arg15[%c336_80, %c0_81], %113 {strides = array<i32>} : memref<400x896xbf16, #tpu.memory_space<vmem>>, vector<16x136xbf16>,
    %115 = vector.extract_strided_slice %70 {offsets = [0, 58], sizes = [16, 136], strides = [1, 1]} : vector<16x196xbf16> to vector<16x136xbf16>
    %c352_82 = arith.constant 352 : index
    %c0_83 = arith.constant 0 : index
    %116 = vector.load %arg15[%c352_82, %c0_83] : memref<400x896xbf16, #tpu.memory_space<vmem>>, vector<16x136xbf16>
    tpu.vector_store %arg15[%c352_82, %c0_83], %115 {strides = array<i32>} : memref<400x896xbf16, #tpu.memory_space<vmem>>, vector<16x136xbf16>,
    %117 = vector.extract_strided_slice %70 {offsets = [0, 59], sizes = [16, 136], strides = [1, 1]} : vector<16x196xbf16> to vector<16x136xbf16>
    %c368_84 = arith.constant 368 : index
    %c0_85 = arith.constant 0 : index
    %118 = vector.load %arg15[%c368_84, %c0_85] : memref<400x896xbf16, #tpu.memory_space<vmem>>, vector<16x136xbf16>
    tpu.vector_store %arg15[%c368_84, %c0_85], %117 {strides = array<i32>} : memref<400x896xbf16, #tpu.memory_space<vmem>>, vector<16x136xbf16>,
    %119 = vector.extract_strided_slice %70 {offsets = [0, 60], sizes = [16, 136], strides = [1, 1]} : vector<16x196xbf16> to vector<16x136xbf16>
    %c384_86 = arith.constant 384 : index
    %c0_87 = arith.constant 0 : index
    %120 = vector.load %arg15[%c384_86, %c0_87] : memref<400x896xbf16, #tpu.memory_space<vmem>>, vector<16x136xbf16>
    tpu.vector_store %arg15[%c384_86, %c0_87], %119 {strides = array<i32>} : memref<400x896xbf16, #tpu.memory_space<vmem>>, vector<16x136xbf16>,
    %c0_88 = arith.constant 0 : index
    %c0_89 = arith.constant 0 : index
    %121 = vector.load %arg5[%c0_88, %c0_89] : memref<16x400xbf16, #tpu.memory_space<vmem>>, vector<16x400xbf16>
    %c0_90 = arith.constant 0 : index
    %c0_91 = arith.constant 0 : index
    %122 = vector.load %arg15[%c0_90, %c0_91] : memref<400x896xbf16, #tpu.memory_space<vmem>>, vector<400x136xbf16>
    %cst_92 = arith.constant dense<0.000000e+00> : vector<16x136xf32>
    %123 = tpu.matmul %121, %122, %cst_92 {dimension_numbers = #tpu.dot_dimension_numbers<[1], [0], [0], [1], [0, 0, 1, 1], [], []>} : vector<16x400xbf16>, vector<400x136xbf16>, vector<16x136xf32> -> vector<16x136xf32>
    %c0_93 = arith.constant 0 : index
    %c0_94 = arith.constant 0 : index
    %124 = vector.load %arg6[%c0_93, %c0_94] : memref<16x1xf32, #tpu.memory_space<vmem>>, vector<16x1xf32>
    %125 = vector.broadcast %124 : vector<16x1xf32> to vector<16x136xf32>
    %126 = arith.addf %123, %125 : vector<16x136xf32>
    %cst_95 = arith.constant 0.000000e+00 : f32
    %127 = vector.broadcast %cst_95 : f32 to vector<16x136xf32>
    %128 = arith.maximumf %126, %127 : vector<16x136xf32>
    %129 = vector.extract_strided_slice %128 {offsets = [0, 0], sizes = [16, 121], strides = [1, 1]} : vector<16x136xf32> to vector<16x121xf32>
    %130 = vector.extract_strided_slice %128 {offsets = [0, 1], sizes = [16, 121], strides = [1, 1]} : vector<16x136xf32> to vector<16x121xf32>
    %131 = arith.maximumf %129, %130 : vector<16x121xf32>
    %132 = vector.extract_strided_slice %128 {offsets = [0, 14], sizes = [16, 121], strides = [1, 1]} : vector<16x136xf32> to vector<16x121xf32>
    %133 = vector.extract_strided_slice %128 {offsets = [0, 15], sizes = [16, 121], strides = [1, 1]} : vector<16x136xf32> to vector<16x121xf32>
    %134 = arith.maximumf %132, %133 : vector<16x121xf32>
    %135 = arith.maximumf %131, %134 : vector<16x121xf32>
    %136 = arith.truncf %135 : vector<16x121xf32> to vector<16x121xbf16>
    %c0_96 = arith.constant 0 : index
    %c0_97 = arith.constant 0 : index
    %137 = vector.load %arg7[%c0_96, %c0_97] : memref<121x25xbf16, #tpu.memory_space<vmem>>, vector<121x25xbf16>
    %cst_98 = arith.constant dense<0.000000e+00> : vector<16x25xf32>
    %138 = tpu.matmul %136, %137, %cst_98 {dimension_numbers = #tpu.dot_dimension_numbers<[1], [0], [0], [1], [0, 0, 1, 1], [], []>} : vector<16x121xbf16>, vector<121x25xbf16>, vector<16x25xf32> -> vector<16x25xf32>
    %139 = arith.truncf %138 : vector<16x25xf32> to vector<16x25xbf16>
    %140 = vector.extract_strided_slice %139 {offsets = [0, 0], sizes = [16, 1], strides = [1, 1]} : vector<16x25xbf16> to vector<16x1xbf16>
    %c0_99 = arith.constant 0 : index
    %c0_100 = arith.constant 0 : index
    %141 = vector.load %arg15[%c0_99, %c0_100] : memref<400x896xbf16, #tpu.memory_space<vmem>>, vector<16x1xbf16>
    tpu.vector_store %arg15[%c0_99, %c0_100], %140 {strides = array<i32>} : memref<400x896xbf16, #tpu.memory_space<vmem>>, vector<16x1xbf16>,
    %142 = vector.extract_strided_slice %139 {offsets = [0, 1], sizes = [16, 1], strides = [1, 1]} : vector<16x25xbf16> to vector<16x1xbf16>
    %c16_101 = arith.constant 16 : index
    %c0_102 = arith.constant 0 : index
    %143 = vector.load %arg15[%c16_101, %c0_102] : memref<400x896xbf16, #tpu.memory_space<vmem>>, vector<16x1xbf16>
    tpu.vector_store %arg15[%c16_101, %c0_102], %142 {strides = array<i32>} : memref<400x896xbf16, #tpu.memory_space<vmem>>, vector<16x1xbf16>,
    %144 = vector.extract_strided_slice %139 {offsets = [0, 2], sizes = [16, 1], strides = [1, 1]} : vector<16x25xbf16> to vector<16x1xbf16>
    %c32_103 = arith.constant 32 : index
    %c0_104 = arith.constant 0 : index
    %145 = vector.load %arg15[%c32_103, %c0_104] : memref<400x896xbf16, #tpu.memory_space<vmem>>, vector<16x1xbf16>
    tpu.vector_store %arg15[%c32_103, %c0_104], %144 {strides = array<i32>} : memref<400x896xbf16, #tpu.memory_space<vmem>>, vector<16x1xbf16>,
    %146 = vector.extract_strided_slice %139 {offsets = [0, 3], sizes = [16, 1], strides = [1, 1]} : vector<16x25xbf16> to vector<16x1xbf16>
    %c48_105 = arith.constant 48 : index
    %c0_106 = arith.constant 0 : index
    %147 = vector.load %arg15[%c48_105, %c0_106] : memref<400x896xbf16, #tpu.memory_space<vmem>>, vector<16x1xbf16>
    tpu.vector_store %arg15[%c48_105, %c0_106], %146 {strides = array<i32>} : memref<400x896xbf16, #tpu.memory_space<vmem>>, vector<16x1xbf16>,
    %148 = vector.extract_strided_slice %139 {offsets = [0, 4], sizes = [16, 1], strides = [1, 1]} : vector<16x25xbf16> to vector<16x1xbf16>
    %c64_107 = arith.constant 64 : index
    %c0_108 = arith.constant 0 : index
    %149 = vector.load %arg15[%c64_107, %c0_108] : memref<400x896xbf16, #tpu.memory_space<vmem>>, vector<16x1xbf16>
    tpu.vector_store %arg15[%c64_107, %c0_108], %148 {strides = array<i32>} : memref<400x896xbf16, #tpu.memory_space<vmem>>, vector<16x1xbf16>,
    %150 = vector.extract_strided_slice %139 {offsets = [0, 5], sizes = [16, 1], strides = [1, 1]} : vector<16x25xbf16> to vector<16x1xbf16>
    %c80_109 = arith.constant 80 : index
    %c0_110 = arith.constant 0 : index
    %151 = vector.load %arg15[%c80_109, %c0_110] : memref<400x896xbf16, #tpu.memory_space<vmem>>, vector<16x1xbf16>
    tpu.vector_store %arg15[%c80_109, %c0_110], %150 {strides = array<i32>} : memref<400x896xbf16, #tpu.memory_space<vmem>>, vector<16x1xbf16>,
    %152 = vector.extract_strided_slice %139 {offsets = [0, 6], sizes = [16, 1], strides = [1, 1]} : vector<16x25xbf16> to vector<16x1xbf16>
    %c96_111 = arith.constant 96 : index
    %c0_112 = arith.constant 0 : index
    %153 = vector.load %arg15[%c96_111, %c0_112] : memref<400x896xbf16, #tpu.memory_space<vmem>>, vector<16x1xbf16>
    tpu.vector_store %arg15[%c96_111, %c0_112], %152 {strides = array<i32>} : memref<400x896xbf16, #tpu.memory_space<vmem>>, vector<16x1xbf16>,
    %154 = vector.extract_strided_slice %139 {offsets = [0, 7], sizes = [16, 1], strides = [1, 1]} : vector<16x25xbf16> to vector<16x1xbf16>
    %c112_113 = arith.constant 112 : index
    %c0_114 = arith.constant 0 : index
    %155 = vector.load %arg15[%c112_113, %c0_114] : memref<400x896xbf16, #tpu.memory_space<vmem>>, vector<16x1xbf16>
    tpu.vector_store %arg15[%c112_113, %c0_114], %154 {strides = array<i32>} : memref<400x896xbf16, #tpu.memory_space<vmem>>, vector<16x1xbf16>,
    %156 = vector.extract_strided_slice %139 {offsets = [0, 8], sizes = [16, 1], strides = [1, 1]} : vector<16x25xbf16> to vector<16x1xbf16>
    %c128_115 = arith.constant 128 : index
    %c0_116 = arith.constant 0 : index
    %157 = vector.load %arg15[%c128_115, %c0_116] : memref<400x896xbf16, #tpu.memory_space<vmem>>, vector<16x1xbf16>
    tpu.vector_store %arg15[%c128_115, %c0_116], %156 {strides = array<i32>} : memref<400x896xbf16, #tpu.memory_space<vmem>>, vector<16x1xbf16>,
    %158 = vector.extract_strided_slice %139 {offsets = [0, 9], sizes = [16, 1], strides = [1, 1]} : vector<16x25xbf16> to vector<16x1xbf16>
    %c144_117 = arith.constant 144 : index
    %c0_118 = arith.constant 0 : index
    %159 = vector.load %arg15[%c144_117, %c0_118] : memref<400x896xbf16, #tpu.memory_space<vmem>>, vector<16x1xbf16>
    tpu.vector_store %arg15[%c144_117, %c0_118], %158 {strides = array<i32>} : memref<400x896xbf16, #tpu.memory_space<vmem>>, vector<16x1xbf16>,
    %160 = vector.extract_strided_slice %139 {offsets = [0, 10], sizes = [16, 1], strides = [1, 1]} : vector<16x25xbf16> to vector<16x1xbf16>
    %c160_119 = arith.constant 160 : index
    %c0_120 = arith.constant 0 : index
    %161 = vector.load %arg15[%c160_119, %c0_120] : memref<400x896xbf16, #tpu.memory_space<vmem>>, vector<16x1xbf16>
    tpu.vector_store %arg15[%c160_119, %c0_120], %160 {strides = array<i32>} : memref<400x896xbf16, #tpu.memory_space<vmem>>, vector<16x1xbf16>,
    %162 = vector.extract_strided_slice %139 {offsets = [0, 11], sizes = [16, 1], strides = [1, 1]} : vector<16x25xbf16> to vector<16x1xbf16>
    %c176_121 = arith.constant 176 : index
    %c0_122 = arith.constant 0 : index
    %163 = vector.load %arg15[%c176_121, %c0_122] : memref<400x896xbf16, #tpu.memory_space<vmem>>, vector<16x1xbf16>
    tpu.vector_store %arg15[%c176_121, %c0_122], %162 {strides = array<i32>} : memref<400x896xbf16, #tpu.memory_space<vmem>>, vector<16x1xbf16>,
    %164 = vector.extract_strided_slice %139 {offsets = [0, 12], sizes = [16, 1], strides = [1, 1]} : vector<16x25xbf16> to vector<16x1xbf16>
    %c192_123 = arith.constant 192 : index
    %c0_124 = arith.constant 0 : index
    %165 = vector.load %arg15[%c192_123, %c0_124] : memref<400x896xbf16, #tpu.memory_space<vmem>>, vector<16x1xbf16>
    tpu.vector_store %arg15[%c192_123, %c0_124], %164 {strides = array<i32>} : memref<400x896xbf16, #tpu.memory_space<vmem>>, vector<16x1xbf16>,
    %166 = vector.extract_strided_slice %139 {offsets = [0, 13], sizes = [16, 1], strides = [1, 1]} : vector<16x25xbf16> to vector<16x1xbf16>
    %c208_125 = arith.constant 208 : index
    %c0_126 = arith.constant 0 : index
    %167 = vector.load %arg15[%c208_125, %c0_126] : memref<400x896xbf16, #tpu.memory_space<vmem>>, vector<16x1xbf16>
    tpu.vector_store %arg15[%c208_125, %c0_126], %166 {strides = array<i32>} : memref<400x896xbf16, #tpu.memory_space<vmem>>, vector<16x1xbf16>,
    %168 = vector.extract_strided_slice %139 {offsets = [0, 14], sizes = [16, 1], strides = [1, 1]} : vector<16x25xbf16> to vector<16x1xbf16>
    %c224_127 = arith.constant 224 : index
    %c0_128 = arith.constant 0 : index
    %169 = vector.load %arg15[%c224_127, %c0_128] : memref<400x896xbf16, #tpu.memory_space<vmem>>, vector<16x1xbf16>
    tpu.vector_store %arg15[%c224_127, %c0_128], %168 {strides = array<i32>} : memref<400x896xbf16, #tpu.memory_space<vmem>>, vector<16x1xbf16>,
    %170 = vector.extract_strided_slice %139 {offsets = [0, 15], sizes = [16, 1], strides = [1, 1]} : vector<16x25xbf16> to vector<16x1xbf16>
    %c240_129 = arith.constant 240 : index
    %c0_130 = arith.constant 0 : index
    %171 = vector.load %arg15[%c240_129, %c0_130] : memref<400x896xbf16, #tpu.memory_space<vmem>>, vector<16x1xbf16>
    tpu.vector_store %arg15[%c240_129, %c0_130], %170 {strides = array<i32>} : memref<400x896xbf16, #tpu.memory_space<vmem>>, vector<16x1xbf16>,
    %172 = vector.extract_strided_slice %139 {offsets = [0, 16], sizes = [16, 1], strides = [1, 1]} : vector<16x25xbf16> to vector<16x1xbf16>
    %c256_131 = arith.constant 256 : index
    %c0_132 = arith.constant 0 : index
    %173 = vector.load %arg15[%c256_131, %c0_132] : memref<400x896xbf16, #tpu.memory_space<vmem>>, vector<16x1xbf16>
    tpu.vector_store %arg15[%c256_131, %c0_132], %172 {strides = array<i32>} : memref<400x896xbf16, #tpu.memory_space<vmem>>, vector<16x1xbf16>,
    %174 = vector.extract_strided_slice %139 {offsets = [0, 17], sizes = [16, 1], strides = [1, 1]} : vector<16x25xbf16> to vector<16x1xbf16>
    %c272_133 = arith.constant 272 : index
    %c0_134 = arith.constant 0 : index
    %175 = vector.load %arg15[%c272_133, %c0_134] : memref<400x896xbf16, #tpu.memory_space<vmem>>, vector<16x1xbf16>
    tpu.vector_store %arg15[%c272_133, %c0_134], %174 {strides = array<i32>} : memref<400x896xbf16, #tpu.memory_space<vmem>>, vector<16x1xbf16>,
    %176 = vector.extract_strided_slice %139 {offsets = [0, 18], sizes = [16, 1], strides = [1, 1]} : vector<16x25xbf16> to vector<16x1xbf16>
    %c288_135 = arith.constant 288 : index
    %c0_136 = arith.constant 0 : index
    %177 = vector.load %arg15[%c288_135, %c0_136] : memref<400x896xbf16, #tpu.memory_space<vmem>>, vector<16x1xbf16>
    tpu.vector_store %arg15[%c288_135, %c0_136], %176 {strides = array<i32>} : memref<400x896xbf16, #tpu.memory_space<vmem>>, vector<16x1xbf16>,
    %178 = vector.extract_strided_slice %139 {offsets = [0, 19], sizes = [16, 1], strides = [1, 1]} : vector<16x25xbf16> to vector<16x1xbf16>
    %c304_137 = arith.constant 304 : index
    %c0_138 = arith.constant 0 : index
    %179 = vector.load %arg15[%c304_137, %c0_138] : memref<400x896xbf16, #tpu.memory_space<vmem>>, vector<16x1xbf16>
    tpu.vector_store %arg15[%c304_137, %c0_138], %178 {strides = array<i32>} : memref<400x896xbf16, #tpu.memory_space<vmem>>, vector<16x1xbf16>,
    %180 = vector.extract_strided_slice %139 {offsets = [0, 20], sizes = [16, 1], strides = [1, 1]} : vector<16x25xbf16> to vector<16x1xbf16>
    %c320_139 = arith.constant 320 : index
    %c0_140 = arith.constant 0 : index
    %181 = vector.load %arg15[%c320_139, %c0_140] : memref<400x896xbf16, #tpu.memory_space<vmem>>, vector<16x1xbf16>
    tpu.vector_store %arg15[%c320_139, %c0_140], %180 {strides = array<i32>} : memref<400x896xbf16, #tpu.memory_space<vmem>>, vector<16x1xbf16>,
    %182 = vector.extract_strided_slice %139 {offsets = [0, 21], sizes = [16, 1], strides = [1, 1]} : vector<16x25xbf16> to vector<16x1xbf16>
    %c336_141 = arith.constant 336 : index
    %c0_142 = arith.constant 0 : index
    %183 = vector.load %arg15[%c336_141, %c0_142] : memref<400x896xbf16, #tpu.memory_space<vmem>>, vector<16x1xbf16>
    tpu.vector_store %arg15[%c336_141, %c0_142], %182 {strides = array<i32>} : memref<400x896xbf16, #tpu.memory_space<vmem>>, vector<16x1xbf16>,
    %184 = vector.extract_strided_slice %139 {offsets = [0, 22], sizes = [16, 1], strides = [1, 1]} : vector<16x25xbf16> to vector<16x1xbf16>
    %c352_143 = arith.constant 352 : index
    %c0_144 = arith.constant 0 : index
    %185 = vector.load %arg15[%c352_143, %c0_144] : memref<400x896xbf16, #tpu.memory_space<vmem>>, vector<16x1xbf16>
    tpu.vector_store %arg15[%c352_143, %c0_144], %184 {strides = array<i32>} : memref<400x896xbf16, #tpu.memory_space<vmem>>, vector<16x1xbf16>,
    %186 = vector.extract_strided_slice %139 {offsets = [0, 23], sizes = [16, 1], strides = [1, 1]} : vector<16x25xbf16> to vector<16x1xbf16>
    %c368_145 = arith.constant 368 : index
    %c0_146 = arith.constant 0 : index
    %187 = vector.load %arg15[%c368_145, %c0_146] : memref<400x896xbf16, #tpu.memory_space<vmem>>, vector<16x1xbf16>
    tpu.vector_store %arg15[%c368_145, %c0_146], %186 {strides = array<i32>} : memref<400x896xbf16, #tpu.memory_space<vmem>>, vector<16x1xbf16>,
    %188 = vector.extract_strided_slice %139 {offsets = [0, 24], sizes = [16, 1], strides = [1, 1]} : vector<16x25xbf16> to vector<16x1xbf16>
    %c384_147 = arith.constant 384 : index
    %c0_148 = arith.constant 0 : index
    %189 = vector.load %arg15[%c384_147, %c0_148] : memref<400x896xbf16, #tpu.memory_space<vmem>>, vector<16x1xbf16>
    tpu.vector_store %arg15[%c384_147, %c0_148], %188 {strides = array<i32>} : memref<400x896xbf16, #tpu.memory_space<vmem>>, vector<16x1xbf16>,
    %c0_149 = arith.constant 0 : index
    %c0_150 = arith.constant 0 : index
    %190 = vector.load %arg8[%c0_149, %c0_150] : memref<128x400xbf16, #tpu.memory_space<vmem>>, vector<128x400xbf16>
    %c0_151 = arith.constant 0 : index
    %c0_152 = arith.constant 0 : index
    %191 = vector.load %arg15[%c0_151, %c0_152] : memref<400x896xbf16, #tpu.memory_space<vmem>>, vector<400x1xbf16>
    %cst_153 = arith.constant dense<0.000000e+00> : vector<128x1xf32>
    %192 = tpu.matmul %190, %191, %cst_153 {dimension_numbers = #tpu.dot_dimension_numbers<[1], [0], [0], [1], [0, 0, 1, 1], [], []>} : vector<128x400xbf16>, vector<400x1xbf16>, vector<128x1xf32> -> vector<128x1xf32>
    %c0_154 = arith.constant 0 : index
    %c0_155 = arith.constant 0 : index
    %193 = vector.load %arg9[%c0_154, %c0_155] : memref<128x1xf32, #tpu.memory_space<vmem>>, vector<128x1xf32>
    %194 = arith.addf %192, %193 : vector<128x1xf32>
    %cst_156 = arith.constant 0.000000e+00 : f32
    %195 = vector.broadcast %cst_156 : f32 to vector<128x1xf32>
    %196 = arith.maximumf %194, %195 : vector<128x1xf32>
    %c0_157 = arith.constant 0 : index
    %c0_158 = arith.constant 0 : index
    %197 = vector.load %arg10[%c0_157, %c0_158] : memref<128x128xbf16, #tpu.memory_space<vmem>>, vector<128x128xbf16>
    %198 = arith.truncf %196 : vector<128x1xf32> to vector<128x1xbf16>
    %cst_159 = arith.constant dense<0.000000e+00> : vector<128x1xf32>
    %199 = tpu.matmul %197, %198, %cst_159 {dimension_numbers = #tpu.dot_dimension_numbers<[1], [0], [0], [1], [0, 0, 1, 1], [], []>} : vector<128x128xbf16>, vector<128x1xbf16>, vector<128x1xf32> -> vector<128x1xf32>
    %c0_160 = arith.constant 0 : index
    %c0_161 = arith.constant 0 : index
    %200 = vector.load %arg11[%c0_160, %c0_161] : memref<128x1xf32, #tpu.memory_space<vmem>>, vector<128x1xf32>
    %201 = arith.addf %199, %200 : vector<128x1xf32>
    %cst_162 = arith.constant 0.000000e+00 : f32
    %202 = vector.broadcast %cst_162 : f32 to vector<128x1xf32>
    %203 = arith.maximumf %201, %202 : vector<128x1xf32>
    %c0_163 = arith.constant 0 : index
    %c0_164 = arith.constant 0 : index
    %204 = vector.load %arg12[%c0_163, %c0_164] : memref<16x128xbf16, #tpu.memory_space<vmem>>, vector<16x128xbf16>
    %205 = arith.truncf %203 : vector<128x1xf32> to vector<128x1xbf16>
    %cst_165 = arith.constant dense<0.000000e+00> : vector<16x1xf32>
    %206 = tpu.matmul %204, %205, %cst_165 {dimension_numbers = #tpu.dot_dimension_numbers<[1], [0], [0], [1], [0, 0, 1, 1], [], []>} : vector<16x128xbf16>, vector<128x1xbf16>, vector<16x1xf32> -> vector<16x1xf32>
    %c0_166 = arith.constant 0 : index
    %c0_167 = arith.constant 0 : index
    %207 = vector.load %arg13[%c0_166, %c0_167] : memref<16x1xf32, #tpu.memory_space<vmem>>, vector<16x1xf32>
    %208 = arith.addf %206, %207 : vector<16x1xf32>
    %209 = vector.shape_cast %208 : vector<16x1xf32> to vector<16x1xf32>
    %210 = vector.broadcast %209 : vector<16x1xf32> to vector<16x128xf32>
    %c0_168 = arith.constant 0 : index
    %c0_169 = arith.constant 0 : index
    %c0_170 = arith.constant 0 : index
    %211 = vector.load %arg14[%c0_168, %c0_169, %c0_170] : memref<1x16x128xf32, #tpu.memory_space<vmem>>, vector<1x16x128xf32>
    %212 = vector.shape_cast %211 : vector<1x16x128xf32> to vector<16x128xf32>
    %213 = vector.shape_cast %210 : vector<16x128xf32> to vector<1x16x128xf32>
    tpu.vector_store %arg14[%c0_168, %c0_169, %c0_170], %213 {strides = array<i32>} : memref<1x16x128xf32, #tpu.memory_space<vmem>>, vector<1x16x128xf32>,
    return
  }
  func.func @transform_0(%arg0: i32) -> (i32, i32, i32) {
    %c0_i32 = arith.constant 0 : i32
    %c0_i32_0 = arith.constant 0 : i32
    %c0_i32_1 = arith.constant 0 : i32
    return %arg0, %c0_i32, %c0_i32_0 : i32, i32, i32
  }
  func.func @transform_1(%arg0: i32) -> (i32, i32) {
    %c0_i32 = arith.constant 0 : i32
    %c0_i32_0 = arith.constant 0 : i32
    %c0_i32_1 = arith.constant 0 : i32
    return %c0_i32, %c0_i32_0 : i32, i32
  }
  func.func @transform_2(%arg0: i32) -> (i32, i32) {
    %c0_i32 = arith.constant 0 : i32
    %c0_i32_0 = arith.constant 0 : i32
    %c0_i32_1 = arith.constant 0 : i32
    return %c0_i32, %c0_i32_0 : i32, i32
  }
  func.func @transform_3(%arg0: i32) -> (i32, i32) {
    %c0_i32 = arith.constant 0 : i32
    %c0_i32_0 = arith.constant 0 : i32
    %c0_i32_1 = arith.constant 0 : i32
    return %c0_i32, %c0_i32_0 : i32, i32
  }
  func.func @transform_4(%arg0: i32) -> (i32, i32) {
    %c0_i32 = arith.constant 0 : i32
    %c0_i32_0 = arith.constant 0 : i32
    %c0_i32_1 = arith.constant 0 : i32
    return %c0_i32, %c0_i32_0 : i32, i32
  }
  func.func @transform_5(%arg0: i32) -> (i32, i32) {
    %c0_i32 = arith.constant 0 : i32
    %c0_i32_0 = arith.constant 0 : i32
    %c0_i32_1 = arith.constant 0 : i32
    return %c0_i32, %c0_i32_0 : i32, i32
  }
  func.func @transform_6(%arg0: i32) -> (i32, i32) {
    %c0_i32 = arith.constant 0 : i32
    %c0_i32_0 = arith.constant 0 : i32
    %c0_i32_1 = arith.constant 0 : i32
    return %c0_i32, %c0_i32_0 : i32, i32
  }
  func.func @transform_7(%arg0: i32) -> (i32, i32) {
    %c0_i32 = arith.constant 0 : i32
    %c0_i32_0 = arith.constant 0 : i32
    %c0_i32_1 = arith.constant 0 : i32
    return %c0_i32, %c0_i32_0 : i32, i32
  }
  func.func @transform_8(%arg0: i32) -> (i32, i32) {
    %c0_i32 = arith.constant 0 : i32
    %c0_i32_0 = arith.constant 0 : i32
    %c0_i32_1 = arith.constant 0 : i32
    return %c0_i32, %c0_i32_0 : i32, i32
  }
  func.func @transform_9(%arg0: i32) -> (i32, i32) {
    %c0_i32 = arith.constant 0 : i32
    %c0_i32_0 = arith.constant 0 : i32
    %c0_i32_1 = arith.constant 0 : i32
    return %c0_i32, %c0_i32_0 : i32, i32
  }
  func.func @transform_10(%arg0: i32) -> (i32, i32) {
    %c0_i32 = arith.constant 0 : i32
    %c0_i32_0 = arith.constant 0 : i32
    %c0_i32_1 = arith.constant 0 : i32
    return %c0_i32, %c0_i32_0 : i32, i32
  }
  func.func @transform_11(%arg0: i32) -> (i32, i32) {
    %c0_i32 = arith.constant 0 : i32
    %c0_i32_0 = arith.constant 0 : i32
    %c0_i32_1 = arith.constant 0 : i32
    return %c0_i32, %c0_i32_0 : i32, i32
  }
  func.func @transform_12(%arg0: i32) -> (i32, i32) {
    %c0_i32 = arith.constant 0 : i32
    %c0_i32_0 = arith.constant 0 : i32
    %c0_i32_1 = arith.constant 0 : i32
    return %c0_i32, %c0_i32_0 : i32, i32
  }
  func.func @transform_13(%arg0: i32) -> (i32, i32, i32) {
    %c0_i32 = arith.constant 0 : i32
    %c0_i32_0 = arith.constant 0 : i32
    %c0_i32_1 = arith.constant 0 : i32
    return %arg0, %c0_i32, %c0_i32_0 : i32, i32, i32
  }
}

</mosaic_0001>

<llo_original>
// kernel: convnet_forward_fn.1
$region0: #{convnet_forward_fn.1}
  #allocation0 [shape = 'u32[]', space=smem, size = 0x4, offset = 0x4, fixed_abs, tag = 'smem constant byte address 0x4 - core index']
  #allocation1 [shape = 'u32[144,128]{1,0:T(1,128)}', space=vmem, size = 0x12000, scoped, tag = 'internal scratch']
  #allocation2 [shape = 'bf16[400,896]{1,0:T(8,128)(2,1)}', space=vmem, size = 0xaf000, scoped, tag = 'scratch operand']
  %s0 = inlined_call_operand.vmem [shape: bf16[2,16,1024], index: 0, kind: input, shape index: {}]
  %s1 = inlined_call_operand.vmem [shape: bf16[16,400], index: 1, kind: input, shape index: {}]
  %s2 = inlined_call_operand.vmem [shape: f32[16,1], index: 2, kind: input, shape index: {}]
  %s3 = inlined_call_operand.vmem [shape: bf16[859,196], index: 3, kind: input, shape index: {}]
  %s4 = inlined_call_operand.vmem [shape: bf16[16,400], index: 4, kind: input, shape index: {}]
  %s5 = inlined_call_operand.vmem [shape: f32[16,1], index: 5, kind: input, shape index: {}]
  %s6 = inlined_call_operand.vmem [shape: bf16[121,25], index: 6, kind: input, shape index: {}]
  %s7 = inlined_call_operand.vmem [shape: bf16[128,400], index: 7, kind: input, shape index: {}]
  %s8 = inlined_call_operand.vmem [shape: f32[128,1], index: 8, kind: input, shape index: {}]
  %s9 = inlined_call_operand.vmem [shape: bf16[128,128], index: 9, kind: input, shape index: {}]
  %s10 = inlined_call_operand.vmem [shape: f32[128,1], index: 10, kind: input, shape index: {}]
  %s11 = inlined_call_operand.vmem [shape: bf16[16,128], index: 11, kind: input, shape index: {}]
  %s12 = inlined_call_operand.vmem [shape: f32[16,1], index: 12, kind: input, shape index: {}]
  %s13 = inlined_call_operand.vmem [shape: f32[2,16,128], index: 13, kind: output, shape index: {}]
  %s14 = sld [smem:[#allocation0]]
  $region85: #{convnet_forward_fn.1} parent=0
    _
  %s16 = ssub.s32 1, %s14
  %s17 = scalar_select 0, %s16, %s14
  loop: start=0, step=1, limit=4
  $region2: #{convnet_forward_fn.1} parent=0 // loop_pre_header
    _
  $region3: #{convnet_forward_fn.1} parent=0 // loop_header
    %s19 = sphi 0, %s23
    %p20 = scmp.ge.s32.totalorder %s19, 4
    %s29 = sphi 0, %s31
    %s32 = sphi 0, %s29
    %s33 = sphi 0, %s32
    %s49 = sphi 0, %s33
    %s53 = sphi 0, %s53
    %s55 = sphi 0, %s53
    %s56 = sphi 0, %s55
    %s70 = sphi 0, %s56
    %s74 = sphi 0, %s74
    %s76 = sphi 0, %s74
    %s77 = sphi 0, %s76
    %s91 = sphi 0, %s77
    %s95 = sphi 0, %s95
    %s97 = sphi 0, %s95
    %s98 = sphi 0, %s97
    %s112 = sphi 0, %s98
    %s116 = sphi 0, %s116
    %s118 = sphi 0, %s116
    %s119 = sphi 0, %s118
    %s133 = sphi 0, %s119
    %s137 = sphi 0, %s137
    %s139 = sphi 0, %s137
    %s140 = sphi 0, %s139
    %s154 = sphi 0, %s140
    %s158 = sphi 0, %s158
    %s160 = sphi 0, %s158
    %s161 = sphi 0, %s160
    %s175 = sphi 0, %s161
    %s179 = sphi 0, %s179
    %s181 = sphi 0, %s179
    %s182 = sphi 0, %s181
    %s196 = sphi 0, %s182
    %s200 = sphi 0, %s200
    %s202 = sphi 0, %s200
    %s203 = sphi 0, %s202
    %s217 = sphi 0, %s203
    %s221 = sphi 0, %s221
    %s223 = sphi 0, %s221
    %s224 = sphi 0, %s223
    %s238 = sphi 0, %s224
    %s242 = sphi 0, %s242
    %s244 = sphi 0, %s242
    %s245 = sphi 0, %s244
    %s259 = sphi 0, %s245
    %s263 = sphi 0, %s263
    %s265 = sphi 0, %s263
    %s266 = sphi 0, %s265
    %s280 = sphi 0, %s266
    %s284 = sphi 0, %s284
    %s286 = sphi 0, %s284
    %s287 = sphi 0, %s286
    %s301 = sphi 0, %s287
    %s307 = sphi 0, %s309
    %s310 = sphi 0, %s307
    %s311 = sphi 0, %s310
    %s327 = sphi 0, %s311
  $region4: #{convnet_forward_fn.1} parent=0 // loop_header_branch
    %22 = sbr.rel (%p20) target = $region8
  $region5: #{convnet_forward_fn.1} parent=0 // loop_body
    %s24 = ssub.s32 %s19, 1
    %s25 = ssub.s32 %s19, 2
    %s26 = sadd.s32 %s19, 1
    %s27 = ssub.s32 %s19, %s26
    %p28 = scmp.eq.s32.totalorder %s27, 0
    %s30 = sadd.s32 %s29, 1
    %s31 = scalar_select %p28, %s29, %s30
    %p34 = pneg %p28
    %p35 = scmp.eq.s32.totalorder %s19, 1
    %p36 = por %p34, %p35
    %p37 = scmp.ne.s32.totalorder %s29, %s32
    %p38 = scmp.eq.s32.totalorder %s19, 0
    %p39 = por %p37, %p38
    %p40 = scmp.ne.s32.totalorder %s29, %s32
    %p41 = scmp.eq.s32.totalorder %s24, 1
    %p42 = por %p40, %p41
    %p43 = scmp.ne.s32.totalorder %s32, %s33
    %p44 = scmp.eq.s32.totalorder %s24, 0
    %p45 = por %p43, %p44
    %p46 = scmp.ne.s32.totalorder %s32, %s33
    %p47 = scmp.eq.s32.totalorder %s25, 1
    %p48 = por %p46, %p47
    %p50 = scmp.ne.s32.totalorder %s33, %s49
    %p51 = scmp.eq.s32.totalorder %s25, 0
    %p52 = por %p50, %p51
    %s54 = sadd.s32 %s53, 1
    %p57 = scmp.eq.s32.totalorder %s19, 1
    %p58 = scmp.ne.s32.totalorder %s53, %s55
    %p59 = scmp.eq.s32.totalorder %s19, 0
    %p60 = por %p58, %p59
    %p61 = scmp.ne.s32.totalorder %s53, %s55
    %p62 = scmp.eq.s32.totalorder %s24, 1
    %p63 = por %p61, %p62
    %p64 = scmp.ne.s32.totalorder %s55, %s56
    %p65 = scmp.eq.s32.totalorder %s24, 0
    %p66 = por %p64, %p65
    %p67 = scmp.ne.s32.totalorder %s55, %s56
    %p68 = scmp.eq.s32.totalorder %s25, 1
    %p69 = por %p67, %p68
    %p71 = scmp.ne.s32.totalorder %s56, %s70
    %p72 = scmp.eq.s32.totalorder %s25, 0
    %p73 = por %p71, %p72
    %s75 = sadd.s32 %s74, 1
    %p78 = scmp.eq.s32.totalorder %s19, 1
    %p79 = scmp.ne.s32.totalorder %s74, %s76
    %p80 = scmp.eq.s32.totalorder %s19, 0
    %p81 = por %p79, %p80
    %p82 = scmp.ne.s32.totalorder %s74, %s76
    %p83 = scmp.eq.s32.totalorder %s24, 1
    %p84 = por %p82, %p83
    %p85 = scmp.ne.s32.totalorder %s76, %s77
    %p86 = scmp.eq.s32.totalorder %s24, 0
    %p87 = por %p85, %p86
    %p88 = scmp.ne.s32.totalorder %s76, %s77
    %p89 = scmp.eq.s32.totalorder %s25, 1
    %p90 = por %p88, %p89
    %p92 = scmp.ne.s32.totalorder %s77, %s91
    %p93 = scmp.eq.s32.totalorder %s25, 0
    %p94 = por %p92, %p93
    %s96 = sadd.s32 %s95, 1
    %p99 = scmp.eq.s32.totalorder %s19, 1
    %p100 = scmp.ne.s32.totalorder %s95, %s97
    %p101 = scmp.eq.s32.totalorder %s19, 0
    %p102 = por %p100, %p101
    %p103 = scmp.ne.s32.totalorder %s95, %s97
    %p104 = scmp.eq.s32.totalorder %s24, 1
    %p105 = por %p103, %p104
    %p106 = scmp.ne.s32.totalorder %s97, %s98
    %p107 = scmp.eq.s32.totalorder %s24, 0
    %p108 = por %p106, %p107
    %p109 = scmp.ne.s32.totalorder %s97, %s98
    %p110 = scmp.eq.s32.totalorder %s25, 1
    %p111 = por %p109, %p110
    %p113 = scmp.ne.s32.totalorder %s98, %s112
    %p114 = scmp.eq.s32.totalorder %s25, 0
    %p115 = por %p113, %p114
    %s117 = sadd.s32 %s116, 1
    %p120 = scmp.eq.s32.totalorder %s19, 1
    %p121 = scmp.ne.s32.totalorder %s116, %s118
    %p122 = scmp.eq.s32.totalorder %s19, 0
    %p123 = por %p121, %p122
    %p124 = scmp.ne.s32.totalorder %s116, %s118
    %p125 = scmp.eq.s32.totalorder %s24, 1
    %p126 = por %p124, %p125
    %p127 = scmp.ne.s32.totalorder %s118, %s119
    %p128 = scmp.eq.s32.totalorder %s24, 0
    %p129 = por %p127, %p128
    %p130 = scmp.ne.s32.totalorder %s118, %s119
    %p131 = scmp.eq.s32.totalorder %s25, 1
    %p132 = por %p130, %p131
    %p134 = scmp.ne.s32.totalorder %s119, %s133
    %p135 = scmp.eq.s32.totalorder %s25, 0
    %p136 = por %p134, %p135
    %s138 = sadd.s32 %s137, 1
    %p141 = scmp.eq.s32.totalorder %s19, 1
    %p142 = scmp.ne.s32.totalorder %s137, %s139
    %p143 = scmp.eq.s32.totalorder %s19, 0
    %p144 = por %p142, %p143
    %p145 = scmp.ne.s32.totalorder %s137, %s139
    %p146 = scmp.eq.s32.totalorder %s24, 1
    %p147 = por %p145, %p146
    %p148 = scmp.ne.s32.totalorder %s139, %s140
    %p149 = scmp.eq.s32.totalorder %s24, 0
    %p150 = por %p148, %p149
    %p151 = scmp.ne.s32.totalorder %s139, %s140
    %p152 = scmp.eq.s32.totalorder %s25, 1
    %p153 = por %p151, %p152
    %p155 = scmp.ne.s32.totalorder %s140, %s154
    %p156 = scmp.eq.s32.totalorder %s25, 0
    %p157 = por %p155, %p156
    %s159 = sadd.s32 %s158, 1
    %p162 = scmp.eq.s32.totalorder %s19, 1
    %p163 = scmp.ne.s32.totalorder %s158, %s160
    %p164 = scmp.eq.s32.totalorder %s19, 0
    %p165 = por %p163, %p164
    %p166 = scmp.ne.s32.totalorder %s158, %s160
    %p167 = scmp.eq.s32.totalorder %s24, 1
    %p168 = por %p166, %p167
    %p169 = scmp.ne.s32.totalorder %s160, %s161
    %p170 = scmp.eq.s32.totalorder %s24, 0
    %p171 = por %p169, %p170
    %p172 = scmp.ne.s32.totalorder %s160, %s161
    %p173 = scmp.eq.s32.totalorder %s25, 1
    %p174 = por %p172, %p173
    %p176 = scmp.ne.s32.totalorder %s161, %s175
    %p177 = scmp.eq.s32.totalorder %s25, 0
    %p178 = por %p176, %p177
    %s180 = sadd.s32 %s179, 1
    %p183 = scmp.eq.s32.totalorder %s19, 1
    %p184 = scmp.ne.s32.totalorder %s179, %s181
    %p185 = scmp.eq.s32.totalorder %s19, 0
    %p186 = por %p184, %p185
    %p187 = scmp.ne.s32.totalorder %s179, %s181
    %p188 = scmp.eq.s32.totalorder %s24, 1
    %p189 = por %p187, %p188
    %p190 = scmp.ne.s32.totalorder %s181, %s182
    %p191 = scmp.eq.s32.totalorder %s24, 0
    %p192 = por %p190, %p191
    %p193 = scmp.ne.s32.totalorder %s181, %s182
    %p194 = scmp.eq.s32.totalorder %s25, 1
    %p195 = por %p193, %p194
    %p197 = scmp.ne.s32.totalorder %s182, %s196
    %p198 = scmp.eq.s32.totalorder %s25, 0
    %p199 = por %p197, %p198
    %s201 = sadd.s32 %s200, 1
    %p204 = scmp.eq.s32.totalorder %s19, 1
    %p205 = scmp.ne.s32.totalorder %s200, %s202
    %p206 = scmp.eq.s32.totalorder %s19, 0
    %p207 = por %p205, %p206
    %p208 = scmp.ne.s32.totalorder %s200, %s202
    %p209 = scmp.eq.s32.totalorder %s24, 1
    %p210 = por %p208, %p209
    %p211 = scmp.ne.s32.totalorder %s202, %s203
    %p212 = scmp.eq.s32.totalorder %s24, 0
    %p213 = por %p211, %p212
    %p214 = scmp.ne.s32.totalorder %s202, %s203
    %p215 = scmp.eq.s32.totalorder %s25, 1
    %p216 = por %p214, %p215
    %p218 = scmp.ne.s32.totalorder %s203, %s217
    %p219 = scmp.eq.s32.totalorder %s25, 0
    %p220 = por %p218, %p219
    %s222 = sadd.s32 %s221, 1
    %p225 = scmp.eq.s32.totalorder %s19, 1
    %p226 = scmp.ne.s32.totalorder %s221, %s223
    %p227 = scmp.eq.s32.totalorder %s19, 0
    %p228 = por %p226, %p227
    %p229 = scmp.ne.s32.totalorder %s221, %s223
    %p230 = scmp.eq.s32.totalorder %s24, 1
    %p231 = por %p229, %p230
    %p232 = scmp.ne.s32.totalorder %s223, %s224
    %p233 = scmp.eq.s32.totalorder %s24, 0
    %p234 = por %p232, %p233
    %p235 = scmp.ne.s32.totalorder %s223, %s224
    %p236 = scmp.eq.s32.totalorder %s25, 1
    %p237 = por %p235, %p236
    %p239 = scmp.ne.s32.totalorder %s224, %s238
    %p240 = scmp.eq.s32.totalorder %s25, 0
    %p241 = por %p239, %p240
    %s243 = sadd.s32 %s242, 1
    %p246 = scmp.eq.s32.totalorder %s19, 1
    %p247 = scmp.ne.s32.totalorder %s242, %s244
    %p248 = scmp.eq.s32.totalorder %s19, 0
    %p249 = por %p247, %p248
    %p250 = scmp.ne.s32.totalorder %s242, %s244
    %p251 = scmp.eq.s32.totalorder %s24, 1
    %p252 = por %p250, %p251
    %p253 = scmp.ne.s32.totalorder %s244, %s245
    %p254 = scmp.eq.s32.totalorder %s24, 0
    %p255 = por %p253, %p254
    %p256 = scmp.ne.s32.totalorder %s244, %s245
    %p257 = scmp.eq.s32.totalorder %s25, 1
    %p258 = por %p256, %p257
    %p260 = scmp.ne.s32.totalorder %s245, %s259
    %p261 = scmp.eq.s32.totalorder %s25, 0
    %p262 = por %p260, %p261
    %s264 = sadd.s32 %s263, 1
    %p267 = scmp.eq.s32.totalorder %s19, 1
    %p268 = scmp.ne.s32.totalorder %s263, %s265
    %p269 = scmp.eq.s32.totalorder %s19, 0
    %p270 = por %p268, %p269
    %p271 = scmp.ne.s32.totalorder %s263, %s265
    %p272 = scmp.eq.s32.totalorder %s24, 1
    %p273 = por %p271, %p272
    %p274 = scmp.ne.s32.totalorder %s265, %s266
    %p275 = scmp.eq.s32.totalorder %s24, 0
    %p276 = por %p274, %p275
    %p277 = scmp.ne.s32.totalorder %s265, %s266
    %p278 = scmp.eq.s32.totalorder %s25, 1
    %p279 = por %p277, %p278
    %p281 = scmp.ne.s32.totalorder %s266, %s280
    %p282 = scmp.eq.s32.totalorder %s25, 0
    %p283 = por %p281, %p282
    %s285 = sadd.s32 %s284, 1
    %p288 = scmp.eq.s32.totalorder %s19, 1
    %p289 = scmp.ne.s32.totalorder %s284, %s286
    %p290 = scmp.eq.s32.totalorder %s19, 0
    %p291 = por %p289, %p290
    %p292 = scmp.ne.s32.totalorder %s284, %s286
    %p293 = scmp.eq.s32.totalorder %s24, 1
    %p294 = por %p292, %p293
    %p295 = scmp.ne.s32.totalorder %s286, %s287
    %p296 = scmp.eq.s32.totalorder %s24, 0
    %p297 = por %p295, %p296
    %p298 = scmp.ne.s32.totalorder %s286, %s287
    %p299 = scmp.eq.s32.totalorder %s25, 1
    %p300 = por %p298, %p299
    %p302 = scmp.ne.s32.totalorder %s287, %s301
    %p303 = scmp.eq.s32.totalorder %s25, 0
    %p304 = por %p302, %p303
    %s305 = ssub.s32 %s19, %s26
    %p306 = scmp.eq.s32.totalorder %s305, 0
    %s308 = sadd.s32 %s307, 1
    %s309 = scalar_select %p306, %s307, %s308
    %p312 = pneg %p306
    %p313 = scmp.eq.s32.totalorder %s19, 1
    %p314 = por %p312, %p313
    %p315 = scmp.ne.s32.totalorder %s307, %s310
    %p316 = scmp.eq.s32.totalorder %s19, 0
    %p317 = por %p315, %p316
    %p318 = scmp.ne.s32.totalorder %s307, %s310
    %p319 = scmp.eq.s32.totalorder %s24, 1
    %p320 = por %p318, %p319
    %p321 = scmp.ne.s32.totalorder %s310, %s311
    %p322 = scmp.eq.s32.totalorder %s24, 0
    %p323 = por %p321, %p322
    %p324 = scmp.ne.s32.totalorder %s310, %s311
    %p325 = scmp.eq.s32.totalorder %s25, 1
    %p326 = por %p324, %p325
    %p328 = scmp.ne.s32.totalorder %s311, %s327
    %p329 = scmp.eq.s32.totalorder %s25, 0
    %p330 = por %p328, %p329
    %p331 = scmp.le.s32.totalorder 1, %s19
    %p332 = scmp.lt.s32.totalorder %s19, 3
    %p333 = pnand %p331, %p332
    %p334 = pneg %p333
    // Predicated region
    $region9: #{convnet_forward_fn.1} parent=5 // pred_check
      _
    $region10: #{convnet_forward_fn.1} parent=5 // pred_check_branch
      %336 = sbr.rel (%p333) target = $region12
    $region11: #{convnet_forward_fn.1} parent=5 // pred_region
      %s337 = ssub.s32 %s19, 1
      // Predicated region
      $region13: #{convnet_forward_fn.1} parent=11 // pred_check
        %p338 = pneg %p66
      $region14: #{convnet_forward_fn.1} parent=11 // pred_check_branch
        %340 = sbr.rel (%p338) target = $region16
      $region15: #{convnet_forward_fn.1} parent=11 // pred_region
        _
      $region16: #{convnet_forward_fn.1} parent=11 // pred_fallthru
        _
      // Predicated region
      $region17: #{convnet_forward_fn.1} parent=11 // pred_check
        %p341 = pneg %p87
      $region18: #{convnet_forward_fn.1} parent=11 // pred_check_branch
        %343 = sbr.rel (%p341) target = $region20
      $region19: #{convnet_forward_fn.1} parent=11 // pred_region
        _
      $region20: #{convnet_forward_fn.1} parent=11 // pred_fallthru
        _
      // Predicated region
      $region21: #{convnet_forward_fn.1} parent=11 // pred_check
        %p344 = pneg %p108
      $region22: #{convnet_forward_fn.1} parent=11 // pred_check_branch
        %346 = sbr.rel (%p344) target = $region24
      $region23: #{convnet_forward_fn.1} parent=11 // pred_region
        _
      $region24: #{convnet_forward_fn.1} parent=11 // pred_fallthru
        _
      // Predicated region
      $region25: #{convnet_forward_fn.1} parent=11 // pred_check
        %p347 = pneg %p129
      $region26: #{convnet_forward_fn.1} parent=11 // pred_check_branch
        %349 = sbr.rel (%p347) target = $region28
      $region27: #{convnet_forward_fn.1} parent=11 // pred_region
        _
      $region28: #{convnet_forward_fn.1} parent=11 // pred_fallthru
        _
      // Predicated region
      $region29: #{convnet_forward_fn.1} parent=11 // pred_check
        %p350 = pneg %p150
      $region30: #{convnet_forward_fn.1} parent=11 // pred_check_branch
        %352 = sbr.rel (%p350) target = $region32
      $region31: #{convnet_forward_fn.1} parent=11 // pred_region
        _
      $region32: #{convnet_forward_fn.1} parent=11 // pred_fallthru
        _
      // Predicated region
      $region33: #{convnet_forward_fn.1} parent=11 // pred_check
        %p353 = pneg %p171
      $region34: #{convnet_forward_fn.1} parent=11 // pred_check_branch
        %355 = sbr.rel (%p353) target = $region36
      $region35: #{convnet_forward_fn.1} parent=11 // pred_region
        _
      $region36: #{convnet_forward_fn.1} parent=11 // pred_fallthru
        _
      // Predicated region
      $region37: #{convnet_forward_fn.1} parent=11 // pred_check
        %p356 = pneg %p192
      $region38: #{convnet_forward_fn.1} parent=11 // pred_check_branch
        %358 = sbr.rel (%p356) target = $region40
      $region39: #{convnet_forward_fn.1} parent=11 // pred_region
        _
      $region40: #{convnet_forward_fn.1} parent=11 // pred_fallthru
        _
      // Predicated region
      $region41: #{convnet_forward_fn.1} parent=11 // pred_check
        %p359 = pneg %p213
      $region42: #{convnet_forward_fn.1} parent=11 // pred_check_branch
        %361 = sbr.rel (%p359) target = $region44
      $region43: #{convnet_forward_fn.1} parent=11 // pred_region
        _
      $region44: #{convnet_forward_fn.1} parent=11 // pred_fallthru
        _
      // Predicated region
      $region45: #{convnet_forward_fn.1} parent=11 // pred_check
        %p362 = pneg %p234
      $region46: #{convnet_forward_fn.1} parent=11 // pred_check_branch
        %364 = sbr.rel (%p362) target = $region48
      $region47: #{convnet_forward_fn.1} parent=11 // pred_region
        _
      $region48: #{convnet_forward_fn.1} parent=11 // pred_fallthru
        _
      // Predicated region
      $region49: #{convnet_forward_fn.1} parent=11 // pred_check
        %p365 = pneg %p255
      $region50: #{convnet_forward_fn.1} parent=11 // pred_check_branch
        %367 = sbr.rel (%p365) target = $region52
      $region51: #{convnet_forward_fn.1} parent=11 // pred_region
        _
      $region52: #{convnet_forward_fn.1} parent=11 // pred_fallthru
        _
      // Predicated region
      $region53: #{convnet_forward_fn.1} parent=11 // pred_check
        %p368 = pneg %p276
      $region54: #{convnet_forward_fn.1} parent=11 // pred_check_branch
        %370 = sbr.rel (%p368) target = $region56
      $region55: #{convnet_forward_fn.1} parent=11 // pred_region
        _
      $region56: #{convnet_forward_fn.1} parent=11 // pred_fallthru
        _
      // Predicated region
      $region57: #{convnet_forward_fn.1} parent=11 // pred_check
        %p371 = pneg %p297
      $region58: #{convnet_forward_fn.1} parent=11 // pred_check_branch
        %373 = sbr.rel (%p371) target = $region60
      $region59: #{convnet_forward_fn.1} parent=11 // pred_region
        _
      $region60: #{convnet_forward_fn.1} parent=11 // pred_fallthru
        _
    $region12: #{convnet_forward_fn.1} parent=5 // pred_fallthru
      _
    %p374 = scmp.lt.s32.totalorder %s19, 2
    // Predicated region
    $region61: #{convnet_forward_fn.1} parent=5 // pred_check
      %p375 = pneg %p374
    $region62: #{convnet_forward_fn.1} parent=5 // pred_check_branch
      %377 = sbr.rel (%p375) target = $region64
    $region63: #{convnet_forward_fn.1} parent=5 // pred_region
      // Predicated region
      $region65: #{convnet_forward_fn.1} parent=63 // pred_check
        %p378 = pneg %p39
      $region66: #{convnet_forward_fn.1} parent=63 // pred_check_branch
        %380 = sbr.rel (%p378) target = $region68
      $region67: #{convnet_forward_fn.1} parent=63 // pred_region
        %p381 = scmp.lt.s32.totalorder %s19, 1
        %s382 = scalar_select %p381, %s19, 1
        %s383 = smul.addr %s382, 16
        %s384 = smul.addr %s383, 4
        %s385 = scalar_lea.vmem %s0, %s384
      $region68: #{convnet_forward_fn.1} parent=63 // pred_fallthru
        _
    $region64: #{convnet_forward_fn.1} parent=5 // pred_fallthru
      _
    %p386 = scmp.le.s32.totalorder 1, %s19
    %p387 = scmp.lt.s32.totalorder %s19, 3
    %p388 = pnand %p386, %p387
    %p389 = pneg %p388
    // Predicated region
    $region69: #{convnet_forward_fn.1} parent=5 // pred_check
      _
    $region70: #{convnet_forward_fn.1} parent=5 // pred_check_branch
      %391 = sbr.rel (%p388) target = $region72
    $region71: #{convnet_forward_fn.1} parent=5 // pred_region
      %s392 = ssub.s32 %s19, 1
      %p393 = scmp.lt.s32.totalorder %s24, 1
      %s394 = scalar_select %p393, %s24, 1
      %s395 = smul.addr %s394, 16
      %s396 = smul.addr %s395, 4
      %s397 = scalar_lea.vmem %s0, %s396
      %p398 = pneg %p45
      %p399 = pneg %p42
      %p400 = pneg %p66
      %p401 = pneg %p63
      %p402 = pneg %p87
      %p403 = pneg %p84
      %p404 = pneg %p108
      %p405 = pneg %p105
      %p406 = pneg %p129
      %p407 = pneg %p126
      %p408 = pneg %p150
      %p409 = pneg %p147
      %p410 = pneg %p171
      %p411 = pneg %p168
      %p412 = pneg %p192
      %p413 = pneg %p189
      %p414 = pneg %p213
      %p415 = pneg %p210
      %p416 = pneg %p234
      %p417 = pneg %p231
      %p418 = pneg %p255
      %p419 = pneg %p252
      %p420 = pneg %p276
      %p421 = pneg %p273
      %p422 = pneg %p297
      %p423 = pneg %p294
      %p424 = pneg %p323
      %p425 = pneg %p320
      %p426 = scmp.lt.s32.totalorder %s24, 1
      %s427 = scalar_select %p426, %s24, 1
      %s428 = smul.addr %s427, 2
      %s429 = smul.addr %s428, 8
      %s430 = scalar_lea.vmem %s13, %s429
      %p431 = scmp.lt.s32.totalorder %s24, 1
      %s432 = scalar_select %p431, %s24, 1
      %s433 = smul.addr %s432, 16
      %s434 = smul.addr %s433, 4
      %s435 = scalar_lea.vmem %s0, %s434
      %p436 = scmp.lt.s32.totalorder %s24, 1
      %s437 = scalar_select %p436, %s24, 1
      %s438 = smul.addr %s437, 2
      %s439 = smul.addr %s438, 8
      %s440 = scalar_lea.vmem %s13, %s439
      %v442 = vld [vmem:[%s435] sm:$0xff]
      %v443 = vld [vmem:[%s435 + $0x8] sm:$0xff]
      %v444 = vld [vmem:[%s435 + $0x10] sm:$0xff]
      %v445 = vld [vmem:[%s435 + $0x18] sm:$0xff]
      %v446 = vld [vmem:[%s435 + $0x20] sm:$0xff]
      %v447 = vld [vmem:[%s435 + $0x28] sm:$0xff]
      %v448 = vld [vmem:[%s435 + $0x30] sm:$0xff]
      %v449 = vld [vmem:[%s435 + $0x38] sm:$0xff]
      %450 = vst [vmem:[#allocation2] sm:$0xff] %v442
      %451 = vst [vmem:[#allocation2 + $0x8] sm:$0xff] %v443
      %452 = vst [vmem:[#allocation2 + $0x10] sm:$0xff] %v444
      %vm453 = vcmask 1010688
      %454 = vst.msk [vmem:[#allocation2 + $0x18] sm:$0xf] %vm453, %v445
      %455 = vst [vmem:[#allocation2 + $0x1c] sm:$0xff] %v446
      %456 = vst [vmem:[#allocation2 + $0x24] sm:$0xff] %v447
      %457 = vst [vmem:[#allocation2 + $0x2c] sm:$0xff] %v448
      %458 = vst.msk [vmem:[#allocation2 + $0x34] sm:$0xf] %vm453, %v449
      %467 = vrot.lane.b32.xlu0 %v442, 127
      %v468 = vpop.permute.xlu0 %467
      %469 = vrot.lane.b32.xlu0 %v443, 127
      %v470 = vpop.permute.xlu0 %469
      %471 = vrot.lane.b32.xlu0 %v444, 127
      %v472 = vpop.permute.xlu0 %471
      %473 = vrot.lane.b32.xlu0 %v445, 127
      %v474 = vpop.permute.xlu0 %473
      %475 = vrot.lane.b32.xlu0 %v446, 127
      %v476 = vpop.permute.xlu0 %475
      %477 = vrot.lane.b32.xlu0 %v447, 127
      %v478 = vpop.permute.xlu0 %477
      %479 = vrot.lane.b32.xlu0 %v448, 127
      %v480 = vpop.permute.xlu0 %479
      %481 = vrot.lane.b32.xlu0 %v449, 127
      %v482 = vpop.permute.xlu0 %481
      %v483 = vrot.slane %v468, 4
      %v484 = vrot.slane %v470, 4
      %v485 = vrot.slane %v472, 4
      %v486 = vrot.slane %v474, 4
      %v487 = vrot.slane %v476, 4
      %v488 = vrot.slane %v478, 4
      %v489 = vrot.slane %v480, 4
      %v490 = vrot.slane %v482, 4
      %vm491 = vcmask 1043456
      %v492 = vsel %vm491, %v483, %v484
      %vm493 = vcmask 1039360
      %v494 = vsel %vm493, %v468, %v492
      %v495 = vsel %vm491, %v484, %v485
      %v496 = vsel %vm493, %v470, %v495
      %v497 = vsel %vm491, %v485, %v486
      %v498 = vsel %vm493, %v472, %v497
      %v499 = vsel %vm491, %v487, %v488
      %v500 = vsel %vm493, %v476, %v499
      %v501 = vsel %vm491, %v488, %v489
      %v502 = vsel %vm493, %v478, %v501
      %v503 = vsel %vm491, %v489, %v490
      %v504 = vsel %vm493, %v480, %v503
      %513 = vst [vmem:[#allocation2 + $0x38] sm:$0xff] %v494
      %514 = vst [vmem:[#allocation2 + $0x40] sm:$0xff] %v496
      %515 = vst [vmem:[#allocation2 + $0x48] sm:$0xff] %v498
      %516 = vst.msk [vmem:[#allocation2 + $0x50] sm:$0xf] %vm453, %v474
      %517 = vst [vmem:[#allocation2 + $0x54] sm:$0xff] %v500
      %518 = vst [vmem:[#allocation2 + $0x5c] sm:$0xff] %v502
      %519 = vst [vmem:[#allocation2 + $0x64] sm:$0xff] %v504
      %520 = vst.msk [vmem:[#allocation2 + $0x6c] sm:$0xf] %vm453, %v482
      %521 = vrot.lane.b32.xlu0 %v442, 126
      %v522 = vpop.permute.xlu0 %521
      %523 = vrot.lane.b32.xlu0 %v443, 126
      %v524 = vpop.permute.xlu0 %523
      %525 = vrot.lane.b32.xlu0 %v444, 126
      %v526 = vpop.permute.xlu0 %525
      %527 = vrot.lane.b32.xlu0 %v445, 126
      %v528 = vpop.permute.xlu0 %527
      %529 = vrot.lane.b32.xlu0 %v446, 126
      %v530 = vpop.permute.xlu0 %529
      %531 = vrot.lane.b32.xlu0 %v447, 126
      %v532 = vpop.permute.xlu0 %531
      %533 = vrot.lane.b32.xlu0 %v448, 126
      %v534 = vpop.permute.xlu0 %533
      %535 = vrot.lane.b32.xlu0 %v449, 126
      %v536 = vpop.permute.xlu0 %535
      %v537 = vrot.slane %v522, 4
      %v538 = vrot.slane %v524, 4
      %v539 = vrot.slane %v526, 4
      %v540 = vrot.slane %v528, 4
      %v541 = vrot.slane %v530, 4
      %v542 = vrot.slane %v532, 4
      %v543 = vrot.slane %v534, 4
      %v544 = vrot.slane %v536, 4
      %v545 = vsel %vm491, %v537, %v538
      %vm546 = vcmask 1031168
      %v547 = vsel %vm546, %v522, %v545
      %v548 = vsel %vm491, %v538, %v539
      %v549 = vsel %vm546, %v524, %v548
      %v550 = vsel %vm491, %v539, %v540
      %v551 = vsel %vm546, %v526, %v550
      %v552 = vsel %vm491, %v541, %v542
      %v553 = vsel %vm546, %v530, %v552
      %v554 = vsel %vm491, %v542, %v543
      %v555 = vsel %vm546, %v532, %v554
      %v556 = vsel %vm491, %v543, %v544
      %v557 = vsel %vm546, %v534, %v556
      %566 = vst [vmem:[#allocation2 + $0x70] sm:$0xff] %v547
      %567 = vst [vmem:[#allocation2 + $0x78] sm:$0xff] %v549
      %568 = vst [vmem:[#allocation2 + $0x80] sm:$0xff] %v551
      %569 = vst.msk [vmem:[#allocation2 + $0x88] sm:$0xf] %vm453, %v528
      %570 = vst [vmem:[#allocation2 + $0x8c] sm:$0xff] %v553
      %571 = vst [vmem:[#allocation2 + $0x94] sm:$0xff] %v555
      %572 = vst [vmem:[#allocation2 + $0x9c] sm:$0xff] %v557
      %573 = vst.msk [vmem:[#allocation2 + $0xa4] sm:$0xf] %vm453, %v536
      %574 = vrot.lane.b32.xlu0 %v442, 125
      %v575 = vpop.permute.xlu0 %574
      %576 = vrot.lane.b32.xlu0 %v443, 125
      %v577 = vpop.permute.xlu0 %576
      %578 = vrot.lane.b32.xlu0 %v444, 125
      %v579 = vpop.permute.xlu0 %578
      %580 = vrot.lane.b32.xlu0 %v445, 125
      %v581 = vpop.permute.xlu0 %580
      %582 = vrot.lane.b32.xlu0 %v446, 125
      %v583 = vpop.permute.xlu0 %582
      %584 = vrot.lane.b32.xlu0 %v447, 125
      %v585 = vpop.permute.xlu0 %584
      %586 = vrot.lane.b32.xlu0 %v448, 125
      %v587 = vpop.permute.xlu0 %586
      %588 = vrot.lane.b32.xlu0 %v449, 125
      %v589 = vpop.permute.xlu0 %588
      %v590 = vrot.slane %v575, 4
      %v591 = vrot.slane %v577, 4
      %v592 = vrot.slane %v579, 4
      %v593 = vrot.slane %v581, 4
      %v594 = vrot.slane %v583, 4
      %v595 = vrot.slane %v585, 4
      %v596 = vrot.slane %v587, 4
      %v597 = vrot.slane %v589, 4
      %v598 = vsel %vm491, %v590, %v591
      %vm599 = vcmask 1022976
      %v600 = vsel %vm599, %v575, %v598
      %v601 = vsel %vm491, %v591, %v592
      %v602 = vsel %vm599, %v577, %v601
      %v603 = vsel %vm491, %v592, %v593
      %v604 = vsel %vm599, %v579, %v603
      %v605 = vsel %vm491, %v594, %v595
      %v606 = vsel %vm599, %v583, %v605
      %v607 = vsel %vm491, %v595, %v596
      %v608 = vsel %vm599, %v585, %v607
      %v609 = vsel %vm491, %v596, %v597
      %v610 = vsel %vm599, %v587, %v609
      %619 = vst [vmem:[#allocation2 + $0xa8] sm:$0xff] %v600
      %620 = vst [vmem:[#allocation2 + $0xb0] sm:$0xff] %v602
      %621 = vst [vmem:[#allocation2 + $0xb8] sm:$0xff] %v604
      %622 = vst.msk [vmem:[#allocation2 + $0xc0] sm:$0xf] %vm453, %v581
      %623 = vst [vmem:[#allocation2 + $0xc4] sm:$0xff] %v606
      %624 = vst [vmem:[#allocation2 + $0xcc] sm:$0xff] %v608
      %625 = vst [vmem:[#allocation2 + $0xd4] sm:$0xff] %v610
      %626 = vst.msk [vmem:[#allocation2 + $0xdc] sm:$0xf] %vm453, %v589
      %627 = vrot.lane.b32.xlu0 %v442, 124
      %v628 = vpop.permute.xlu0 %627
      %629 = vrot.lane.b32.xlu0 %v443, 124
      %v630 = vpop.permute.xlu0 %629
      %631 = vrot.lane.b32.xlu0 %v444, 124
      %v632 = vpop.permute.xlu0 %631
      %633 = vrot.lane.b32.xlu0 %v445, 124
      %v634 = vpop.permute.xlu0 %633
      %635 = vrot.lane.b32.xlu0 %v446, 124
      %v636 = vpop.permute.xlu0 %635
      %637 = vrot.lane.b32.xlu0 %v447, 124
      %v638 = vpop.permute.xlu0 %637
      %639 = vrot.lane.b32.xlu0 %v448, 124
      %v640 = vpop.permute.xlu0 %639
      %641 = vrot.lane.b32.xlu0 %v449, 124
      %v642 = vpop.permute.xlu0 %641
      %v643 = vrot.slane %v628, 4
      %v644 = vrot.slane %v630, 4
      %v645 = vrot.slane %v632, 4
      %v646 = vrot.slane %v634, 4
      %v647 = vrot.slane %v636, 4
      %v648 = vrot.slane %v638, 4
      %v649 = vrot.slane %v640, 4
      %v650 = vrot.slane %v642, 4
      %v651 = vsel %vm491, %v643, %v644
      %vm652 = vcmask 1014784
      %v653 = vsel %vm652, %v628, %v651
      %v654 = vsel %vm491, %v644, %v645
      %v655 = vsel %vm652, %v630, %v654
      %v656 = vsel %vm491, %v645, %v646
      %v657 = vsel %vm652, %v632, %v656
      %v658 = vsel %vm491, %v647, %v648
      %v659 = vsel %vm652, %v636, %v658
      %v660 = vsel %vm491, %v648, %v649
      %v661 = vsel %vm652, %v638, %v660
      %v662 = vsel %vm491, %v649, %v650
      %v663 = vsel %vm652, %v640, %v662
      %672 = vst [vmem:[#allocation2 + $0xe0] sm:$0xff] %v653
      %673 = vst [vmem:[#allocation2 + $0xe8] sm:$0xff] %v655
      %674 = vst [vmem:[#allocation2 + $0xf0] sm:$0xff] %v657
      %675 = vst.msk [vmem:[#allocation2 + $0xf8] sm:$0xf] %vm453, %v634
      %676 = vst [vmem:[#allocation2 + $0xfc] sm:$0xff] %v659
      %677 = vst [vmem:[#allocation2 + $0x104] sm:$0xff] %v661
      %678 = vst [vmem:[#allocation2 + $0x10c] sm:$0xff] %v663
      %679 = vst.msk [vmem:[#allocation2 + $0x114] sm:$0xf] %vm453, %v642
      %680 = vrot.lane.b32.xlu0 %v442, 96
      %v681 = vpop.permute.xlu0 %680
      %682 = vrot.lane.b32.xlu0 %v443, 96
      %v683 = vpop.permute.xlu0 %682
      %684 = vrot.lane.b32.xlu0 %v444, 96
      %v685 = vpop.permute.xlu0 %684
      %686 = vrot.lane.b32.xlu0 %v445, 96
      %v687 = vpop.permute.xlu0 %686
      %688 = vrot.lane.b32.xlu0 %v446, 96
      %v689 = vpop.permute.xlu0 %688
      %690 = vrot.lane.b32.xlu0 %v447, 96
      %v691 = vpop.permute.xlu0 %690
      %692 = vrot.lane.b32.xlu0 %v448, 96
      %v693 = vpop.permute.xlu0 %692
      %694 = vrot.lane.b32.xlu0 %v449, 96
      %v695 = vpop.permute.xlu0 %694
      %v696 = vrot.slane %v681, 4
      %v697 = vrot.slane %v683, 4
      %v698 = vrot.slane %v685, 4
      %v699 = vrot.slane %v687, 4
      %v700 = vrot.slane %v689, 4
      %v701 = vrot.slane %v691, 4
      %v702 = vrot.slane %v693, 4
      %v703 = vrot.slane %v695, 4
      %v704 = vsel %vm491, %v696, %v697
      %vm705 = vcmask 785408
      %v706 = vsel %vm705, %v681, %v704
      %v707 = vsel %vm491, %v697, %v698
      %v708 = vsel %vm705, %v683, %v707
      %v709 = vsel %vm491, %v698, %v699
      %v710 = vsel %vm705, %v685, %v709
      %v711 = vsel %vm705, %v687, %v699
      %v712 = vsel %vm491, %v700, %v701
      %v713 = vsel %vm705, %v689, %v712
      %v714 = vsel %vm491, %v701, %v702
      %v715 = vsel %vm705, %v691, %v714
      %v716 = vsel %vm491, %v702, %v703
      %v717 = vsel %vm705, %v693, %v716
      %v718 = vsel %vm705, %v695, %v703
      %727 = vst [vmem:[#allocation2 + $0x118] sm:$0xff] %v706
      %728 = vst [vmem:[#allocation2 + $0x120] sm:$0xff] %v708
      %729 = vst [vmem:[#allocation2 + $0x128] sm:$0xff] %v710
      %730 = vst.msk [vmem:[#allocation2 + $0x130] sm:$0xf] %vm453, %v711
      %731 = vst [vmem:[#allocation2 + $0x134] sm:$0xff] %v713
      %732 = vst [vmem:[#allocation2 + $0x13c] sm:$0xff] %v715
      %733 = vst [vmem:[#allocation2 + $0x144] sm:$0xff] %v717
      %734 = vst.msk [vmem:[#allocation2 + $0x14c] sm:$0xf] %vm453, %v718
      %735 = vrot.lane.b32.xlu0 %v442, 95
      %v736 = vpop.permute.xlu0 %735
      %737 = vrot.lane.b32.xlu0 %v443, 95
      %v738 = vpop.permute.xlu0 %737
      %739 = vrot.lane.b32.xlu0 %v444, 95
      %v740 = vpop.permute.xlu0 %739
      %741 = vrot.lane.b32.xlu0 %v445, 95
      %v742 = vpop.permute.xlu0 %741
      %743 = vrot.lane.b32.xlu0 %v446, 95
      %v744 = vpop.permute.xlu0 %743
      %745 = vrot.lane.b32.xlu0 %v447, 95
      %v746 = vpop.permute.xlu0 %745
      %747 = vrot.lane.b32.xlu0 %v448, 95
      %v748 = vpop.permute.xlu0 %747
      %749 = vrot.lane.b32.xlu0 %v449, 95
      %v750 = vpop.permute.xlu0 %749
      %v751 = vrot.slane %v736, 4
      %v752 = vrot.slane %v738, 4
      %v753 = vrot.slane %v740, 4
      %v754 = vrot.slane %v742, 4
      %v755 = vrot.slane %v744, 4
      %v756 = vrot.slane %v746, 4
      %v757 = vrot.slane %v748, 4
      %v758 = vrot.slane %v750, 4
      %v759 = vsel %vm491, %v751, %v752
      %vm760 = vcmask 777216
      %v761 = vsel %vm760, %v736, %v759
      %v762 = vsel %vm491, %v752, %v753
      %v763 = vsel %vm760, %v738, %v762
      %v764 = vsel %vm491, %v753, %v754
      %v765 = vsel %vm760, %v740, %v764
      %v766 = vsel %vm760, %v742, %v754
      %v767 = vsel %vm491, %v755, %v756
      %v768 = vsel %vm760, %v744, %v767
      %v769 = vsel %vm491, %v756, %v757
      %v770 = vsel %vm760, %v746, %v769
      %v771 = vsel %vm491, %v757, %v758
      %v772 = vsel %vm760, %v748, %v771
      %v773 = vsel %vm760, %v750, %v758
      %782 = vst [vmem:[#allocation2 + $0x150] sm:$0xff] %v761
      %783 = vst [vmem:[#allocation2 + $0x158] sm:$0xff] %v763
      %784 = vst [vmem:[#allocation2 + $0x160] sm:$0xff] %v765
      %785 = vst.msk [vmem:[#allocation2 + $0x168] sm:$0xf] %vm453, %v766
      %786 = vst [vmem:[#allocation2 + $0x16c] sm:$0xff] %v768
      %787 = vst [vmem:[#allocation2 + $0x174] sm:$0xff] %v770
      %788 = vst [vmem:[#allocation2 + $0x17c] sm:$0xff] %v772
      %789 = vst.msk [vmem:[#allocation2 + $0x184] sm:$0xf] %vm453, %v773
      %790 = vrot.lane.b32.xlu0 %v442, 94
      %v791 = vpop.permute.xlu0 %790
      %792 = vrot.lane.b32.xlu0 %v443, 94
      %v793 = vpop.permute.xlu0 %792
      %794 = vrot.lane.b32.xlu0 %v444, 94
      %v795 = vpop.permute.xlu0 %794
      %796 = vrot.lane.b32.xlu0 %v445, 94
      %v797 = vpop.permute.xlu0 %796
      %798 = vrot.lane.b32.xlu0 %v446, 94
      %v799 = vpop.permute.xlu0 %798
      %800 = vrot.lane.b32.xlu0 %v447, 94
      %v801 = vpop.permute.xlu0 %800
      %802 = vrot.lane.b32.xlu0 %v448, 94
      %v803 = vpop.permute.xlu0 %802
      %804 = vrot.lane.b32.xlu0 %v449, 94
      %v805 = vpop.permute.xlu0 %804
      %v806 = vrot.slane %v791, 4
      %v807 = vrot.slane %v793, 4
      %v808 = vrot.slane %v795, 4
      %v809 = vrot.slane %v797, 4
      %v810 = vrot.slane %v799, 4
      %v811 = vrot.slane %v801, 4
      %v812 = vrot.slane %v803, 4
      %v813 = vrot.slane %v805, 4
      %v814 = vsel %vm491, %v806, %v807
      %vm815 = vcmask 769024
      %v816 = vsel %vm815, %v791, %v814
      %v817 = vsel %vm491, %v807, %v808
      %v818 = vsel %vm815, %v793, %v817
      %v819 = vsel %vm491, %v808, %v809
      %v820 = vsel %vm815, %v795, %v819
      %v821 = vsel %vm815, %v797, %v809
      %v822 = vsel %vm491, %v810, %v811
      %v823 = vsel %vm815, %v799, %v822
      %v824 = vsel %vm491, %v811, %v812
      %v825 = vsel %vm815, %v801, %v824
      %v826 = vsel %vm491, %v812, %v813
      %v827 = vsel %vm815, %v803, %v826
      %v828 = vsel %vm815, %v805, %v813
      %837 = vst [vmem:[#allocation2 + $0x188] sm:$0xff] %v816
      %838 = vst [vmem:[#allocation2 + $0x190] sm:$0xff] %v818
      %839 = vst [vmem:[#allocation2 + $0x198] sm:$0xff] %v820
      %840 = vst.msk [vmem:[#allocation2 + $0x1a0] sm:$0xf] %vm453, %v821
      %841 = vst [vmem:[#allocation2 + $0x1a4] sm:$0xff] %v823
      %842 = vst [vmem:[#allocation2 + $0x1ac] sm:$0xff] %v825
      %843 = vst [vmem:[#allocation2 + $0x1b4] sm:$0xff] %v827
      %844 = vst.msk [vmem:[#allocation2 + $0x1bc] sm:$0xf] %vm453, %v828
      %845 = vrot.lane.b32.xlu0 %v442, 93
      %v846 = vpop.permute.xlu0 %845
      %847 = vrot.lane.b32.xlu0 %v443, 93
      %v848 = vpop.permute.xlu0 %847
      %849 = vrot.lane.b32.xlu0 %v444, 93
      %v850 = vpop.permute.xlu0 %849
      %851 = vrot.lane.b32.xlu0 %v445, 93
      %v852 = vpop.permute.xlu0 %851
      %853 = vrot.lane.b32.xlu0 %v446, 93
      %v854 = vpop.permute.xlu0 %853
      %855 = vrot.lane.b32.xlu0 %v447, 93
      %v856 = vpop.permute.xlu0 %855
      %857 = vrot.lane.b32.xlu0 %v448, 93
      %v858 = vpop.permute.xlu0 %857
      %859 = vrot.lane.b32.xlu0 %v449, 93
      %v860 = vpop.permute.xlu0 %859
      %v861 = vrot.slane %v846, 4
      %v862 = vrot.slane %v848, 4
      %v863 = vrot.slane %v850, 4
      %v864 = vrot.slane %v852, 4
      %v865 = vrot.slane %v854, 4
      %v866 = vrot.slane %v856, 4
      %v867 = vrot.slane %v858, 4
      %v868 = vrot.slane %v860, 4
      %v869 = vsel %vm491, %v861, %v862
      %vm870 = vcmask 760832
      %v871 = vsel %vm870, %v846, %v869
      %v872 = vsel %vm491, %v862, %v863
      %v873 = vsel %vm870, %v848, %v872
      %v874 = vsel %vm491, %v863, %v864
      %v875 = vsel %vm870, %v850, %v874
      %v876 = vsel %vm870, %v852, %v864
      %v877 = vsel %vm491, %v865, %v866
      %v878 = vsel %vm870, %v854, %v877
      %v879 = vsel %vm491, %v866, %v867
      %v880 = vsel %vm870, %v856, %v879
      %v881 = vsel %vm491, %v867, %v868
      %v882 = vsel %vm870, %v858, %v881
      %v883 = vsel %vm870, %v860, %v868
      %892 = vst [vmem:[#allocation2 + $0x1c0] sm:$0xff] %v871
      %893 = vst [vmem:[#allocation2 + $0x1c8] sm:$0xff] %v873
      %894 = vst [vmem:[#allocation2 + $0x1d0] sm:$0xff] %v875
      %895 = vst.msk [vmem:[#allocation2 + $0x1d8] sm:$0xf] %vm453, %v876
      %896 = vst [vmem:[#allocation2 + $0x1dc] sm:$0xff] %v878
      %897 = vst [vmem:[#allocation2 + $0x1e4] sm:$0xff] %v880
      %898 = vst [vmem:[#allocation2 + $0x1ec] sm:$0xff] %v882
      %899 = vst.msk [vmem:[#allocation2 + $0x1f4] sm:$0xf] %vm453, %v883
      %900 = vrot.lane.b32.xlu0 %v442, 92
      %v901 = vpop.permute.xlu0 %900
      %902 = vrot.lane.b32.xlu0 %v443, 92
      %v903 = vpop.permute.xlu0 %902
      %904 = vrot.lane.b32.xlu0 %v444, 92
      %v905 = vpop.permute.xlu0 %904
      %906 = vrot.lane.b32.xlu0 %v445, 92
      %v907 = vpop.permute.xlu0 %906
      %908 = vrot.lane.b32.xlu0 %v446, 92
      %v909 = vpop.permute.xlu0 %908
      %910 = vrot.lane.b32.xlu0 %v447, 92
      %v911 = vpop.permute.xlu0 %910
      %912 = vrot.lane.b32.xlu0 %v448, 92
      %v913 = vpop.permute.xlu0 %912
      %914 = vrot.lane.b32.xlu0 %v449, 92
      %v915 = vpop.permute.xlu0 %914
      %v916 = vrot.slane %v901, 4
      %v917 = vrot.slane %v903, 4
      %v918 = vrot.slane %v905, 4
      %v919 = vrot.slane %v907, 4
      %v920 = vrot.slane %v909, 4
      %v921 = vrot.slane %v911, 4
      %v922 = vrot.slane %v913, 4
      %v923 = vrot.slane %v915, 4
      %v924 = vsel %vm491, %v916, %v917
      %vm925 = vcmask 752640
      %v926 = vsel %vm925, %v901, %v924
      %v927 = vsel %vm491, %v917, %v918
      %v928 = vsel %vm925, %v903, %v927
      %v929 = vsel %vm491, %v918, %v919
      %v930 = vsel %vm925, %v905, %v929
      %v931 = vsel %vm925, %v907, %v919
      %v932 = vsel %vm491, %v920, %v921
      %v933 = vsel %vm925, %v909, %v932
      %v934 = vsel %vm491, %v921, %v922
      %v935 = vsel %vm925, %v911, %v934
      %v936 = vsel %vm491, %v922, %v923
      %v937 = vsel %vm925, %v913, %v936
      %v938 = vsel %vm925, %v915, %v923
      %947 = vst [vmem:[#allocation2 + $0x1f8] sm:$0xff] %v926
      %948 = vst [vmem:[#allocation2 + $0x200] sm:$0xff] %v928
      %949 = vst [vmem:[#allocation2 + $0x208] sm:$0xff] %v930
      %950 = vst.msk [vmem:[#allocation2 + $0x210] sm:$0xf] %vm453, %v931
      %951 = vst [vmem:[#allocation2 + $0x214] sm:$0xff] %v933
      %952 = vst [vmem:[#allocation2 + $0x21c] sm:$0xff] %v935
      %953 = vst [vmem:[#allocation2 + $0x224] sm:$0xff] %v937
      %954 = vst.msk [vmem:[#allocation2 + $0x22c] sm:$0xf] %vm453, %v938
      %955 = vrot.lane.b32.xlu0 %v442, 64
      %v956 = vpop.permute.xlu0 %955
      %957 = vrot.lane.b32.xlu0 %v443, 64
      %v958 = vpop.permute.xlu0 %957
      %959 = vrot.lane.b32.xlu0 %v444, 64
      %v960 = vpop.permute.xlu0 %959
      %961 = vrot.lane.b32.xlu0 %v445, 64
      %v962 = vpop.permute.xlu0 %961
      %963 = vrot.lane.b32.xlu0 %v446, 64
      %v964 = vpop.permute.xlu0 %963
      %965 = vrot.lane.b32.xlu0 %v447, 64
      %v966 = vpop.permute.xlu0 %965
      %967 = vrot.lane.b32.xlu0 %v448, 64
      %v968 = vpop.permute.xlu0 %967
      %969 = vrot.lane.b32.xlu0 %v449, 64
      %v970 = vpop.permute.xlu0 %969
      %v971 = vrot.slane %v956, 4
      %v972 = vrot.slane %v958, 4
      %v973 = vrot.slane %v960, 4
      %v974 = vrot.slane %v962, 4
      %v975 = vrot.slane %v964, 4
      %v976 = vrot.slane %v966, 4
      %v977 = vrot.slane %v968, 4
      %v978 = vrot.slane %v970, 4
      %v979 = vsel %vm491, %v971, %v972
      %vm980 = vcmask 523264
      %v981 = vsel %vm980, %v956, %v979
      %v982 = vsel %vm491, %v972, %v973
      %v983 = vsel %vm980, %v958, %v982
      %v984 = vsel %vm491, %v973, %v974
      %v985 = vsel %vm980, %v960, %v984
      %v986 = vsel %vm980, %v962, %v974
      %v987 = vsel %vm491, %v975, %v976
      %v988 = vsel %vm980, %v964, %v987
      %v989 = vsel %vm491, %v976, %v977
      %v990 = vsel %vm980, %v966, %v989
      %v991 = vsel %vm491, %v977, %v978
      %v992 = vsel %vm980, %v968, %v991
      %v993 = vsel %vm980, %v970, %v978
      %1002 = vst [vmem:[#allocation2 + $0x230] sm:$0xff] %v981
      %1003 = vst [vmem:[#allocation2 + $0x238] sm:$0xff] %v983
      %1004 = vst [vmem:[#allocation2 + $0x240] sm:$0xff] %v985
      %1005 = vst.msk [vmem:[#allocation2 + $0x248] sm:$0xf] %vm453, %v986
      %1006 = vst [vmem:[#allocation2 + $0x24c] sm:$0xff] %v988
      %1007 = vst [vmem:[#allocation2 + $0x254] sm:$0xff] %v990
      %1008 = vst [vmem:[#allocation2 + $0x25c] sm:$0xff] %v992
      %1009 = vst.msk [vmem:[#allocation2 + $0x264] sm:$0xf] %vm453, %v993
      %1010 = vrot.lane.b32.xlu0 %v442, 63
      %v1011 = vpop.permute.xlu0 %1010
      %1012 = vrot.lane.b32.xlu0 %v443, 63
      %v1013 = vpop.permute.xlu0 %1012
      %1014 = vrot.lane.b32.xlu0 %v444, 63
      %v1015 = vpop.permute.xlu0 %1014
      %1016 = vrot.lane.b32.xlu0 %v445, 63
      %v1017 = vpop.permute.xlu0 %1016
      %1018 = vrot.lane.b32.xlu0 %v446, 63
      %v1019 = vpop.permute.xlu0 %1018
      %1020 = vrot.lane.b32.xlu0 %v447, 63
      %v1021 = vpop.permute.xlu0 %1020
      %1022 = vrot.lane.b32.xlu0 %v448, 63
      %v1023 = vpop.permute.xlu0 %1022
      %1024 = vrot.lane.b32.xlu0 %v449, 63
      %v1025 = vpop.permute.xlu0 %1024
      %v1026 = vrot.slane %v1011, 4
      %v1027 = vrot.slane %v1013, 4
      %v1028 = vrot.slane %v1015, 4
      %v1029 = vrot.slane %v1017, 4
      %v1030 = vrot.slane %v1019, 4
      %v1031 = vrot.slane %v1021, 4
      %v1032 = vrot.slane %v1023, 4
      %v1033 = vrot.slane %v1025, 4
      %v1034 = vsel %vm491, %v1026, %v1027
      %vm1035 = vcmask 515072
      %v1036 = vsel %vm1035, %v1011, %v1034
      %v1037 = vsel %vm491, %v1027, %v1028
      %v1038 = vsel %vm1035, %v1013, %v1037
      %v1039 = vsel %vm491, %v1028, %v1029
      %v1040 = vsel %vm1035, %v1015, %v1039
      %v1041 = vsel %vm1035, %v1017, %v1029
      %v1042 = vsel %vm491, %v1030, %v1031
      %v1043 = vsel %vm1035, %v1019, %v1042
      %v1044 = vsel %vm491, %v1031, %v1032
      %v1045 = vsel %vm1035, %v1021, %v1044
      %v1046 = vsel %vm491, %v1032, %v1033
      %v1047 = vsel %vm1035, %v1023, %v1046
      %v1048 = vsel %vm1035, %v1025, %v1033
      %1057 = vst [vmem:[#allocation2 + $0x268] sm:$0xff] %v1036
      %1058 = vst [vmem:[#allocation2 + $0x270] sm:$0xff] %v1038
      %1059 = vst [vmem:[#allocation2 + $0x278] sm:$0xff] %v1040
      %1060 = vst.msk [vmem:[#allocation2 + $0x280] sm:$0xf] %vm453, %v1041
      %1061 = vst [vmem:[#allocation2 + $0x284] sm:$0xff] %v1043
      %1062 = vst [vmem:[#allocation2 + $0x28c] sm:$0xff] %v1045
      %1063 = vst [vmem:[#allocation2 + $0x294] sm:$0xff] %v1047
      %1064 = vst.msk [vmem:[#allocation2 + $0x29c] sm:$0xf] %vm453, %v1048
      %1065 = vrot.lane.b32.xlu0 %v442, 62
      %v1066 = vpop.permute.xlu0 %1065
      %1067 = vrot.lane.b32.xlu0 %v443, 62
      %v1068 = vpop.permute.xlu0 %1067
      %1069 = vrot.lane.b32.xlu0 %v444, 62
      %v1070 = vpop.permute.xlu0 %1069
      %1071 = vrot.lane.b32.xlu0 %v445, 62
      %v1072 = vpop.permute.xlu0 %1071
      %1073 = vrot.lane.b32.xlu0 %v446, 62
      %v1074 = vpop.permute.xlu0 %1073
      %1075 = vrot.lane.b32.xlu0 %v447, 62
      %v1076 = vpop.permute.xlu0 %1075
      %1077 = vrot.lane.b32.xlu0 %v448, 62
      %v1078 = vpop.permute.xlu0 %1077
      %1079 = vrot.lane.b32.xlu0 %v449, 62
      %v1080 = vpop.permute.xlu0 %1079
      %v1081 = vrot.slane %v1066, 4
      %v1082 = vrot.slane %v1068, 4
      %v1083 = vrot.slane %v1070, 4
      %v1084 = vrot.slane %v1072, 4
      %v1085 = vrot.slane %v1074, 4
      %v1086 = vrot.slane %v1076, 4
      %v1087 = vrot.slane %v1078, 4
      %v1088 = vrot.slane %v1080, 4
      %v1089 = vsel %vm491, %v1081, %v1082
      %vm1090 = vcmask 506880
      %v1091 = vsel %vm1090, %v1066, %v1089
      %v1092 = vsel %vm491, %v1082, %v1083
      %v1093 = vsel %vm1090, %v1068, %v1092
      %v1094 = vsel %vm491, %v1083, %v1084
      %v1095 = vsel %vm1090, %v1070, %v1094
      %v1096 = vsel %vm1090, %v1072, %v1084
      %v1097 = vsel %vm491, %v1085, %v1086
      %v1098 = vsel %vm1090, %v1074, %v1097
      %v1099 = vsel %vm491, %v1086, %v1087
      %v1100 = vsel %vm1090, %v1076, %v1099
      %v1101 = vsel %vm491, %v1087, %v1088
      %v1102 = vsel %vm1090, %v1078, %v1101
      %v1103 = vsel %vm1090, %v1080, %v1088
      %1112 = vst [vmem:[#allocation2 + $0x2a0] sm:$0xff] %v1091
      %1113 = vst [vmem:[#allocation2 + $0x2a8] sm:$0xff] %v1093
      %1114 = vst [vmem:[#allocation2 + $0x2b0] sm:$0xff] %v1095
      %1115 = vst.msk [vmem:[#allocation2 + $0x2b8] sm:$0xf] %vm453, %v1096
      %1116 = vst [vmem:[#allocation2 + $0x2bc] sm:$0xff] %v1098
      %1117 = vst [vmem:[#allocation2 + $0x2c4] sm:$0xff] %v1100
      %1118 = vst [vmem:[#allocation2 + $0x2cc] sm:$0xff] %v1102
      %1119 = vst.msk [vmem:[#allocation2 + $0x2d4] sm:$0xf] %vm453, %v1103
      %1120 = vrot.lane.b32.xlu0 %v442, 61
      %v1121 = vpop.permute.xlu0 %1120
      %1122 = vrot.lane.b32.xlu0 %v443, 61
      %v1123 = vpop.permute.xlu0 %1122
      %1124 = vrot.lane.b32.xlu0 %v444, 61
      %v1125 = vpop.permute.xlu0 %1124
      %1126 = vrot.lane.b32.xlu0 %v445, 61
      %v1127 = vpop.permute.xlu0 %1126
      %1128 = vrot.lane.b32.xlu0 %v446, 61
      %v1129 = vpop.permute.xlu0 %1128
      %1130 = vrot.lane.b32.xlu0 %v447, 61
      %v1131 = vpop.permute.xlu0 %1130
      %1132 = vrot.lane.b32.xlu0 %v448, 61
      %v1133 = vpop.permute.xlu0 %1132
      %1134 = vrot.lane.b32.xlu0 %v449, 61
      %v1135 = vpop.permute.xlu0 %1134
      %v1136 = vrot.slane %v1121, 4
      %v1137 = vrot.slane %v1123, 4
      %v1138 = vrot.slane %v1125, 4
      %v1139 = vrot.slane %v1127, 4
      %v1140 = vrot.slane %v1129, 4
      %v1141 = vrot.slane %v1131, 4
      %v1142 = vrot.slane %v1133, 4
      %v1143 = vrot.slane %v1135, 4
      %v1144 = vsel %vm491, %v1136, %v1137
      %vm1145 = vcmask 498688
      %v1146 = vsel %vm1145, %v1121, %v1144
      %v1147 = vsel %vm491, %v1137, %v1138
      %v1148 = vsel %vm1145, %v1123, %v1147
      %v1149 = vsel %vm491, %v1138, %v1139
      %v1150 = vsel %vm1145, %v1125, %v1149
      %v1151 = vsel %vm1145, %v1127, %v1139
      %v1152 = vsel %vm491, %v1140, %v1141
      %v1153 = vsel %vm1145, %v1129, %v1152
      %v1154 = vsel %vm491, %v1141, %v1142
      %v1155 = vsel %vm1145, %v1131, %v1154
      %v1156 = vsel %vm491, %v1142, %v1143
      %v1157 = vsel %vm1145, %v1133, %v1156
      %v1158 = vsel %vm1145, %v1135, %v1143
      %1167 = vst [vmem:[#allocation2 + $0x2d8] sm:$0xff] %v1146
      %1168 = vst [vmem:[#allocation2 + $0x2e0] sm:$0xff] %v1148
      %1169 = vst [vmem:[#allocation2 + $0x2e8] sm:$0xff] %v1150
      %1170 = vst.msk [vmem:[#allocation2 + $0x2f0] sm:$0xf] %vm453, %v1151
      %1171 = vst [vmem:[#allocation2 + $0x2f4] sm:$0xff] %v1153
      %1172 = vst [vmem:[#allocation2 + $0x2fc] sm:$0xff] %v1155
      %1173 = vst [vmem:[#allocation2 + $0x304] sm:$0xff] %v1157
      %1174 = vst.msk [vmem:[#allocation2 + $0x30c] sm:$0xf] %vm453, %v1158
      %1175 = vrot.lane.b32.xlu0 %v442, 60
      %v1176 = vpop.permute.xlu0 %1175
      %1177 = vrot.lane.b32.xlu0 %v443, 60
      %v1178 = vpop.permute.xlu0 %1177
      %1179 = vrot.lane.b32.xlu0 %v444, 60
      %v1180 = vpop.permute.xlu0 %1179
      %1181 = vrot.lane.b32.xlu0 %v445, 60
      %v1182 = vpop.permute.xlu0 %1181
      %1183 = vrot.lane.b32.xlu0 %v446, 60
      %v1184 = vpop.permute.xlu0 %1183
      %1185 = vrot.lane.b32.xlu0 %v447, 60
      %v1186 = vpop.permute.xlu0 %1185
      %1187 = vrot.lane.b32.xlu0 %v448, 60
      %v1188 = vpop.permute.xlu0 %1187
      %1189 = vrot.lane.b32.xlu0 %v449, 60
      %v1190 = vpop.permute.xlu0 %1189
      %v1191 = vrot.slane %v1176, 4
      %v1192 = vrot.slane %v1178, 4
      %v1193 = vrot.slane %v1180, 4
      %v1194 = vrot.slane %v1182, 4
      %v1195 = vrot.slane %v1184, 4
      %v1196 = vrot.slane %v1186, 4
      %v1197 = vrot.slane %v1188, 4
      %v1198 = vrot.slane %v1190, 4
      %v1199 = vsel %vm491, %v1191, %v1192
      %vm1200 = vcmask 490496
      %v1201 = vsel %vm1200, %v1176, %v1199
      %v1202 = vsel %vm491, %v1192, %v1193
      %v1203 = vsel %vm1200, %v1178, %v1202
      %v1204 = vsel %vm491, %v1193, %v1194
      %v1205 = vsel %vm1200, %v1180, %v1204
      %v1206 = vsel %vm1200, %v1182, %v1194
      %v1207 = vsel %vm491, %v1195, %v1196
      %v1208 = vsel %vm1200, %v1184, %v1207
      %v1209 = vsel %vm491, %v1196, %v1197
      %v1210 = vsel %vm1200, %v1186, %v1209
      %v1211 = vsel %vm491, %v1197, %v1198
      %v1212 = vsel %vm1200, %v1188, %v1211
      %v1213 = vsel %vm1200, %v1190, %v1198
      %1222 = vst [vmem:[#allocation2 + $0x310] sm:$0xff] %v1201
      %1223 = vst [vmem:[#allocation2 + $0x318] sm:$0xff] %v1203
      %1224 = vst [vmem:[#allocation2 + $0x320] sm:$0xff] %v1205
      %1225 = vst.msk [vmem:[#allocation2 + $0x328] sm:$0xf] %vm453, %v1206
      %1226 = vst [vmem:[#allocation2 + $0x32c] sm:$0xff] %v1208
      %1227 = vst [vmem:[#allocation2 + $0x334] sm:$0xff] %v1210
      %1228 = vst [vmem:[#allocation2 + $0x33c] sm:$0xff] %v1212
      %1229 = vst.msk [vmem:[#allocation2 + $0x344] sm:$0xf] %vm453, %v1213
      %1230 = vrot.lane.b32.xlu0 %v442, 32
      %v1231 = vpop.permute.xlu0 %1230
      %1232 = vrot.lane.b32.xlu0 %v443, 32
      %v1233 = vpop.permute.xlu0 %1232
      %1234 = vrot.lane.b32.xlu0 %v444, 32
      %v1235 = vpop.permute.xlu0 %1234
      %1236 = vrot.lane.b32.xlu0 %v445, 32
      %v1237 = vpop.permute.xlu0 %1236
      %1238 = vrot.lane.b32.xlu0 %v446, 32
      %v1239 = vpop.permute.xlu0 %1238
      %1240 = vrot.lane.b32.xlu0 %v447, 32
      %v1241 = vpop.permute.xlu0 %1240
      %1242 = vrot.lane.b32.xlu0 %v448, 32
      %v1243 = vpop.permute.xlu0 %1242
      %1244 = vrot.lane.b32.xlu0 %v449, 32
      %v1245 = vpop.permute.xlu0 %1244
      %v1246 = vrot.slane %v1231, 4
      %v1247 = vrot.slane %v1233, 4
      %v1248 = vrot.slane %v1235, 4
      %v1249 = vrot.slane %v1237, 4
      %v1250 = vrot.slane %v1239, 4
      %v1251 = vrot.slane %v1241, 4
      %v1252 = vrot.slane %v1243, 4
      %v1253 = vrot.slane %v1245, 4
      %v1254 = vsel %vm491, %v1246, %v1247
      %vm1255 = vcmask 261120
      %v1256 = vsel %vm1255, %v1231, %v1254
      %v1257 = vsel %vm491, %v1247, %v1248
      %v1258 = vsel %vm1255, %v1233, %v1257
      %v1259 = vsel %vm491, %v1248, %v1249
      %v1260 = vsel %vm1255, %v1235, %v1259
      %v1261 = vsel %vm1255, %v1237, %v1249
      %v1262 = vsel %vm491, %v1250, %v1251
      %v1263 = vsel %vm1255, %v1239, %v1262
      %v1264 = vsel %vm491, %v1251, %v1252
      %v1265 = vsel %vm1255, %v1241, %v1264
      %v1266 = vsel %vm491, %v1252, %v1253
      %v1267 = vsel %vm1255, %v1243, %v1266
      %v1268 = vsel %vm1255, %v1245, %v1253
      %1277 = vst [vmem:[#allocation2 + $0x348] sm:$0xff] %v1256
      %1278 = vst [vmem:[#allocation2 + $0x350] sm:$0xff] %v1258
      %1279 = vst [vmem:[#allocation2 + $0x358] sm:$0xff] %v1260
      %1280 = vst.msk [vmem:[#allocation2 + $0x360] sm:$0xf] %vm453, %v1261
      %1281 = vst [vmem:[#allocation2 + $0x364] sm:$0xff] %v1263
      %1282 = vst [vmem:[#allocation2 + $0x36c] sm:$0xff] %v1265
      %1283 = vst [vmem:[#allocation2 + $0x374] sm:$0xff] %v1267
      %1284 = vst.msk [vmem:[#allocation2 + $0x37c] sm:$0xf] %vm453, %v1268
      %1285 = vrot.lane.b32.xlu0 %v442, 31
      %v1286 = vpop.permute.xlu0 %1285
      %1287 = vrot.lane.b32.xlu0 %v443, 31
      %v1288 = vpop.permute.xlu0 %1287
      %1289 = vrot.lane.b32.xlu0 %v444, 31
      %v1290 = vpop.permute.xlu0 %1289
      %1291 = vrot.lane.b32.xlu0 %v445, 31
      %v1292 = vpop.permute.xlu0 %1291
      %1293 = vrot.lane.b32.xlu0 %v446, 31
      %v1294 = vpop.permute.xlu0 %1293
      %1295 = vrot.lane.b32.xlu0 %v447, 31
      %v1296 = vpop.permute.xlu0 %1295
      %1297 = vrot.lane.b32.xlu0 %v448, 31
      %v1298 = vpop.permute.xlu0 %1297
      %1299 = vrot.lane.b32.xlu0 %v449, 31
      %v1300 = vpop.permute.xlu0 %1299
      %v1301 = vrot.slane %v1286, 4
      %v1302 = vrot.slane %v1288, 4
      %v1303 = vrot.slane %v1290, 4
      %v1304 = vrot.slane %v1292, 4
      %v1305 = vrot.slane %v1294, 4
      %v1306 = vrot.slane %v1296, 4
      %v1307 = vrot.slane %v1298, 4
      %v1308 = vrot.slane %v1300, 4
      %v1309 = vsel %vm491, %v1301, %v1302
      %vm1310 = vcmask 252928
      %v1311 = vsel %vm1310, %v1286, %v1309
      %v1312 = vsel %vm491, %v1302, %v1303
      %v1313 = vsel %vm1310, %v1288, %v1312
      %v1314 = vsel %vm491, %v1303, %v1304
      %v1315 = vsel %vm1310, %v1290, %v1314
      %v1316 = vsel %vm1310, %v1292, %v1304
      %v1317 = vsel %vm491, %v1305, %v1306
      %v1318 = vsel %vm1310, %v1294, %v1317
      %v1319 = vsel %vm491, %v1306, %v1307
      %v1320 = vsel %vm1310, %v1296, %v1319
      %v1321 = vsel %vm491, %v1307, %v1308
      %v1322 = vsel %vm1310, %v1298, %v1321
      %v1323 = vsel %vm1310, %v1300, %v1308
      %1332 = vst [vmem:[#allocation2 + $0x380] sm:$0xff] %v1311
      %1333 = vst [vmem:[#allocation2 + $0x388] sm:$0xff] %v1313
      %1334 = vst [vmem:[#allocation2 + $0x390] sm:$0xff] %v1315
      %1335 = vst.msk [vmem:[#allocation2 + $0x398] sm:$0xf] %vm453, %v1316
      %1336 = vst [vmem:[#allocation2 + $0x39c] sm:$0xff] %v1318
      %1337 = vst [vmem:[#allocation2 + $0x3a4] sm:$0xff] %v1320
      %1338 = vst [vmem:[#allocation2 + $0x3ac] sm:$0xff] %v1322
      %1339 = vst.msk [vmem:[#allocation2 + $0x3b4] sm:$0xf] %vm453, %v1323
      %1340 = vrot.lane.b32.xlu0 %v442, 30
      %v1341 = vpop.permute.xlu0 %1340
      %1342 = vrot.lane.b32.xlu0 %v443, 30
      %v1343 = vpop.permute.xlu0 %1342
      %1344 = vrot.lane.b32.xlu0 %v444, 30
      %v1345 = vpop.permute.xlu0 %1344
      %1346 = vrot.lane.b32.xlu0 %v445, 30
      %v1347 = vpop.permute.xlu0 %1346
      %1348 = vrot.lane.b32.xlu0 %v446, 30
      %v1349 = vpop.permute.xlu0 %1348
      %1350 = vrot.lane.b32.xlu0 %v447, 30
      %v1351 = vpop.permute.xlu0 %1350
      %1352 = vrot.lane.b32.xlu0 %v448, 30
      %v1353 = vpop.permute.xlu0 %1352
      %1354 = vrot.lane.b32.xlu0 %v449, 30
      %v1355 = vpop.permute.xlu0 %1354
      %v1356 = vrot.slane %v1341, 4
      %v1357 = vrot.slane %v1343, 4
      %v1358 = vrot.slane %v1345, 4
      %v1359 = vrot.slane %v1347, 4
      %v1360 = vrot.slane %v1349, 4
      %v1361 = vrot.slane %v1351, 4
      %v1362 = vrot.slane %v1353, 4
      %v1363 = vrot.slane %v1355, 4
      %v1364 = vsel %vm491, %v1356, %v1357
      %vm1365 = vcmask 244736
      %v1366 = vsel %vm1365, %v1341, %v1364
      %v1367 = vsel %vm491, %v1357, %v1358
      %v1368 = vsel %vm1365, %v1343, %v1367
      %v1369 = vsel %vm491, %v1358, %v1359
      %v1370 = vsel %vm1365, %v1345, %v1369
      %v1371 = vsel %vm1365, %v1347, %v1359
      %v1372 = vsel %vm491, %v1360, %v1361
      %v1373 = vsel %vm1365, %v1349, %v1372
      %v1374 = vsel %vm491, %v1361, %v1362
      %v1375 = vsel %vm1365, %v1351, %v1374
      %v1376 = vsel %vm491, %v1362, %v1363
      %v1377 = vsel %vm1365, %v1353, %v1376
      %v1378 = vsel %vm1365, %v1355, %v1363
      %1387 = vst [vmem:[#allocation2 + $0x3b8] sm:$0xff] %v1366
      %1388 = vst [vmem:[#allocation2 + $0x3c0] sm:$0xff] %v1368
      %1389 = vst [vmem:[#allocation2 + $0x3c8] sm:$0xff] %v1370
      %1390 = vst.msk [vmem:[#allocation2 + $0x3d0] sm:$0xf] %vm453, %v1371
      %1391 = vst [vmem:[#allocation2 + $0x3d4] sm:$0xff] %v1373
      %1392 = vst [vmem:[#allocation2 + $0x3dc] sm:$0xff] %v1375
      %1393 = vst [vmem:[#allocation2 + $0x3e4] sm:$0xff] %v1377
      %1394 = vst.msk [vmem:[#allocation2 + $0x3ec] sm:$0xf] %vm453, %v1378
      %1395 = vrot.lane.b32.xlu0 %v442, 29
      %v1396 = vpop.permute.xlu0 %1395
      %1397 = vrot.lane.b32.xlu0 %v443, 29
      %v1398 = vpop.permute.xlu0 %1397
      %1399 = vrot.lane.b32.xlu0 %v444, 29
      %v1400 = vpop.permute.xlu0 %1399
      %1401 = vrot.lane.b32.xlu0 %v445, 29
      %v1402 = vpop.permute.xlu0 %1401
      %1403 = vrot.lane.b32.xlu0 %v446, 29
      %v1404 = vpop.permute.xlu0 %1403
      %1405 = vrot.lane.b32.xlu0 %v447, 29
      %v1406 = vpop.permute.xlu0 %1405
      %1407 = vrot.lane.b32.xlu0 %v448, 29
      %v1408 = vpop.permute.xlu0 %1407
      %1409 = vrot.lane.b32.xlu0 %v449, 29
      %v1410 = vpop.permute.xlu0 %1409
      %v1411 = vrot.slane %v1396, 4
      %v1412 = vrot.slane %v1398, 4
      %v1413 = vrot.slane %v1400, 4
      %v1414 = vrot.slane %v1402, 4
      %v1415 = vrot.slane %v1404, 4
      %v1416 = vrot.slane %v1406, 4
      %v1417 = vrot.slane %v1408, 4
      %v1418 = vrot.slane %v1410, 4
      %v1419 = vsel %vm491, %v1411, %v1412
      %vm1420 = vcmask 236544
      %v1421 = vsel %vm1420, %v1396, %v1419
      %v1422 = vsel %vm491, %v1412, %v1413
      %v1423 = vsel %vm1420, %v1398, %v1422
      %v1424 = vsel %vm491, %v1413, %v1414
      %v1425 = vsel %vm1420, %v1400, %v1424
      %v1426 = vsel %vm1420, %v1402, %v1414
      %v1427 = vsel %vm491, %v1415, %v1416
      %v1428 = vsel %vm1420, %v1404, %v1427
      %v1429 = vsel %vm491, %v1416, %v1417
      %v1430 = vsel %vm1420, %v1406, %v1429
      %v1431 = vsel %vm491, %v1417, %v1418
      %v1432 = vsel %vm1420, %v1408, %v1431
      %v1433 = vsel %vm1420, %v1410, %v1418
      %1442 = vst [vmem:[#allocation2 + $0x3f0] sm:$0xff] %v1421
      %1443 = vst [vmem:[#allocation2 + $0x3f8] sm:$0xff] %v1423
      %1444 = vst [vmem:[#allocation2 + $0x400] sm:$0xff] %v1425
      %1445 = vst.msk [vmem:[#allocation2 + $0x408] sm:$0xf] %vm453, %v1426
      %1446 = vst [vmem:[#allocation2 + $0x40c] sm:$0xff] %v1428
      %1447 = vst [vmem:[#allocation2 + $0x414] sm:$0xff] %v1430
      %1448 = vst [vmem:[#allocation2 + $0x41c] sm:$0xff] %v1432
      %1449 = vst.msk [vmem:[#allocation2 + $0x424] sm:$0xf] %vm453, %v1433
      %1450 = vrot.lane.b32.xlu0 %v442, 28
      %v1451 = vpop.permute.xlu0 %1450
      %1452 = vrot.lane.b32.xlu0 %v443, 28
      %v1453 = vpop.permute.xlu0 %1452
      %1454 = vrot.lane.b32.xlu0 %v444, 28
      %v1455 = vpop.permute.xlu0 %1454
      %1456 = vrot.lane.b32.xlu0 %v445, 28
      %v1457 = vpop.permute.xlu0 %1456
      %1458 = vrot.lane.b32.xlu0 %v446, 28
      %v1459 = vpop.permute.xlu0 %1458
      %1460 = vrot.lane.b32.xlu0 %v447, 28
      %v1461 = vpop.permute.xlu0 %1460
      %1462 = vrot.lane.b32.xlu0 %v448, 28
      %v1463 = vpop.permute.xlu0 %1462
      %1464 = vrot.lane.b32.xlu0 %v449, 28
      %v1465 = vpop.permute.xlu0 %1464
      %v1466 = vrot.slane %v1451, 4
      %v1467 = vrot.slane %v1453, 4
      %v1468 = vrot.slane %v1455, 4
      %v1469 = vrot.slane %v1457, 4
      %v1470 = vrot.slane %v1459, 4
      %v1471 = vrot.slane %v1461, 4
      %v1472 = vrot.slane %v1463, 4
      %v1473 = vrot.slane %v1465, 4
      %v1474 = vsel %vm491, %v1466, %v1467
      %vm1475 = vcmask 228352
      %v1476 = vsel %vm1475, %v1451, %v1474
      %v1477 = vsel %vm491, %v1467, %v1468
      %v1478 = vsel %vm1475, %v1453, %v1477
      %v1479 = vsel %vm491, %v1468, %v1469
      %v1480 = vsel %vm1475, %v1455, %v1479
      %v1481 = vsel %vm1475, %v1457, %v1469
      %v1482 = vsel %vm491, %v1470, %v1471
      %v1483 = vsel %vm1475, %v1459, %v1482
      %v1484 = vsel %vm491, %v1471, %v1472
      %v1485 = vsel %vm1475, %v1461, %v1484
      %v1486 = vsel %vm491, %v1472, %v1473
      %v1487 = vsel %vm1475, %v1463, %v1486
      %v1488 = vsel %vm1475, %v1465, %v1473
      %1497 = vst [vmem:[#allocation2 + $0x428] sm:$0xff] %v1476
      %1498 = vst [vmem:[#allocation2 + $0x430] sm:$0xff] %v1478
      %1499 = vst [vmem:[#allocation2 + $0x438] sm:$0xff] %v1480
      %1500 = vst.msk [vmem:[#allocation2 + $0x440] sm:$0xf] %vm453, %v1481
      %1501 = vst [vmem:[#allocation2 + $0x444] sm:$0xff] %v1483
      %1502 = vst [vmem:[#allocation2 + $0x44c] sm:$0xff] %v1485
      %1503 = vst [vmem:[#allocation2 + $0x454] sm:$0xff] %v1487
      %1504 = vst.msk [vmem:[#allocation2 + $0x45c] sm:$0xf] %vm453, %v1488
      %v1505 = vrot.slane %v442, 4
      %v1506 = vrot.slane %v443, 4
      %v1507 = vrot.slane %v444, 4
      %v1508 = vrot.slane %v445, 4
      %v1509 = vrot.slane %v446, 4
      %v1510 = vrot.slane %v447, 4
      %v1511 = vrot.slane %v448, 4
      %v1512 = vrot.slane %v449, 4
      %v1513 = vsel %vm491, %v1505, %v1506
      %v1514 = vsel %vm491, %v1506, %v1507
      %v1515 = vsel %vm491, %v1507, %v1508
      %v1516 = vsel %vm491, %v1509, %v1510
      %v1517 = vsel %vm491, %v1510, %v1511
      %v1518 = vsel %vm491, %v1511, %v1512
      %1527 = vst [vmem:[#allocation2 + $0x460] sm:$0xff] %v1513
      %1528 = vst [vmem:[#allocation2 + $0x468] sm:$0xff] %v1514
      %1529 = vst [vmem:[#allocation2 + $0x470] sm:$0xff] %v1515
      %1530 = vst.msk [vmem:[#allocation2 + $0x478] sm:$0xf] %vm453, %v1508
      %1531 = vst [vmem:[#allocation2 + $0x47c] sm:$0xff] %v1516
      %1532 = vst [vmem:[#allocation2 + $0x484] sm:$0xff] %v1517
      %1533 = vst [vmem:[#allocation2 + $0x48c] sm:$0xff] %v1518
      %1534 = vst.msk [vmem:[#allocation2 + $0x494] sm:$0xf] %vm453, %v1512
      %v1535 = vsel %vm493, %v492, %v470
      %v1536 = vsel %vm493, %v495, %v472
      %v1537 = vsel %vm493, %v497, %v474
      %v1538 = vsel %vm493, %v499, %v478
      %v1539 = vsel %vm493, %v501, %v480
      %v1540 = vsel %vm493, %v503, %v482
      %1549 = vst [vmem:[#allocation2 + $0x498] sm:$0xff] %v1535
      %1550 = vst [vmem:[#allocation2 + $0x4a0] sm:$0xff] %v1536
      %1551 = vst [vmem:[#allocation2 + $0x4a8] sm:$0xff] %v1537
      %1552 = vst.msk [vmem:[#allocation2 + $0x4b0] sm:$0xf] %vm453, %v486
      %1553 = vst [vmem:[#allocation2 + $0x4b4] sm:$0xff] %v1538
      %1554 = vst [vmem:[#allocation2 + $0x4bc] sm:$0xff] %v1539
      %1555 = vst [vmem:[#allocation2 + $0x4c4] sm:$0xff] %v1540
      %1556 = vst.msk [vmem:[#allocation2 + $0x4cc] sm:$0xf] %vm453, %v490
      %v1557 = vsel %vm546, %v545, %v524
      %v1558 = vsel %vm546, %v548, %v526
      %v1559 = vsel %vm546, %v550, %v528
      %v1560 = vsel %vm546, %v552, %v532
      %v1561 = vsel %vm546, %v554, %v534
      %v1562 = vsel %vm546, %v556, %v536
      %1571 = vst [vmem:[#allocation2 + $0x4d0] sm:$0xff] %v1557
      %1572 = vst [vmem:[#allocation2 + $0x4d8] sm:$0xff] %v1558
      %1573 = vst [vmem:[#allocation2 + $0x4e0] sm:$0xff] %v1559
      %1574 = vst.msk [vmem:[#allocation2 + $0x4e8] sm:$0xf] %vm453, %v540
      %1575 = vst [vmem:[#allocation2 + $0x4ec] sm:$0xff] %v1560
      %1576 = vst [vmem:[#allocation2 + $0x4f4] sm:$0xff] %v1561
      %1577 = vst [vmem:[#allocation2 + $0x4fc] sm:$0xff] %v1562
      %1578 = vst.msk [vmem:[#allocation2 + $0x504] sm:$0xf] %vm453, %v544
      %v1579 = vsel %vm599, %v598, %v577
      %v1580 = vsel %vm599, %v601, %v579
      %v1581 = vsel %vm599, %v603, %v581
      %v1582 = vsel %vm599, %v605, %v585
      %v1583 = vsel %vm599, %v607, %v587
      %v1584 = vsel %vm599, %v609, %v589
      %1593 = vst [vmem:[#allocation2 + $0x508] sm:$0xff] %v1579
      %1594 = vst [vmem:[#allocation2 + $0x510] sm:$0xff] %v1580
      %1595 = vst [vmem:[#allocation2 + $0x518] sm:$0xff] %v1581
      %1596 = vst.msk [vmem:[#allocation2 + $0x520] sm:$0xf] %vm453, %v593
      %1597 = vst [vmem:[#allocation2 + $0x524] sm:$0xff] %v1582
      %1598 = vst [vmem:[#allocation2 + $0x52c] sm:$0xff] %v1583
      %1599 = vst [vmem:[#allocation2 + $0x534] sm:$0xff] %v1584
      %1600 = vst.msk [vmem:[#allocation2 + $0x53c] sm:$0xf] %vm453, %v597
      %v1601 = vsel %vm652, %v651, %v630
      %v1602 = vsel %vm652, %v654, %v632
      %v1603 = vsel %vm652, %v656, %v634
      %v1604 = vsel %vm652, %v658, %v638
      %v1605 = vsel %vm652, %v660, %v640
      %v1606 = vsel %vm652, %v662, %v642
      %1615 = vst [vmem:[#allocation2 + $0x540] sm:$0xff] %v1601
      %1616 = vst [vmem:[#allocation2 + $0x548] sm:$0xff] %v1602
      %1617 = vst [vmem:[#allocation2 + $0x550] sm:$0xff] %v1603
      %1618 = vst.msk [vmem:[#allocation2 + $0x558] sm:$0xf] %vm453, %v646
      %1619 = vst [vmem:[#allocation2 + $0x55c] sm:$0xff] %v1604
      %1620 = vst [vmem:[#allocation2 + $0x564] sm:$0xff] %v1605
      %1621 = vst [vmem:[#allocation2 + $0x56c] sm:$0xff] %v1606
      %1622 = vst.msk [vmem:[#allocation2 + $0x574] sm:$0xf] %vm453, %v650
      %v1623 = vld [vmem:[%s1] sm:$0xff]
      %v1624 = vld [vmem:[%s1 + $0x8] sm:$0xff]
      %v1625 = vld [vmem:[%s1 + $0x10] sm:$0xff]
      %v1626 = vld [vmem:[%s1 + $0x18] sm:$0xff]
      %v1627 = vld [vmem:[#allocation2] sm:$0xff]
      %v1628 = vld [vmem:[#allocation2 + $0x8] sm:$0xff]
      %v1629 = vld [vmem:[#allocation2 + $0x10] sm:$0xff]
      %v1630 = vld [vmem:[#allocation2 + $0x18] sm:$0xf]
      %v1631 = vld [vmem:[#allocation2 + $0x1c] sm:$0xff]
      %v1632 = vld [vmem:[#allocation2 + $0x24] sm:$0xff]
      %v1633 = vld [vmem:[#allocation2 + $0x2c] sm:$0xff]
      %v1634 = vld [vmem:[#allocation2 + $0x34] sm:$0xf]
      %v1635 = vld [vmem:[#allocation2 + $0x38] sm:$0xff]
      %v1636 = vld [vmem:[#allocation2 + $0x40] sm:$0xff]
      %v1637 = vld [vmem:[#allocation2 + $0x48] sm:$0xff]
      %v1638 = vld [vmem:[#allocation2 + $0x50] sm:$0xf]
      %v1639 = vld [vmem:[#allocation2 + $0x54] sm:$0xff]
      %v1640 = vld [vmem:[#allocation2 + $0x5c] sm:$0xff]
      %v1641 = vld [vmem:[#allocation2 + $0x64] sm:$0xff]
      %v1642 = vld [vmem:[#allocation2 + $0x6c] sm:$0xf]
      %v1643 = vld [vmem:[#allocation2 + $0x70] sm:$0xff]
      %v1644 = vld [vmem:[#allocation2 + $0x78] sm:$0xff]
      %v1645 = vld [vmem:[#allocation2 + $0x80] sm:$0xff]
      %v1646 = vld [vmem:[#allocation2 + $0x88] sm:$0xf]
      %v1647 = vld [vmem:[#allocation2 + $0x8c] sm:$0xff]
      %v1648 = vld [vmem:[#allocation2 + $0x94] sm:$0xff]
      %v1649 = vld [vmem:[#allocation2 + $0x9c] sm:$0xff]
      %v1650 = vld [vmem:[#allocation2 + $0xa4] sm:$0xf]
      %v1651 = vld [vmem:[#allocation2 + $0xa8] sm:$0xff]
      %v1652 = vld [vmem:[#allocation2 + $0xb0] sm:$0xff]
      %v1653 = vld [vmem:[#allocation2 + $0xb8] sm:$0xff]
      %v1654 = vld [vmem:[#allocation2 + $0xc0] sm:$0xf]
      %v1655 = vld [vmem:[#allocation2 + $0xc4] sm:$0xff]
      %v1656 = vld [vmem:[#allocation2 + $0xcc] sm:$0xff]
      %v1657 = vld [vmem:[#allocation2 + $0xd4] sm:$0xff]
      %v1658 = vld [vmem:[#allocation2 + $0xdc] sm:$0xf]
      %v1659 = vld [vmem:[#allocation2 + $0xe0] sm:$0xff]
      %v1660 = vld [vmem:[#allocation2 + $0xe8] sm:$0xff]
      %v1661 = vld [vmem:[#allocation2 + $0xf0] sm:$0xff]
      %v1662 = vld [vmem:[#allocation2 + $0xf8] sm:$0xf]
      %v1663 = vld [vmem:[#allocation2 + $0xfc] sm:$0xff]
      %v1664 = vld [vmem:[#allocation2 + $0x104] sm:$0xff]
      %v1665 = vld [vmem:[#allocation2 + $0x10c] sm:$0xff]
      %v1666 = vld [vmem:[#allocation2 + $0x114] sm:$0xf]
      %v1667 = vld [vmem:[#allocation2 + $0x118] sm:$0xff]
      %v1668 = vld [vmem:[#allocation2 + $0x120] sm:$0xff]
      %v1669 = vld [vmem:[#allocation2 + $0x128] sm:$0xff]
      %v1670 = vld [vmem:[#allocation2 + $0x130] sm:$0xf]
      %v1671 = vld [vmem:[#allocation2 + $0x134] sm:$0xff]
      %v1672 = vld [vmem:[#allocation2 + $0x13c] sm:$0xff]
      %v1673 = vld [vmem:[#allocation2 + $0x144] sm:$0xff]
      %v1674 = vld [vmem:[#allocation2 + $0x14c] sm:$0xf]
      %v1675 = vld [vmem:[#allocation2 + $0x150] sm:$0xff]
      %v1676 = vld [vmem:[#allocation2 + $0x158] sm:$0xff]
      %v1677 = vld [vmem:[#allocation2 + $0x160] sm:$0xff]
      %v1678 = vld [vmem:[#allocation2 + $0x168] sm:$0xf]
      %v1679 = vld [vmem:[#allocation2 + $0x16c] sm:$0xff]
      %v1680 = vld [vmem:[#allocation2 + $0x174] sm:$0xff]
      %v1681 = vld [vmem:[#allocation2 + $0x17c] sm:$0xff]
      %v1682 = vld [vmem:[#allocation2 + $0x184] sm:$0xf]
      %v1683 = vld [vmem:[#allocation2 + $0x188] sm:$0xff]
      %v1684 = vld [vmem:[#allocation2 + $0x190] sm:$0xff]
      %v1685 = vld [vmem:[#allocation2 + $0x198] sm:$0xff]
      %v1686 = vld [vmem:[#allocation2 + $0x1a0] sm:$0xf]
      %v1687 = vld [vmem:[#allocation2 + $0x1a4] sm:$0xff]
      %v1688 = vld [vmem:[#allocation2 + $0x1ac] sm:$0xff]
      %v1689 = vld [vmem:[#allocation2 + $0x1b4] sm:$0xff]
      %v1690 = vld [vmem:[#allocation2 + $0x1bc] sm:$0xf]
      %v1691 = vld [vmem:[#allocation2 + $0x1c0] sm:$0xff]
      %v1692 = vld [vmem:[#allocation2 + $0x1c8] sm:$0xff]
      %v1693 = vld [vmem:[#allocation2 + $0x1d0] sm:$0xff]
      %v1694 = vld [vmem:[#allocation2 + $0x1d8] sm:$0xf]
      %v1695 = vld [vmem:[#allocation2 + $0x1dc] sm:$0xff]
      %v1696 = vld [vmem:[#allocation2 + $0x1e4] sm:$0xff]
      %v1697 = vld [vmem:[#allocation2 + $0x1ec] sm:$0xff]
      %v1698 = vld [vmem:[#allocation2 + $0x1f4] sm:$0xf]
      %v1699 = vld [vmem:[#allocation2 + $0x1f8] sm:$0xff]
      %v1700 = vld [vmem:[#allocation2 + $0x200] sm:$0xff]
      %v1701 = vld [vmem:[#allocation2 + $0x208] sm:$0xff]
      %v1702 = vld [vmem:[#allocation2 + $0x210] sm:$0xf]
      %v1703 = vld [vmem:[#allocation2 + $0x214] sm:$0xff]
      %v1704 = vld [vmem:[#allocation2 + $0x21c] sm:$0xff]
      %v1705 = vld [vmem:[#allocation2 + $0x224] sm:$0xff]
      %v1706 = vld [vmem:[#allocation2 + $0x22c] sm:$0xf]
      %v1707 = vld [vmem:[#allocation2 + $0x230] sm:$0xff]
      %v1708 = vld [vmem:[#allocation2 + $0x238] sm:$0xff]
      %v1709 = vld [vmem:[#allocation2 + $0x240] sm:$0xff]
      %v1710 = vld [vmem:[#allocation2 + $0x248] sm:$0xf]
      %v1711 = vld [vmem:[#allocation2 + $0x24c] sm:$0xff]
      %v1712 = vld [vmem:[#allocation2 + $0x254] sm:$0xff]
      %v1713 = vld [vmem:[#allocation2 + $0x25c] sm:$0xff]
      %v1714 = vld [vmem:[#allocation2 + $0x264] sm:$0xf]
      %v1715 = vld [vmem:[#allocation2 + $0x268] sm:$0xff]
      %v1716 = vld [vmem:[#allocation2 + $0x270] sm:$0xff]
      %v1717 = vld [vmem:[#allocation2 + $0x278] sm:$0xff]
      %v1718 = vld [vmem:[#allocation2 + $0x280] sm:$0xf]
      %v1719 = vld [vmem:[#allocation2 + $0x284] sm:$0xff]
      %v1720 = vld [vmem:[#allocation2 + $0x28c] sm:$0xff]
      %v1721 = vld [vmem:[#allocation2 + $0x294] sm:$0xff]
      %v1722 = vld [vmem:[#allocation2 + $0x29c] sm:$0xf]
      %v1723 = vld [vmem:[#allocation2 + $0x2a0] sm:$0xff]
      %v1724 = vld [vmem:[#allocation2 + $0x2a8] sm:$0xff]
      %v1725 = vld [vmem:[#allocation2 + $0x2b0] sm:$0xff]
      %v1726 = vld [vmem:[#allocation2 + $0x2b8] sm:$0xf]
      %v1727 = vld [vmem:[#allocation2 + $0x2bc] sm:$0xff]
      %v1728 = vld [vmem:[#allocation2 + $0x2c4] sm:$0xff]
      %v1729 = vld [vmem:[#allocation2 + $0x2cc] sm:$0xff]
      %v1730 = vld [vmem:[#allocation2 + $0x2d4] sm:$0xf]
      %v1731 = vld [vmem:[#allocation2 + $0x2d8] sm:$0xff]
      %v1732 = vld [vmem:[#allocation2 + $0x2e0] sm:$0xff]
      %v1733 = vld [vmem:[#allocation2 + $0x2e8] sm:$0xff]
      %v1734 = vld [vmem:[#allocation2 + $0x2f0] sm:$0xf]
      %v1735 = vld [vmem:[#allocation2 + $0x2f4] sm:$0xff]
      %v1736 = vld [vmem:[#allocation2 + $0x2fc] sm:$0xff]
      %v1737 = vld [vmem:[#allocation2 + $0x304] sm:$0xff]
      %v1738 = vld [vmem:[#allocation2 + $0x30c] sm:$0xf]
      %v1739 = vld [vmem:[#allocation2 + $0x310] sm:$0xff]
      %v1740 = vld [vmem:[#allocation2 + $0x318] sm:$0xff]
      %v1741 = vld [vmem:[#allocation2 + $0x320] sm:$0xff]
      %v1742 = vld [vmem:[#allocation2 + $0x328] sm:$0xf]
      %v1743 = vld [vmem:[#allocation2 + $0x32c] sm:$0xff]
      %v1744 = vld [vmem:[#allocation2 + $0x334] sm:$0xff]
      %v1745 = vld [vmem:[#allocation2 + $0x33c] sm:$0xff]
      %v1746 = vld [vmem:[#allocation2 + $0x344] sm:$0xf]
      %v1747 = vld [vmem:[#allocation2 + $0x348] sm:$0xff]
      %v1748 = vld [vmem:[#allocation2 + $0x350] sm:$0xff]
      %v1749 = vld [vmem:[#allocation2 + $0x358] sm:$0xff]
      %v1750 = vld [vmem:[#allocation2 + $0x360] sm:$0xf]
      %v1751 = vld [vmem:[#allocation2 + $0x364] sm:$0xff]
      %v1752 = vld [vmem:[#allocation2 + $0x36c] sm:$0xff]
      %v1753 = vld [vmem:[#allocation2 + $0x374] sm:$0xff]
      %v1754 = vld [vmem:[#allocation2 + $0x37c] sm:$0xf]
      %v1755 = vld [vmem:[#allocation2 + $0x380] sm:$0xff]
      %v1756 = vld [vmem:[#allocation2 + $0x388] sm:$0xff]
      %v1757 = vld [vmem:[#allocation2 + $0x390] sm:$0xff]
      %v1758 = vld [vmem:[#allocation2 + $0x398] sm:$0xf]
      %v1759 = vld [vmem:[#allocation2 + $0x39c] sm:$0xff]
      %v1760 = vld [vmem:[#allocation2 + $0x3a4] sm:$0xff]
      %v1761 = vld [vmem:[#allocation2 + $0x3ac] sm:$0xff]
      %v1762 = vld [vmem:[#allocation2 + $0x3b4] sm:$0xf]
      %v1763 = vld [vmem:[#allocation2 + $0x3b8] sm:$0xff]
      %v1764 = vld [vmem:[#allocation2 + $0x3c0] sm:$0xff]
      %v1765 = vld [vmem:[#allocation2 + $0x3c8] sm:$0xff]
      %v1766 = vld [vmem:[#allocation2 + $0x3d0] sm:$0xf]
      %v1767 = vld [vmem:[#allocation2 + $0x3d4] sm:$0xff]
      %v1768 = vld [vmem:[#allocation2 + $0x3dc] sm:$0xff]
      %v1769 = vld [vmem:[#allocation2 + $0x3e4] sm:$0xff]
      %v1770 = vld [vmem:[#allocation2 + $0x3ec] sm:$0xf]
      %v1771 = vld [vmem:[#allocation2 + $0x3f0] sm:$0xff]
      %v1772 = vld [vmem:[#allocation2 + $0x3f8] sm:$0xff]
      %v1773 = vld [vmem:[#allocation2 + $0x400] sm:$0xff]
      %v1774 = vld [vmem:[#allocation2 + $0x408] sm:$0xf]
      %v1775 = vld [vmem:[#allocation2 + $0x40c] sm:$0xff]
      %v1776 = vld [vmem:[#allocation2 + $0x414] sm:$0xff]
      %v1777 = vld [vmem:[#allocation2 + $0x41c] sm:$0xff]
      %v1778 = vld [vmem:[#allocation2 + $0x424] sm:$0xf]
      %v1779 = vld [vmem:[#allocation2 + $0x428] sm:$0xff]
      %v1780 = vld [vmem:[#allocation2 + $0x430] sm:$0xff]
      %v1781 = vld [vmem:[#allocation2 + $0x438] sm:$0xff]
      %v1782 = vld [vmem:[#allocation2 + $0x440] sm:$0xf]
      %v1783 = vld [vmem:[#allocation2 + $0x444] sm:$0xff]
      %v1784 = vld [vmem:[#allocation2 + $0x44c] sm:$0xff]
      %v1785 = vld [vmem:[#allocation2 + $0x454] sm:$0xff]
      %v1786 = vld [vmem:[#allocation2 + $0x45c] sm:$0xf]
      %v1787 = vld [vmem:[#allocation2 + $0x460] sm:$0xff]
      %v1788 = vld [vmem:[#allocation2 + $0x468] sm:$0xff]
      %v1789 = vld [vmem:[#allocation2 + $0x470] sm:$0xff]
      %v1790 = vld [vmem:[#allocation2 + $0x478] sm:$0xf]
      %v1791 = vld [vmem:[#allocation2 + $0x47c] sm:$0xff]
      %v1792 = vld [vmem:[#allocation2 + $0x484] sm:$0xff]
      %v1793 = vld [vmem:[#allocation2 + $0x48c] sm:$0xff]
      %v1794 = vld [vmem:[#allocation2 + $0x494] sm:$0xf]
      %v1795 = vld [vmem:[#allocation2 + $0x498] sm:$0xff]
      %v1796 = vld [vmem:[#allocation2 + $0x4a0] sm:$0xff]
      %v1797 = vld [vmem:[#allocation2 + $0x4a8] sm:$0xff]
      %v1798 = vld [vmem:[#allocation2 + $0x4b0] sm:$0xf]
      %v1799 = vld [vmem:[#allocation2 + $0x4b4] sm:$0xff]
      %v1800 = vld [vmem:[#allocation2 + $0x4bc] sm:$0xff]
      %v1801 = vld [vmem:[#allocation2 + $0x4c4] sm:$0xff]
      %v1802 = vld [vmem:[#allocation2 + $0x4cc] sm:$0xf]
      %v1803 = vld [vmem:[#allocation2 + $0x4d0] sm:$0xff]
      %v1804 = vld [vmem:[#allocation2 + $0x4d8] sm:$0xff]
      %v1805 = vld [vmem:[#allocation2 + $0x4e0] sm:$0xff]
      %v1806 = vld [vmem:[#allocation2 + $0x4e8] sm:$0xf]
      %v1807 = vld [vmem:[#allocation2 + $0x4ec] sm:$0xff]
      %v1808 = vld [vmem:[#allocation2 + $0x4f4] sm:$0xff]
      %v1809 = vld [vmem:[#allocation2 + $0x4fc] sm:$0xff]
      %v1810 = vld [vmem:[#allocation2 + $0x504] sm:$0xf]
      %v1811 = vld [vmem:[#allocation2 + $0x508] sm:$0xff]
      %v1812 = vld [vmem:[#allocation2 + $0x510] sm:$0xff]
      %v1813 = vld [vmem:[#allocation2 + $0x518] sm:$0xff]
      %v1814 = vld [vmem:[#allocation2 + $0x520] sm:$0xf]
      %v1815 = vld [vmem:[#allocation2 + $0x524] sm:$0xff]
      %v1816 = vld [vmem:[#allocation2 + $0x52c] sm:$0xff]
      %v1817 = vld [vmem:[#allocation2 + $0x534] sm:$0xff]
      %v1818 = vld [vmem:[#allocation2 + $0x53c] sm:$0xf]
      %v1819 = vld [vmem:[#allocation2 + $0x540] sm:$0xff]
      %v1820 = vld [vmem:[#allocation2 + $0x548] sm:$0xff]
      %v1821 = vld [vmem:[#allocation2 + $0x550] sm:$0xff]
      %v1822 = vld [vmem:[#allocation2 + $0x558] sm:$0xf]
      %v1823 = vld [vmem:[#allocation2 + $0x55c] sm:$0xff]
      %v1824 = vld [vmem:[#allocation2 + $0x564] sm:$0xff]
      %v1825 = vld [vmem:[#allocation2 + $0x56c] sm:$0xff]
      %v1826 = vld [vmem:[#allocation2 + $0x574] sm:$0xf]
      %v1827 = vld [vmem:[%s2] sm:$0xff]
      %v1828 = vld [vmem:[%s2 + $0x8] sm:$0xff]
      %1830 = vset.pattern.permute.xlu0 0
      %1831 = vperm.xlu0 %1830, %v1827
      %v1832 = vpop.permute.xlu0 %1831
      %1835 = vset.pattern.permute.xlu0 0
      %1836 = vperm.xlu0 %1835, %v1828
      %v1837 = vpop.permute.xlu0 %1836
      %v1843 = vunpack.c.l.b16 %v1623
      %v1844 = vunpack.c.h.b16 %v1623
      %v1845 = vunpack.c.l.b16 %v1624
      %v1846 = vunpack.c.h.b16 %v1624
      %v1847 = vunpack.c.l.b16 %v1625
      %v1848 = vunpack.c.h.b16 %v1625
      %v1849 = vunpack.c.l.b16 %v1626
      %v1850 = vunpack.c.h.b16 %v1626
      %v1851 = vpack.c.b16 %v1847, %v1843
      %v1852 = vpack.c.b16 %v1848, %v1844
      %v1853 = vpack.c.b16 %v1849, %v1845
      %v1854 = vpack.c.b16 %v1850, %v1846
      %v2058 = vunpack.c.l.b16 %v1627
      %v2059 = vunpack.c.h.b16 %v1627
      %v2060 = vunpack.c.l.b16 %v1628
      %v2061 = vunpack.c.h.b16 %v1628
      %v2062 = vunpack.c.l.b16 %v1629
      %v2063 = vunpack.c.h.b16 %v1629
      %v2064 = vunpack.c.l.b16 %v1630
      %v2065 = vunpack.c.l.b16 %v1631
      %v2066 = vunpack.c.h.b16 %v1631
      %v2067 = vunpack.c.l.b16 %v1632
      %v2068 = vunpack.c.h.b16 %v1632
      %v2069 = vunpack.c.l.b16 %v1633
      %v2070 = vunpack.c.h.b16 %v1633
      %v2071 = vunpack.c.l.b16 %v1634
      %v2072 = vunpack.c.l.b16 %v1635
      %v2073 = vunpack.c.h.b16 %v1635
      %v2074 = vunpack.c.l.b16 %v1636
      %v2075 = vunpack.c.h.b16 %v1636
      %v2076 = vunpack.c.l.b16 %v1637
      %v2077 = vunpack.c.h.b16 %v1637
      %v2078 = vunpack.c.l.b16 %v1638
      %v2079 = vunpack.c.l.b16 %v1639
      %v2080 = vunpack.c.h.b16 %v1639
      %v2081 = vunpack.c.l.b16 %v1640
      %v2082 = vunpack.c.h.b16 %v1640
      %v2083 = vunpack.c.l.b16 %v1641
      %v2084 = vunpack.c.h.b16 %v1641
      %v2085 = vunpack.c.l.b16 %v1642
      %v2086 = vunpack.c.l.b16 %v1643
      %v2087 = vunpack.c.h.b16 %v1643
      %v2088 = vunpack.c.l.b16 %v1644
      %v2089 = vunpack.c.h.b16 %v1644
      %v2090 = vunpack.c.l.b16 %v1645
      %v2091 = vunpack.c.h.b16 %v1645
      %v2092 = vunpack.c.l.b16 %v1646
      %v2093 = vunpack.c.l.b16 %v1647
      %v2094 = vunpack.c.h.b16 %v1647
      %v2095 = vunpack.c.l.b16 %v1648
      %v2096 = vunpack.c.h.b16 %v1648
      %v2097 = vunpack.c.l.b16 %v1649
      %v2098 = vunpack.c.h.b16 %v1649
      %v2099 = vunpack.c.l.b16 %v1650
      %v2100 = vunpack.c.l.b16 %v1651
      %v2101 = vunpack.c.h.b16 %v1651
      %v2102 = vunpack.c.l.b16 %v1652
      %v2103 = vunpack.c.h.b16 %v1652
      %v2104 = vunpack.c.l.b16 %v1653
      %v2105 = vunpack.c.h.b16 %v1653
      %v2106 = vunpack.c.l.b16 %v1654
      %v2107 = vunpack.c.l.b16 %v1655
      %v2108 = vunpack.c.h.b16 %v1655
      %v2109 = vunpack.c.l.b16 %v1656
      %v2110 = vunpack.c.h.b16 %v1656
      %v2111 = vunpack.c.l.b16 %v1657
      %v2112 = vunpack.c.h.b16 %v1657
      %v2113 = vunpack.c.l.b16 %v1658
      %v2114 = vunpack.c.l.b16 %v1659
      %v2115 = vunpack.c.h.b16 %v1659
      %v2116 = vunpack.c.l.b16 %v1660
      %v2117 = vunpack.c.h.b16 %v1660
      %v2118 = vunpack.c.l.b16 %v1661
      %v2119 = vunpack.c.h.b16 %v1661
      %v2120 = vunpack.c.l.b16 %v1662
      %v2121 = vunpack.c.l.b16 %v1663
      %v2122 = vunpack.c.h.b16 %v1663
      %v2123 = vunpack.c.l.b16 %v1664
      %v2124 = vunpack.c.h.b16 %v1664
      %v2125 = vunpack.c.l.b16 %v1665
      %v2126 = vunpack.c.h.b16 %v1665
      %v2127 = vunpack.c.l.b16 %v1666
      %v2128 = vunpack.c.l.b16 %v1667
      %v2129 = vunpack.c.h.b16 %v1667
      %v2130 = vunpack.c.l.b16 %v1668
      %v2131 = vunpack.c.h.b16 %v1668
      %v2132 = vunpack.c.l.b16 %v1669
      %v2133 = vunpack.c.h.b16 %v1669
      %v2134 = vunpack.c.l.b16 %v1670
      %v2135 = vunpack.c.l.b16 %v1671
      %v2136 = vunpack.c.h.b16 %v1671
      %v2137 = vunpack.c.l.b16 %v1672
      %v2138 = vunpack.c.h.b16 %v1672
      %v2139 = vunpack.c.l.b16 %v1673
      %v2140 = vunpack.c.h.b16 %v1673
      %v2141 = vunpack.c.l.b16 %v1674
      %v2142 = vunpack.c.l.b16 %v1675
      %v2143 = vunpack.c.h.b16 %v1675
      %v2144 = vunpack.c.l.b16 %v1676
      %v2145 = vunpack.c.h.b16 %v1676
      %v2146 = vunpack.c.l.b16 %v1677
      %v2147 = vunpack.c.h.b16 %v1677
      %v2148 = vunpack.c.l.b16 %v1678
      %v2149 = vunpack.c.l.b16 %v1679
      %v2150 = vunpack.c.h.b16 %v1679
      %v2151 = vunpack.c.l.b16 %v1680
      %v2152 = vunpack.c.h.b16 %v1680
      %v2153 = vunpack.c.l.b16 %v1681
      %v2154 = vunpack.c.h.b16 %v1681
      %v2155 = vunpack.c.l.b16 %v1682
      %v2156 = vunpack.c.l.b16 %v1683
      %v2157 = vunpack.c.h.b16 %v1683
      %v2158 = vunpack.c.l.b16 %v1684
      %v2159 = vunpack.c.h.b16 %v1684
      %v2160 = vunpack.c.l.b16 %v1685
      %v2161 = vunpack.c.h.b16 %v1685
      %v2162 = vunpack.c.l.b16 %v1686
      %v2163 = vunpack.c.l.b16 %v1687
      %v2164 = vunpack.c.h.b16 %v1687
      %v2165 = vunpack.c.l.b16 %v1688
      %v2166 = vunpack.c.h.b16 %v1688
      %v2167 = vunpack.c.l.b16 %v1689
      %v2168 = vunpack.c.h.b16 %v1689
      %v2169 = vunpack.c.l.b16 %v1690
      %v2170 = vunpack.c.l.b16 %v1691
      %v2171 = vunpack.c.h.b16 %v1691
      %v2172 = vunpack.c.l.b16 %v1692
      %v2173 = vunpack.c.h.b16 %v1692
      %v2174 = vunpack.c.l.b16 %v1693
      %v2175 = vunpack.c.h.b16 %v1693
      %v2176 = vunpack.c.l.b16 %v1694
      %v2177 = vunpack.c.l.b16 %v1695
      %v2178 = vunpack.c.h.b16 %v1695
      %v2179 = vunpack.c.l.b16 %v1696
      %v2180 = vunpack.c.h.b16 %v1696
      %v2181 = vunpack.c.l.b16 %v1697
      %v2182 = vunpack.c.h.b16 %v1697
      %v2183 = vunpack.c.l.b16 %v1698
      %v2184 = vunpack.c.l.b16 %v1699
      %v2185 = vunpack.c.h.b16 %v1699
      %v2186 = vunpack.c.l.b16 %v1700
      %v2187 = vunpack.c.h.b16 %v1700
      %v2188 = vunpack.c.l.b16 %v1701
      %v2189 = vunpack.c.h.b16 %v1701
      %v2190 = vunpack.c.l.b16 %v1702
      %v2191 = vunpack.c.l.b16 %v1703
      %v2192 = vunpack.c.h.b16 %v1703
      %v2193 = vunpack.c.l.b16 %v1704
      %v2194 = vunpack.c.h.b16 %v1704
      %v2195 = vunpack.c.l.b16 %v1705
      %v2196 = vunpack.c.h.b16 %v1705
      %v2197 = vunpack.c.l.b16 %v1706
      %v2198 = vunpack.c.l.b16 %v1707
      %v2199 = vunpack.c.h.b16 %v1707
      %v2200 = vunpack.c.l.b16 %v1708
      %v2201 = vunpack.c.h.b16 %v1708
      %v2202 = vunpack.c.l.b16 %v1709
      %v2203 = vunpack.c.h.b16 %v1709
      %v2204 = vunpack.c.l.b16 %v1710
      %v2205 = vunpack.c.l.b16 %v1711
      %v2206 = vunpack.c.h.b16 %v1711
      %v2207 = vunpack.c.l.b16 %v1712
      %v2208 = vunpack.c.h.b16 %v1712
      %v2209 = vunpack.c.l.b16 %v1713
      %v2210 = vunpack.c.h.b16 %v1713
      %v2211 = vunpack.c.l.b16 %v1714
      %v2212 = vunpack.c.l.b16 %v1715
      %v2213 = vunpack.c.h.b16 %v1715
      %v2214 = vunpack.c.l.b16 %v1716
      %v2215 = vunpack.c.h.b16 %v1716
      %v2216 = vunpack.c.l.b16 %v1717
      %v2217 = vunpack.c.h.b16 %v1717
      %v2218 = vunpack.c.l.b16 %v1718
      %v2219 = vunpack.c.l.b16 %v1719
      %v2220 = vunpack.c.h.b16 %v1719
      %v2221 = vunpack.c.l.b16 %v1720
      %v2222 = vunpack.c.h.b16 %v1720
      %v2223 = vunpack.c.l.b16 %v1721
      %v2224 = vunpack.c.h.b16 %v1721
      %v2225 = vunpack.c.l.b16 %v1722
      %v2226 = vunpack.c.l.b16 %v1723
      %v2227 = vunpack.c.h.b16 %v1723
      %v2228 = vunpack.c.l.b16 %v1724
      %v2229 = vunpack.c.h.b16 %v1724
      %v2230 = vunpack.c.l.b16 %v1725
      %v2231 = vunpack.c.h.b16 %v1725
      %v2232 = vunpack.c.l.b16 %v1726
      %v2233 = vunpack.c.l.b16 %v1727
      %v2234 = vunpack.c.h.b16 %v1727
      %v2235 = vunpack.c.l.b16 %v1728
      %v2236 = vunpack.c.h.b16 %v1728
      %v2237 = vunpack.c.l.b16 %v1729
      %v2238 = vunpack.c.h.b16 %v1729
      %v2239 = vunpack.c.l.b16 %v1730
      %v2240 = vunpack.c.l.b16 %v1731
      %v2241 = vunpack.c.h.b16 %v1731
      %v2242 = vunpack.c.l.b16 %v1732
      %v2243 = vunpack.c.h.b16 %v1732
      %v2244 = vunpack.c.l.b16 %v1733
      %v2245 = vunpack.c.h.b16 %v1733
      %v2246 = vunpack.c.l.b16 %v1734
      %v2247 = vunpack.c.l.b16 %v1735
      %v2248 = vunpack.c.h.b16 %v1735
      %v2249 = vunpack.c.l.b16 %v1736
      %v2250 = vunpack.c.h.b16 %v1736
      %v2251 = vunpack.c.l.b16 %v1737
      %v2252 = vunpack.c.h.b16 %v1737
      %v2253 = vunpack.c.l.b16 %v1738
      %v2254 = vunpack.c.l.b16 %v1739
      %v2255 = vunpack.c.h.b16 %v1739
      %v2256 = vunpack.c.l.b16 %v1740
      %v2257 = vunpack.c.h.b16 %v1740
      %v2258 = vunpack.c.l.b16 %v1741
      %v2259 = vunpack.c.h.b16 %v1741
      %v2260 = vunpack.c.l.b16 %v1742
      %v2261 = vunpack.c.l.b16 %v1743
      %v2262 = vunpack.c.h.b16 %v1743
      %v2263 = vunpack.c.l.b16 %v1744
      %v2264 = vunpack.c.h.b16 %v1744
      %v2265 = vunpack.c.l.b16 %v1745
      %v2266 = vunpack.c.h.b16 %v1745
      %v2267 = vunpack.c.l.b16 %v1746
      %v2268 = vunpack.c.l.b16 %v1747
      %v2269 = vunpack.c.h.b16 %v1747
      %v2270 = vunpack.c.l.b16 %v1748
      %v2271 = vunpack.c.h.b16 %v1748
      %v2272 = vunpack.c.l.b16 %v1749
      %v2273 = vunpack.c.h.b16 %v1749
      %v2274 = vunpack.c.l.b16 %v1750
      %v2275 = vunpack.c.l.b16 %v1751
      %v2276 = vunpack.c.h.b16 %v1751
      %v2277 = vunpack.c.l.b16 %v1752
      %v2278 = vunpack.c.h.b16 %v1752
      %v2279 = vunpack.c.l.b16 %v1753
      %v2280 = vunpack.c.h.b16 %v1753
      %v2281 = vunpack.c.l.b16 %v1754
      %v2282 = vunpack.c.l.b16 %v1755
      %v2283 = vunpack.c.h.b16 %v1755
      %v2284 = vunpack.c.l.b16 %v1756
      %v2285 = vunpack.c.h.b16 %v1756
      %v2286 = vunpack.c.l.b16 %v1757
      %v2287 = vunpack.c.h.b16 %v1757
      %v2288 = vunpack.c.l.b16 %v1758
      %v2289 = vunpack.c.l.b16 %v1759
      %v2290 = vunpack.c.h.b16 %v1759
      %v2291 = vunpack.c.l.b16 %v1760
      %v2292 = vunpack.c.h.b16 %v1760
      %v2293 = vunpack.c.l.b16 %v1761
      %v2294 = vunpack.c.h.b16 %v1761
      %v2295 = vunpack.c.l.b16 %v1762
      %v2296 = vunpack.c.l.b16 %v1763
      %v2297 = vunpack.c.h.b16 %v1763
      %v2298 = vunpack.c.l.b16 %v1764
      %v2299 = vunpack.c.h.b16 %v1764
      %v2300 = vunpack.c.l.b16 %v1765
      %v2301 = vunpack.c.h.b16 %v1765
      %v2302 = vunpack.c.l.b16 %v1766
      %v2303 = vunpack.c.l.b16 %v1767
      %v2304 = vunpack.c.h.b16 %v1767
      %v2305 = vunpack.c.l.b16 %v1768
      %v2306 = vunpack.c.h.b16 %v1768
      %v2307 = vunpack.c.l.b16 %v1769
      %v2308 = vunpack.c.h.b16 %v1769
      %v2309 = vunpack.c.l.b16 %v1770
      %v2310 = vunpack.c.l.b16 %v1771
      %v2311 = vunpack.c.h.b16 %v1771
      %v2312 = vunpack.c.l.b16 %v1772
      %v2313 = vunpack.c.h.b16 %v1772
      %v2314 = vunpack.c.l.b16 %v1773
      %v2315 = vunpack.c.h.b16 %v1773
      %v2316 = vunpack.c.l.b16 %v1774
      %v2317 = vunpack.c.l.b16 %v1775
      %v2318 = vunpack.c.h.b16 %v1775
      %v2319 = vunpack.c.l.b16 %v1776
      %v2320 = vunpack.c.h.b16 %v1776
      %v2321 = vunpack.c.l.b16 %v1777
      %v2322 = vunpack.c.h.b16 %v1777
      %v2323 = vunpack.c.l.b16 %v1778
      %v2324 = vunpack.c.l.b16 %v1779
      %v2325 = vunpack.c.h.b16 %v1779
      %v2326 = vunpack.c.l.b16 %v1780
      %v2327 = vunpack.c.h.b16 %v1780
      %v2328 = vunpack.c.l.b16 %v1781
      %v2329 = vunpack.c.h.b16 %v1781
      %v2330 = vunpack.c.l.b16 %v1782
      %v2331 = vunpack.c.l.b16 %v1783
      %v2332 = vunpack.c.h.b16 %v1783
      %v2333 = vunpack.c.l.b16 %v1784
      %v2334 = vunpack.c.h.b16 %v1784
      %v2335 = vunpack.c.l.b16 %v1785
      %v2336 = vunpack.c.h.b16 %v1785
      %v2337 = vunpack.c.l.b16 %v1786
      %v2338 = vunpack.c.l.b16 %v1787
      %v2339 = vunpack.c.h.b16 %v1787
      %v2340 = vunpack.c.l.b16 %v1788
      %v2341 = vunpack.c.h.b16 %v1788
      %v2342 = vunpack.c.l.b16 %v1789
      %v2343 = vunpack.c.h.b16 %v1789
      %v2344 = vunpack.c.l.b16 %v1790
      %v2345 = vunpack.c.l.b16 %v1791
      %v2346 = vunpack.c.h.b16 %v1791
      %v2347 = vunpack.c.l.b16 %v1792
      %v2348 = vunpack.c.h.b16 %v1792
      %v2349 = vunpack.c.l.b16 %v1793
      %v2350 = vunpack.c.h.b16 %v1793
      %v2351 = vunpack.c.l.b16 %v1794
      %v2352 = vunpack.c.l.b16 %v1795
      %v2353 = vunpack.c.h.b16 %v1795
      %v2354 = vunpack.c.l.b16 %v1796
      %v2355 = vunpack.c.h.b16 %v1796
      %v2356 = vunpack.c.l.b16 %v1797
      %v2357 = vunpack.c.h.b16 %v1797
      %v2358 = vunpack.c.l.b16 %v1798
      %v2359 = vunpack.c.l.b16 %v1799
      %v2360 = vunpack.c.h.b16 %v1799
      %v2361 = vunpack.c.l.b16 %v1800
      %v2362 = vunpack.c.h.b16 %v1800
      %v2363 = vunpack.c.l.b16 %v1801
      %v2364 = vunpack.c.h.b16 %v1801
      %v2365 = vunpack.c.l.b16 %v1802
      %v2366 = vunpack.c.l.b16 %v1803
      %v2367 = vunpack.c.h.b16 %v1803
      %v2368 = vunpack.c.l.b16 %v1804
      %v2369 = vunpack.c.h.b16 %v1804
      %v2370 = vunpack.c.l.b16 %v1805
      %v2371 = vunpack.c.h.b16 %v1805
      %v2372 = vunpack.c.l.b16 %v1806
      %v2373 = vunpack.c.l.b16 %v1807
      %v2374 = vunpack.c.h.b16 %v1807
      %v2375 = vunpack.c.l.b16 %v1808
      %v2376 = vunpack.c.h.b16 %v1808
      %v2377 = vunpack.c.l.b16 %v1809
      %v2378 = vunpack.c.h.b16 %v1809
      %v2379 = vunpack.c.l.b16 %v1810
      %v2380 = vunpack.c.l.b16 %v1811
      %v2381 = vunpack.c.h.b16 %v1811
      %v2382 = vunpack.c.l.b16 %v1812
      %v2383 = vunpack.c.h.b16 %v1812
      %v2384 = vunpack.c.l.b16 %v1813
      %v2385 = vunpack.c.h.b16 %v1813
      %v2386 = vunpack.c.l.b16 %v1814
      %v2387 = vunpack.c.l.b16 %v1815
      %v2388 = vunpack.c.h.b16 %v1815
      %v2389 = vunpack.c.l.b16 %v1816
      %v2390 = vunpack.c.h.b16 %v1816
      %v2391 = vunpack.c.l.b16 %v1817
      %v2392 = vunpack.c.h.b16 %v1817
      %v2393 = vunpack.c.l.b16 %v1818
      %v2394 = vunpack.c.l.b16 %v1819
      %v2395 = vunpack.c.h.b16 %v1819
      %v2396 = vunpack.c.l.b16 %v1820
      %v2397 = vunpack.c.h.b16 %v1820
      %v2398 = vunpack.c.l.b16 %v1821
      %v2399 = vunpack.c.h.b16 %v1821
      %v2400 = vunpack.c.l.b16 %v1822
      %v2401 = vunpack.c.l.b16 %v1823
      %v2402 = vunpack.c.h.b16 %v1823
      %v2403 = vunpack.c.l.b16 %v1824
      %v2404 = vunpack.c.h.b16 %v1824
      %v2405 = vunpack.c.l.b16 %v1825
      %v2406 = vunpack.c.h.b16 %v1825
      %v2407 = vunpack.c.l.b16 %v1826
      %v2408 = vpack.c.b16 %v2065, %v2058
      %v2409 = vpack.c.b16 %v2066, %v2059
      %v2410 = vpack.c.b16 %v2067, %v2060
      %v2411 = vpack.c.b16 %v2068, %v2061
      %v2412 = vpack.c.b16 %v2069, %v2062
      %v2413 = vpack.c.b16 %v2070, %v2063
      %v2414 = vpack.c.b16 %v2071, %v2064
      %v2415 = vpack.c.b16 %v2079, %v2072
      %v2416 = vpack.c.b16 %v2080, %v2073
      %v2417 = vpack.c.b16 %v2081, %v2074
      %v2418 = vpack.c.b16 %v2082, %v2075
      %v2419 = vpack.c.b16 %v2083, %v2076
      %v2420 = vpack.c.b16 %v2084, %v2077
      %v2421 = vpack.c.b16 %v2085, %v2078
      %v2422 = vpack.c.b16 %v2093, %v2086
      %v2423 = vpack.c.b16 %v2094, %v2087
      %v2424 = vpack.c.b16 %v2095, %v2088
      %v2425 = vpack.c.b16 %v2096, %v2089
      %v2426 = vpack.c.b16 %v2097, %v2090
      %v2427 = vpack.c.b16 %v2098, %v2091
      %v2428 = vpack.c.b16 %v2099, %v2092
      %v2429 = vpack.c.b16 %v2107, %v2100
      %v2430 = vpack.c.b16 %v2108, %v2101
      %v2431 = vpack.c.b16 %v2109, %v2102
      %v2432 = vpack.c.b16 %v2110, %v2103
      %v2433 = vpack.c.b16 %v2111, %v2104
      %v2434 = vpack.c.b16 %v2112, %v2105
      %v2435 = vpack.c.b16 %v2113, %v2106
      %v2436 = vpack.c.b16 %v2121, %v2114
      %v2437 = vpack.c.b16 %v2122, %v2115
      %v2438 = vpack.c.b16 %v2123, %v2116
      %v2439 = vpack.c.b16 %v2124, %v2117
      %v2440 = vpack.c.b16 %v2125, %v2118
      %v2441 = vpack.c.b16 %v2126, %v2119
      %v2442 = vpack.c.b16 %v2127, %v2120
      %v2443 = vpack.c.b16 %v2135, %v2128
      %v2444 = vpack.c.b16 %v2136, %v2129
      %v2445 = vpack.c.b16 %v2137, %v2130
      %v2446 = vpack.c.b16 %v2138, %v2131
      %v2447 = vpack.c.b16 %v2139, %v2132
      %v2448 = vpack.c.b16 %v2140, %v2133
      %v2449 = vpack.c.b16 %v2141, %v2134
      %v2450 = vpack.c.b16 %v2149, %v2142
      %v2451 = vpack.c.b16 %v2150, %v2143
      %v2452 = vpack.c.b16 %v2151, %v2144
      %v2453 = vpack.c.b16 %v2152, %v2145
      %v2454 = vpack.c.b16 %v2153, %v2146
      %v2455 = vpack.c.b16 %v2154, %v2147
      %v2456 = vpack.c.b16 %v2155, %v2148
      %v2457 = vpack.c.b16 %v2163, %v2156
      %v2458 = vpack.c.b16 %v2164, %v2157
      %v2459 = vpack.c.b16 %v2165, %v2158
      %v2460 = vpack.c.b16 %v2166, %v2159
      %v2461 = vpack.c.b16 %v2167, %v2160
      %v2462 = vpack.c.b16 %v2168, %v2161
      %v2463 = vpack.c.b16 %v2169, %v2162
      %v2464 = vpack.c.b16 %v2177, %v2170
      %v2465 = vpack.c.b16 %v2178, %v2171
      %v2466 = vpack.c.b16 %v2179, %v2172
      %v2467 = vpack.c.b16 %v2180, %v2173
      %v2468 = vpack.c.b16 %v2181, %v2174
      %v2469 = vpack.c.b16 %v2182, %v2175
      %v2470 = vpack.c.b16 %v2183, %v2176
      %v2471 = vpack.c.b16 %v2191, %v2184
      %v2472 = vpack.c.b16 %v2192, %v2185
      %v2473 = vpack.c.b16 %v2193, %v2186
      %v2474 = vpack.c.b16 %v2194, %v2187
      %v2475 = vpack.c.b16 %v2195, %v2188
      %v2476 = vpack.c.b16 %v2196, %v2189
      %v2477 = vpack.c.b16 %v2197, %v2190
      %v2478 = vpack.c.b16 %v2205, %v2198
      %v2479 = vpack.c.b16 %v2206, %v2199
      %v2480 = vpack.c.b16 %v2207, %v2200
      %v2481 = vpack.c.b16 %v2208, %v2201
      %v2482 = vpack.c.b16 %v2209, %v2202
      %v2483 = vpack.c.b16 %v2210, %v2203
      %v2484 = vpack.c.b16 %v2211, %v2204
      %v2485 = vpack.c.b16 %v2219, %v2212
      %v2486 = vpack.c.b16 %v2220, %v2213
      %v2487 = vpack.c.b16 %v2221, %v2214
      %v2488 = vpack.c.b16 %v2222, %v2215
      %v2489 = vpack.c.b16 %v2223, %v2216
      %v2490 = vpack.c.b16 %v2224, %v2217
      %v2491 = vpack.c.b16 %v2225, %v2218
      %v2492 = vpack.c.b16 %v2233, %v2226
      %v2493 = vpack.c.b16 %v2234, %v2227
      %v2494 = vpack.c.b16 %v2235, %v2228
      %v2495 = vpack.c.b16 %v2236, %v2229
      %v2496 = vpack.c.b16 %v2237, %v2230
      %v2497 = vpack.c.b16 %v2238, %v2231
      %v2498 = vpack.c.b16 %v2239, %v2232
      %v2499 = vpack.c.b16 %v2247, %v2240
      %v2500 = vpack.c.b16 %v2248, %v2241
      %v2501 = vpack.c.b16 %v2249, %v2242
      %v2502 = vpack.c.b16 %v2250, %v2243
      %v2503 = vpack.c.b16 %v2251, %v2244
      %v2504 = vpack.c.b16 %v2252, %v2245
      %v2505 = vpack.c.b16 %v2253, %v2246
      %v2506 = vpack.c.b16 %v2261, %v2254
      %v2507 = vpack.c.b16 %v2262, %v2255
      %v2508 = vpack.c.b16 %v2263, %v2256
      %v2509 = vpack.c.b16 %v2264, %v2257
      %v2510 = vpack.c.b16 %v2265, %v2258
      %v2511 = vpack.c.b16 %v2266, %v2259
      %v2512 = vpack.c.b16 %v2267, %v2260
      %v2513 = vpack.c.b16 %v2275, %v2268
      %v2514 = vpack.c.b16 %v2276, %v2269
      %v2515 = vpack.c.b16 %v2277, %v2270
      %v2516 = vpack.c.b16 %v2278, %v2271
      %v2517 = vpack.c.b16 %v2279, %v2272
      %v2518 = vpack.c.b16 %v2280, %v2273
      %v2519 = vpack.c.b16 %v2281, %v2274
      %v2520 = vpack.c.b16 %v2289, %v2282
      %v2521 = vpack.c.b16 %v2290, %v2283
      %v2522 = vpack.c.b16 %v2291, %v2284
      %v2523 = vpack.c.b16 %v2292, %v2285
      %v2524 = vpack.c.b16 %v2293, %v2286
      %v2525 = vpack.c.b16 %v2294, %v2287
      %v2526 = vpack.c.b16 %v2295, %v2288
      %v2527 = vpack.c.b16 %v2303, %v2296
      %v2528 = vpack.c.b16 %v2304, %v2297
      %v2529 = vpack.c.b16 %v2305, %v2298
      %v2530 = vpack.c.b16 %v2306, %v2299
      %v2531 = vpack.c.b16 %v2307, %v2300
      %v2532 = vpack.c.b16 %v2308, %v2301
      %v2533 = vpack.c.b16 %v2309, %v2302
      %v2534 = vpack.c.b16 %v2317, %v2310
      %v2535 = vpack.c.b16 %v2318, %v2311
      %v2536 = vpack.c.b16 %v2319, %v2312
      %v2537 = vpack.c.b16 %v2320, %v2313
      %v2538 = vpack.c.b16 %v2321, %v2314
      %v2539 = vpack.c.b16 %v2322, %v2315
      %v2540 = vpack.c.b16 %v2323, %v2316
      %v2541 = vpack.c.b16 %v2331, %v2324
      %v2542 = vpack.c.b16 %v2332, %v2325
      %v2543 = vpack.c.b16 %v2333, %v2326
      %v2544 = vpack.c.b16 %v2334, %v2327
      %v2545 = vpack.c.b16 %v2335, %v2328
      %v2546 = vpack.c.b16 %v2336, %v2329
      %v2547 = vpack.c.b16 %v2337, %v2330
      %v2548 = vpack.c.b16 %v2345, %v2338
      %v2549 = vpack.c.b16 %v2346, %v2339
      %v2550 = vpack.c.b16 %v2347, %v2340
      %v2551 = vpack.c.b16 %v2348, %v2341
      %v2552 = vpack.c.b16 %v2349, %v2342
      %v2553 = vpack.c.b16 %v2350, %v2343
      %v2554 = vpack.c.b16 %v2351, %v2344
      %v2555 = vpack.c.b16 %v2359, %v2352
      %v2556 = vpack.c.b16 %v2360, %v2353
      %v2557 = vpack.c.b16 %v2361, %v2354
      %v2558 = vpack.c.b16 %v2362, %v2355
      %v2559 = vpack.c.b16 %v2363, %v2356
      %v2560 = vpack.c.b16 %v2364, %v2357
      %v2561 = vpack.c.b16 %v2365, %v2358
      %v2562 = vpack.c.b16 %v2373, %v2366
      %v2563 = vpack.c.b16 %v2374, %v2367
      %v2564 = vpack.c.b16 %v2375, %v2368
      %v2565 = vpack.c.b16 %v2376, %v2369
      %v2566 = vpack.c.b16 %v2377, %v2370
      %v2567 = vpack.c.b16 %v2378, %v2371
      %v2568 = vpack.c.b16 %v2379, %v2372
      %v2569 = vpack.c.b16 %v2387, %v2380
      %v2570 = vpack.c.b16 %v2388, %v2381
      %v2571 = vpack.c.b16 %v2389, %v2382
      %v2572 = vpack.c.b16 %v2390, %v2383
      %v2573 = vpack.c.b16 %v2391, %v2384
      %v2574 = vpack.c.b16 %v2392, %v2385
      %v2575 = vpack.c.b16 %v2393, %v2386
      %v2576 = vpack.c.b16 %v2401, %v2394
      %v2577 = vpack.c.b16 %v2402, %v2395
      %v2578 = vpack.c.b16 %v2403, %v2396
      %v2579 = vpack.c.b16 %v2404, %v2397
      %v2580 = vpack.c.b16 %v2405, %v2398
      %v2581 = vpack.c.b16 %v2406, %v2399
      %v2582 = vpack.c.b16 %v2407, %v2400
      %vm2758 = vcmask 130048
      %v2760 = vsel %vm2758, %v1854, 0
      %2762 = vmatprep.subr.bf16.mxu0 %v2458
      %2763 = vmatpush1.bf16.msra.mxu0 %v2457
      %2764 = vmatprep.subr.bf16.mxu0 %v2451
      %2765 = vmatpush1.bf16.msra.mxu0 %v2450
      %2766 = vmatprep.subr.bf16.mxu0 %v2444
      %2767 = vmatpush1.bf16.msra.mxu0 %v2443
      %2768 = vmatprep.subr.bf16.mxu0 %v2437
      %2769 = vmatpush1.bf16.msra.mxu0 %v2436
      %2770 = vmatprep.subr.bf16.mxu0 %v2430
      %2771 = vmatpush1.bf16.msra.mxu0 %v2429
      %2772 = vmatprep.subr.bf16.mxu0 %v2423
      %2773 = vmatpush1.bf16.msra.mxu0 %v2422
      %2774 = vmatprep.subr.bf16.mxu0 %v2416
      %2775 = vmatpush1.bf16.msra.mxu0 %v2415
      %2776 = vmatprep.subr.bf16.mxu0 %v2409
      %2777 = vmatpush1.bf16.msra.mxu0 %v2408
      %2778 = vmatprep.subr.bf16.mxu0 %v2514
      %2779 = vmatpush2.bf16.msra.mxu0 %v2513
      %2780 = vmatprep.subr.bf16.mxu0 %v2507
      %2781 = vmatpush2.bf16.msra.mxu0 %v2506
      %2782 = vmatprep.subr.bf16.mxu0 %v2500
      %2783 = vmatpush2.bf16.msra.mxu0 %v2499
      %2784 = vmatprep.subr.bf16.mxu0 %v2493
      %2785 = vmatpush2.bf16.msra.mxu0 %v2492
      %2786 = vmatprep.subr.bf16.mxu0 %v2486
      %2787 = vmatpush2.bf16.msra.mxu0 %v2485
      %2788 = vmatprep.subr.bf16.mxu0 %v2479
      %2789 = vmatpush2.bf16.msra.mxu0 %v2478
      %2790 = vmatprep.subr.bf16.mxu0 %v2472
      %2791 = vmatpush2.bf16.msra.mxu0 %v2471
      %2792 = vmatprep.subr.bf16.mxu0 %v2465
      %2793 = vmatpush2.bf16.msra.mxu0 %v2464
      %2794 = vmatprep.mubr.bf16.mxu0 %v1852
      %2795 = vmatmul.mubr.bf16.gmra.mxu0 %v1851
      %v2796 = vpop.f32.mrf.mxu0
      %v2797 = vadd.f32 %v1832, %v2796
      %v2798 = vpop.f32.mrf.mxu0
      %v2799 = vadd.f32 %v1832, %v2798
      %v2800 = vpop.f32.mrf.mxu0
      %v2801 = vadd.f32 %v1837, %v2800
      %v2802 = vpop.f32.mrf.mxu0
      %v2803 = vadd.f32 %v1837, %v2802
      %2804 = vdwg.mxu0
      %2805 = vmatprep.subr.bf16.mxu0 %v2570
      %2806 = vmatpush1.bf16.msra.mxu0 %v2569
      %2807 = vmatprep.subr.bf16.mxu0 %v2563
      %2808 = vmatpush1.bf16.msra.mxu0 %v2562
      %2809 = vmatprep.subr.bf16.mxu0 %v2556
      %2810 = vmatpush1.bf16.msra.mxu0 %v2555
      %2811 = vmatprep.subr.bf16.mxu0 %v2549
      %2812 = vmatpush1.bf16.msra.mxu0 %v2548
      %2813 = vmatprep.subr.bf16.mxu0 %v2542
      %2814 = vmatpush1.bf16.msra.mxu0 %v2541
      %2815 = vmatprep.subr.bf16.mxu0 %v2535
      %2816 = vmatpush1.bf16.msra.mxu0 %v2534
      %2817 = vmatprep.subr.bf16.mxu0 %v2528
      %2818 = vmatpush1.bf16.msra.mxu0 %v2527
      %2819 = vmatprep.subr.bf16.mxu0 %v2521
      %2820 = vmatpush1.bf16.msra.mxu0 %v2520
      %2821 = vmatprep.subr.bf16.mxu0 0
      %2822 = vmatpush2.bf16.msra.mxu0 0
      %2823 = vmatprep.subr.bf16.mxu0 0
      %2824 = vmatpush2.bf16.msra.mxu0 0
      %2825 = vmatprep.subr.bf16.mxu0 0
      %2826 = vmatpush2.bf16.msra.mxu0 0
      %2827 = vmatprep.subr.bf16.mxu0 0
      %2828 = vmatpush2.bf16.msra.mxu0 0
      %2829 = vmatprep.subr.bf16.mxu0 0
      %2830 = vmatpush2.bf16.msra.mxu0 0
      %2831 = vmatprep.subr.bf16.mxu0 0
      %2832 = vmatpush2.bf16.msra.mxu0 0
      %2833 = vmatprep.subr.bf16.mxu0 0
      %2834 = vmatpush2.bf16.msra.mxu0 0
      %2835 = vmatprep.subr.bf16.mxu0 %v2577
      %2836 = vmatpush2.bf16.msra.mxu0 %v2576
      %2837 = vmatprep.mubr.bf16.mxu0 %v2760
      %2838 = vmatmul.mubr.bf16.gmra.mxu0 %v1853
      %v2839 = vpop.f32.mrf.mxu0
      %v2840 = vadd.f32 %v2797, %v2839
      %v2841 = vpop.f32.mrf.mxu0
      %v2842 = vadd.f32 %v2799, %v2841
      %v2843 = vpop.f32.mrf.mxu0
      %v2844 = vadd.f32 %v2801, %v2843
      %v2845 = vpop.f32.mrf.mxu0
      %v2846 = vadd.f32 %v2803, %v2845
      %2847 = vdwg.mxu0
      %2848 = vmatprep.subr.bf16.mxu0 %v2460
      %2849 = vmatpush1.bf16.msra.mxu0 %v2459
      %2850 = vmatprep.subr.bf16.mxu0 %v2453
      %2851 = vmatpush1.bf16.msra.mxu0 %v2452
      %2852 = vmatprep.subr.bf16.mxu0 %v2446
      %2853 = vmatpush1.bf16.msra.mxu0 %v2445
      %2854 = vmatprep.subr.bf16.mxu0 %v2439
      %2855 = vmatpush1.bf16.msra.mxu0 %v2438
      %2856 = vmatprep.subr.bf16.mxu0 %v2432
      %2857 = vmatpush1.bf16.msra.mxu0 %v2431
      %2858 = vmatprep.subr.bf16.mxu0 %v2425
      %2859 = vmatpush1.bf16.msra.mxu0 %v2424
      %2860 = vmatprep.subr.bf16.mxu0 %v2418
      %2861 = vmatpush1.bf16.msra.mxu0 %v2417
      %2862 = vmatprep.subr.bf16.mxu0 %v2411
      %2863 = vmatpush1.bf16.msra.mxu0 %v2410
      %2864 = vmatprep.subr.bf16.mxu0 %v2516
      %2865 = vmatpush2.bf16.msra.mxu0 %v2515
      %2866 = vmatprep.subr.bf16.mxu0 %v2509
      %2867 = vmatpush2.bf16.msra.mxu0 %v2508
      %2868 = vmatprep.subr.bf16.mxu0 %v2502
      %2869 = vmatpush2.bf16.msra.mxu0 %v2501
      %2870 = vmatprep.subr.bf16.mxu0 %v2495
      %2871 = vmatpush2.bf16.msra.mxu0 %v2494
      %2872 = vmatprep.subr.bf16.mxu0 %v2488
      %2873 = vmatpush2.bf16.msra.mxu0 %v2487
      %2874 = vmatprep.subr.bf16.mxu0 %v2481
      %2875 = vmatpush2.bf16.msra.mxu0 %v2480
      %2876 = vmatprep.subr.bf16.mxu0 %v2474
      %2877 = vmatpush2.bf16.msra.mxu0 %v2473
      %2878 = vmatprep.subr.bf16.mxu0 %v2467
      %2879 = vmatpush2.bf16.msra.mxu0 %v2466
      %2880 = vmatprep.mubr.bf16.mxu0 %v1852
      %2881 = vmatmul.mubr.bf16.gmra.mxu0 %v1851
      %v2882 = vpop.f32.mrf.mxu0
      %v2883 = vadd.f32 %v1832, %v2882
      %v2884 = vpop.f32.mrf.mxu0
      %v2885 = vadd.f32 %v1832, %v2884
      %v2886 = vpop.f32.mrf.mxu0
      %v2887 = vadd.f32 %v1837, %v2886
      %v2888 = vpop.f32.mrf.mxu0
      %v2889 = vadd.f32 %v1837, %v2888
      %2890 = vdwg.mxu0
      %2891 = vmatprep.subr.bf16.mxu0 %v2572
      %2892 = vmatpush1.bf16.msra.mxu0 %v2571
      %2893 = vmatprep.subr.bf16.mxu0 %v2565
      %2894 = vmatpush1.bf16.msra.mxu0 %v2564
      %2895 = vmatprep.subr.bf16.mxu0 %v2558
      %2896 = vmatpush1.bf16.msra.mxu0 %v2557
      %2897 = vmatprep.subr.bf16.mxu0 %v2551
      %2898 = vmatpush1.bf16.msra.mxu0 %v2550
      %2899 = vmatprep.subr.bf16.mxu0 %v2544
      %2900 = vmatpush1.bf16.msra.mxu0 %v2543
      %2901 = vmatprep.subr.bf16.mxu0 %v2537
      %2902 = vmatpush1.bf16.msra.mxu0 %v2536
      %2903 = vmatprep.subr.bf16.mxu0 %v2530
      %2904 = vmatpush1.bf16.msra.mxu0 %v2529
      %2905 = vmatprep.subr.bf16.mxu0 %v2523
      %2906 = vmatpush1.bf16.msra.mxu0 %v2522
      %2907 = vmatprep.subr.bf16.mxu0 0
      %2908 = vmatpush2.bf16.msra.mxu0 0
      %2909 = vmatprep.subr.bf16.mxu0 0
      %2910 = vmatpush2.bf16.msra.mxu0 0
      %2911 = vmatprep.subr.bf16.mxu0 0
      %2912 = vmatpush2.bf16.msra.mxu0 0
      %2913 = vmatprep.subr.bf16.mxu0 0
      %2914 = vmatpush2.bf16.msra.mxu0 0
      %2915 = vmatprep.subr.bf16.mxu0 0
      %2916 = vmatpush2.bf16.msra.mxu0 0
      %2917 = vmatprep.subr.bf16.mxu0 0
      %2918 = vmatpush2.bf16.msra.mxu0 0
      %2919 = vmatprep.subr.bf16.mxu0 0
      %2920 = vmatpush2.bf16.msra.mxu0 0
      %2921 = vmatprep.subr.bf16.mxu0 %v2579
      %2922 = vmatpush2.bf16.msra.mxu0 %v2578
      %2923 = vmatprep.mubr.bf16.mxu0 %v2760
      %2924 = vmatmul.mubr.bf16.gmra.mxu0 %v1853
      %v2925 = vpop.f32.mrf.mxu0
      %v2926 = vadd.f32 %v2883, %v2925
      %v2927 = vpop.f32.mrf.mxu0
      %v2928 = vadd.f32 %v2885, %v2927
      %v2929 = vpop.f32.mrf.mxu0
      %v2930 = vadd.f32 %v2887, %v2929
      %v2931 = vpop.f32.mrf.mxu0
      %v2932 = vadd.f32 %v2889, %v2931
      %2933 = vdwg.mxu0
      %2934 = vmatprep.subr.bf16.mxu0 %v2462
      %2935 = vmatpush1.bf16.msra.mxu0 %v2461
      %2936 = vmatprep.subr.bf16.mxu0 %v2455
      %2937 = vmatpush1.bf16.msra.mxu0 %v2454
      %2938 = vmatprep.subr.bf16.mxu0 %v2448
      %2939 = vmatpush1.bf16.msra.mxu0 %v2447
      %2940 = vmatprep.subr.bf16.mxu0 %v2441
      %2941 = vmatpush1.bf16.msra.mxu0 %v2440
      %2942 = vmatprep.subr.bf16.mxu0 %v2434
      %2943 = vmatpush1.bf16.msra.mxu0 %v2433
      %2944 = vmatprep.subr.bf16.mxu0 %v2427
      %2945 = vmatpush1.bf16.msra.mxu0 %v2426
      %2946 = vmatprep.subr.bf16.mxu0 %v2420
      %2947 = vmatpush1.bf16.msra.mxu0 %v2419
      %2948 = vmatprep.subr.bf16.mxu0 %v2413
      %2949 = vmatpush1.bf16.msra.mxu0 %v2412
      %2950 = vmatprep.subr.bf16.mxu0 %v2518
      %2951 = vmatpush2.bf16.msra.mxu0 %v2517
      %2952 = vmatprep.subr.bf16.mxu0 %v2511
      %2953 = vmatpush2.bf16.msra.mxu0 %v2510
      %2954 = vmatprep.subr.bf16.mxu0 %v2504
      %2955 = vmatpush2.bf16.msra.mxu0 %v2503
      %2956 = vmatprep.subr.bf16.mxu0 %v2497
      %2957 = vmatpush2.bf16.msra.mxu0 %v2496
      %2958 = vmatprep.subr.bf16.mxu0 %v2490
      %2959 = vmatpush2.bf16.msra.mxu0 %v2489
      %2960 = vmatprep.subr.bf16.mxu0 %v2483
      %2961 = vmatpush2.bf16.msra.mxu0 %v2482
      %2962 = vmatprep.subr.bf16.mxu0 %v2476
      %2963 = vmatpush2.bf16.msra.mxu0 %v2475
      %2964 = vmatprep.subr.bf16.mxu0 %v2469
      %2965 = vmatpush2.bf16.msra.mxu0 %v2468
      %2966 = vmatprep.mubr.bf16.mxu0 %v1852
      %2967 = vmatmul.mubr.bf16.gmra.mxu0 %v1851
      %v2968 = vpop.f32.mrf.mxu0
      %v2969 = vadd.f32 %v1832, %v2968
      %v2970 = vpop.f32.mrf.mxu0
      %v2971 = vadd.f32 %v1832, %v2970
      %v2972 = vpop.f32.mrf.mxu0
      %v2973 = vadd.f32 %v1837, %v2972
      %v2974 = vpop.f32.mrf.mxu0
      %v2975 = vadd.f32 %v1837, %v2974
      %2976 = vdwg.mxu0
      %2977 = vmatprep.subr.bf16.mxu0 %v2574
      %2978 = vmatpush1.bf16.msra.mxu0 %v2573
      %2979 = vmatprep.subr.bf16.mxu0 %v2567
      %2980 = vmatpush1.bf16.msra.mxu0 %v2566
      %2981 = vmatprep.subr.bf16.mxu0 %v2560
      %2982 = vmatpush1.bf16.msra.mxu0 %v2559
      %2983 = vmatprep.subr.bf16.mxu0 %v2553
      %2984 = vmatpush1.bf16.msra.mxu0 %v2552
      %2985 = vmatprep.subr.bf16.mxu0 %v2546
      %2986 = vmatpush1.bf16.msra.mxu0 %v2545
      %2987 = vmatprep.subr.bf16.mxu0 %v2539
      %2988 = vmatpush1.bf16.msra.mxu0 %v2538
      %2989 = vmatprep.subr.bf16.mxu0 %v2532
      %2990 = vmatpush1.bf16.msra.mxu0 %v2531
      %2991 = vmatprep.subr.bf16.mxu0 %v2525
      %2992 = vmatpush1.bf16.msra.mxu0 %v2524
      %2993 = vmatprep.subr.bf16.mxu0 0
      %2994 = vmatpush2.bf16.msra.mxu0 0
      %2995 = vmatprep.subr.bf16.mxu0 0
      %2996 = vmatpush2.bf16.msra.mxu0 0
      %2997 = vmatprep.subr.bf16.mxu0 0
      %2998 = vmatpush2.bf16.msra.mxu0 0
      %2999 = vmatprep.subr.bf16.mxu0 0
      %3000 = vmatpush2.bf16.msra.mxu0 0
      %3001 = vmatprep.subr.bf16.mxu0 0
      %3002 = vmatpush2.bf16.msra.mxu0 0
      %3003 = vmatprep.subr.bf16.mxu0 0
      %3004 = vmatpush2.bf16.msra.mxu0 0
      %3005 = vmatprep.subr.bf16.mxu0 0
      %3006 = vmatpush2.bf16.msra.mxu0 0
      %3007 = vmatprep.subr.bf16.mxu0 %v2581
      %3008 = vmatpush2.bf16.msra.mxu0 %v2580
      %3009 = vmatprep.mubr.bf16.mxu0 %v2760
      %3010 = vmatmul.mubr.bf16.gmra.mxu0 %v1853
      %v3011 = vpop.f32.mrf.mxu0
      %v3012 = vadd.f32 %v2969, %v3011
      %v3013 = vpop.f32.mrf.mxu0
      %v3014 = vadd.f32 %v2971, %v3013
      %v3015 = vpop.f32.mrf.mxu0
      %v3016 = vadd.f32 %v2973, %v3015
      %v3017 = vpop.f32.mrf.mxu0
      %v3018 = vadd.f32 %v2975, %v3017
      %3019 = vdwg.mxu0
      %3020 = vmatprep.subr.bf16.mxu0 0
      %3021 = vmatpush1.bf16.msra.mxu0 %v2463
      %3022 = vmatprep.subr.bf16.mxu0 0
      %3023 = vmatpush1.bf16.msra.mxu0 %v2456
      %3024 = vmatprep.subr.bf16.mxu0 0
      %3025 = vmatpush1.bf16.msra.mxu0 %v2449
      %3026 = vmatprep.subr.bf16.mxu0 0
      %3027 = vmatpush1.bf16.msra.mxu0 %v2442
      %3028 = vmatprep.subr.bf16.mxu0 0
      %3029 = vmatpush1.bf16.msra.mxu0 %v2435
      %3030 = vmatprep.subr.bf16.mxu0 0
      %3031 = vmatpush1.bf16.msra.mxu0 %v2428
      %3032 = vmatprep.subr.bf16.mxu0 0
      %3033 = vmatpush1.bf16.msra.mxu0 %v2421
      %3034 = vmatprep.subr.bf16.mxu0 0
      %3035 = vmatpush1.bf16.msra.mxu0 %v2414
      %3036 = vmatprep.subr.bf16.mxu0 0
      %3037 = vmatpush2.bf16.msra.mxu0 %v2519
      %3038 = vmatprep.subr.bf16.mxu0 0
      %3039 = vmatpush2.bf16.msra.mxu0 %v2512
      %3040 = vmatprep.subr.bf16.mxu0 0
      %3041 = vmatpush2.bf16.msra.mxu0 %v2505
      %3042 = vmatprep.subr.bf16.mxu0 0
      %3043 = vmatpush2.bf16.msra.mxu0 %v2498
      %3044 = vmatprep.subr.bf16.mxu0 0
      %3045 = vmatpush2.bf16.msra.mxu0 %v2491
      %3046 = vmatprep.subr.bf16.mxu0 0
      %3047 = vmatpush2.bf16.msra.mxu0 %v2484
      %3048 = vmatprep.subr.bf16.mxu0 0
      %3049 = vmatpush2.bf16.msra.mxu0 %v2477
      %3050 = vmatprep.subr.bf16.mxu0 0
      %3051 = vmatpush2.bf16.msra.mxu0 %v2470
      %3052 = vmatprep.mubr.bf16.mxu0 %v1852
      %3053 = vmatmul.mubr.bf16.gmra.mxu0 %v1851
      %v3054 = vpop.f32.mrf.mxu0
      %v3055 = vadd.f32 %v1832, %v3054
      %v3056 = vpop.f32.mrf.mxu0
      %v3057 = vpop.f32.mrf.mxu0
      %v3058 = vadd.f32 %v1837, %v3057
      %v3059 = vpop.f32.mrf.mxu0
      %3060 = vdwg.mxu0
      %3061 = vmatprep.subr.bf16.mxu0 0
      %3062 = vmatpush1.bf16.msra.mxu0 %v2575
      %3063 = vmatprep.subr.bf16.mxu0 0
      %3064 = vmatpush1.bf16.msra.mxu0 %v2568
      %3065 = vmatprep.subr.bf16.mxu0 0
      %3066 = vmatpush1.bf16.msra.mxu0 %v2561
      %3067 = vmatprep.subr.bf16.mxu0 0
      %3068 = vmatpush1.bf16.msra.mxu0 %v2554
      %3069 = vmatprep.subr.bf16.mxu0 0
      %3070 = vmatpush1.bf16.msra.mxu0 %v2547
      %3071 = vmatprep.subr.bf16.mxu0 0
      %3072 = vmatpush1.bf16.msra.mxu0 %v2540
      %3073 = vmatprep.subr.bf16.mxu0 0
      %3074 = vmatpush1.bf16.msra.mxu0 %v2533
      %3075 = vmatprep.subr.bf16.mxu0 0
      %3076 = vmatpush1.bf16.msra.mxu0 %v2526
      %3077 = vmatprep.subr.bf16.mxu0 0
      %3078 = vmatpush2.bf16.msra.mxu0 0
      %3079 = vmatprep.subr.bf16.mxu0 0
      %3080 = vmatpush2.bf16.msra.mxu0 0
      %3081 = vmatprep.subr.bf16.mxu0 0
      %3082 = vmatpush2.bf16.msra.mxu0 0
      %3083 = vmatprep.subr.bf16.mxu0 0
      %3084 = vmatpush2.bf16.msra.mxu0 0
      %3085 = vmatprep.subr.bf16.mxu0 0
      %3086 = vmatpush2.bf16.msra.mxu0 0
      %3087 = vmatprep.subr.bf16.mxu0 0
      %3088 = vmatpush2.bf16.msra.mxu0 0
      %3089 = vmatprep.subr.bf16.mxu0 0
      %3090 = vmatpush2.bf16.msra.mxu0 0
      %3091 = vmatprep.subr.bf16.mxu0 0
      %3092 = vmatpush2.bf16.msra.mxu0 %v2582
      %3093 = vmatprep.mubr.bf16.mxu0 %v2760
      %3094 = vmatmul.mubr.bf16.gmra.mxu0 %v1853
      %v3095 = vpop.f32.mrf.mxu0
      %v3096 = vadd.f32 %v3055, %v3095
      %v3097 = vpop.f32.mrf.mxu0
      %v3098 = vpop.f32.mrf.mxu0
      %v3099 = vadd.f32 %v3058, %v3098
      %v3100 = vpop.f32.mrf.mxu0
      %3101 = vdwg.mxu0
      %v3102 = vmax.f32 %v2840, 0.0
      %v3103 = vmax.f32 %v2842, 0.0
      %v3104 = vmax.f32 %v2926, 0.0
      %v3105 = vmax.f32 %v2928, 0.0
      %v3106 = vmax.f32 %v3012, 0.0
      %v3107 = vmax.f32 %v3014, 0.0
      %v3108 = vmax.f32 %v3096, 0.0
      %v3109 = vmax.f32 %v2844, 0.0
      %v3110 = vmax.f32 %v2846, 0.0
      %v3111 = vmax.f32 %v2930, 0.0
      %v3112 = vmax.f32 %v2932, 0.0
      %v3113 = vmax.f32 %v3016, 0.0
      %v3114 = vmax.f32 %v3018, 0.0
      %v3115 = vmax.f32 %v3099, 0.0
      %3130 = vrot.lane.b32.xlu0 %v3102, 127
      %v3131 = vpop.permute.xlu0 %3130
      %3132 = vrot.lane.b32.xlu0 %v3103, 127
      %v3133 = vpop.permute.xlu0 %3132
      %3134 = vrot.lane.b32.xlu0 %v3104, 127
      %v3135 = vpop.permute.xlu0 %3134
      %3136 = vrot.lane.b32.xlu0 %v3105, 127
      %v3137 = vpop.permute.xlu0 %3136
      %3138 = vrot.lane.b32.xlu0 %v3106, 127
      %v3139 = vpop.permute.xlu0 %3138
      %3140 = vrot.lane.b32.xlu0 %v3107, 127
      %v3141 = vpop.permute.xlu0 %3140
      %3142 = vrot.lane.b32.xlu0 %v3108, 127
      %v3143 = vpop.permute.xlu0 %3142
      %3144 = vrot.lane.b32.xlu0 %v3109, 127
      %v3145 = vpop.permute.xlu0 %3144
      %3146 = vrot.lane.b32.xlu0 %v3110, 127
      %v3147 = vpop.permute.xlu0 %3146
      %3148 = vrot.lane.b32.xlu0 %v3111, 127
      %v3149 = vpop.permute.xlu0 %3148
      %3150 = vrot.lane.b32.xlu0 %v3112, 127
      %v3151 = vpop.permute.xlu0 %3150
      %3152 = vrot.lane.b32.xlu0 %v3113, 127
      %v3153 = vpop.permute.xlu0 %3152
      %3154 = vrot.lane.b32.xlu0 %v3114, 127
      %v3155 = vpop.permute.xlu0 %3154
      %3156 = vrot.lane.b32.xlu0 %v3115, 127
      %v3157 = vpop.permute.xlu0 %3156
      %vm3158 = vcmask 1039360
      %v3159 = vsel %vm3158, %v3131, %v3133
      %v3160 = vsel %vm3158, %v3133, %v3135
      %v3161 = vsel %vm3158, %v3135, %v3137
      %v3162 = vsel %vm3158, %v3137, %v3139
      %v3163 = vsel %vm3158, %v3139, %v3141
      %v3164 = vsel %vm3158, %v3141, %v3143
      %v3165 = vsel %vm3158, %v3145, %v3147
      %v3166 = vsel %vm3158, %v3147, %v3149
      %v3167 = vsel %vm3158, %v3149, %v3151
      %v3168 = vsel %vm3158, %v3151, %v3153
      %v3169 = vsel %vm3158, %v3153, %v3155
      %v3170 = vsel %vm3158, %v3155, %v3157
      %v3185 = vmax.f32 %v3102, %v3159
      %v3186 = vmax.f32 %v3103, %v3160
      %v3187 = vmax.f32 %v3104, %v3161
      %v3188 = vmax.f32 %v3105, %v3162
      %v3189 = vmax.f32 %v3106, %v3163
      %v3190 = vmax.f32 %v3107, %v3164
      %v3191 = vmax.f32 %v3108, %v3143
      %v3192 = vmax.f32 %v3109, %v3165
      %v3193 = vmax.f32 %v3110, %v3166
      %v3194 = vmax.f32 %v3111, %v3167
      %v3195 = vmax.f32 %v3112, %v3168
      %v3196 = vmax.f32 %v3113, %v3169
      %v3197 = vmax.f32 %v3114, %v3170
      %v3198 = vmax.f32 %v3115, %v3157
      %3213 = vrot.lane.b32.xlu0 %v3185, 96
      %v3214 = vpop.permute.xlu0 %3213
      %3215 = vrot.lane.b32.xlu0 %v3186, 96
      %v3216 = vpop.permute.xlu0 %3215
      %3217 = vrot.lane.b32.xlu0 %v3187, 96
      %v3218 = vpop.permute.xlu0 %3217
      %3219 = vrot.lane.b32.xlu0 %v3188, 96
      %v3220 = vpop.permute.xlu0 %3219
      %3221 = vrot.lane.b32.xlu0 %v3189, 96
      %v3222 = vpop.permute.xlu0 %3221
      %3223 = vrot.lane.b32.xlu0 %v3190, 96
      %v3224 = vpop.permute.xlu0 %3223
      %3225 = vrot.lane.b32.xlu0 %v3191, 96
      %v3226 = vpop.permute.xlu0 %3225
      %3227 = vrot.lane.b32.xlu0 %v3192, 96
      %v3228 = vpop.permute.xlu0 %3227
      %3229 = vrot.lane.b32.xlu0 %v3193, 96
      %v3230 = vpop.permute.xlu0 %3229
      %3231 = vrot.lane.b32.xlu0 %v3194, 96
      %v3232 = vpop.permute.xlu0 %3231
      %3233 = vrot.lane.b32.xlu0 %v3195, 96
      %v3234 = vpop.permute.xlu0 %3233
      %3235 = vrot.lane.b32.xlu0 %v3196, 96
      %v3236 = vpop.permute.xlu0 %3235
      %3237 = vrot.lane.b32.xlu0 %v3197, 96
      %v3238 = vpop.permute.xlu0 %3237
      %3239 = vrot.lane.b32.xlu0 %v3198, 96
      %v3240 = vpop.permute.xlu0 %3239
      %vm3241 = vcmask 785408
      %v3242 = vsel %vm3241, %v3214, %v3216
      %v3243 = vsel %vm3241, %v3216, %v3218
      %v3244 = vsel %vm3241, %v3218, %v3220
      %v3245 = vsel %vm3241, %v3220, %v3222
      %v3246 = vsel %vm3241, %v3222, %v3224
      %v3247 = vsel %vm3241, %v3224, %v3226
      %v3248 = vsel %vm3241, %v3228, %v3230
      %v3249 = vsel %vm3241, %v3230, %v3232
      %v3250 = vsel %vm3241, %v3232, %v3234
      %v3251 = vsel %vm3241, %v3234, %v3236
      %v3252 = vsel %vm3241, %v3236, %v3238
      %v3253 = vsel %vm3241, %v3238, %v3240
      %v3268 = vmax.f32 %v3185, %v3242
      %v3269 = vmax.f32 %v3186, %v3243
      %v3270 = vmax.f32 %v3187, %v3244
      %v3271 = vmax.f32 %v3188, %v3245
      %v3272 = vmax.f32 %v3189, %v3246
      %v3273 = vmax.f32 %v3190, %v3247
      %v3274 = vmax.f32 %v3191, %v3226
      %v3275 = vmax.f32 %v3192, %v3248
      %v3276 = vmax.f32 %v3193, %v3249
      %v3277 = vmax.f32 %v3194, %v3250
      %v3278 = vmax.f32 %v3195, %v3251
      %v3279 = vmax.f32 %v3196, %v3252
      %v3280 = vmax.f32 %v3197, %v3253
      %v3281 = vmax.f32 %v3198, %v3240
      %v3282 = vpack.c.bf16 %v3275, %v3268
      %v3283 = vpack.c.bf16 %v3276, %v3269
      %v3284 = vpack.c.bf16 %v3277, %v3270
      %v3285 = vpack.c.bf16 %v3278, %v3271
      %v3286 = vpack.c.bf16 %v3279, %v3272
      %v3287 = vpack.c.bf16 %v3280, %v3273
      %v3288 = vpack.c.bf16 %v3281, %v3274
      %v3289 = vld [vmem:[%s3] sm:$0xff]
      %v3290 = vld [vmem:[%s3 + $0x8] sm:$0xff]
      %v3291 = vld [vmem:[%s3 + $0x10] sm:$0xff]
      %v3292 = vld [vmem:[%s3 + $0x18] sm:$0xff]
      %v3293 = vld [vmem:[%s3 + $0x20] sm:$0xff]
      %v3294 = vld [vmem:[%s3 + $0x28] sm:$0xff]
      %v3295 = vld [vmem:[%s3 + $0x30] sm:$0xff]
      %v3296 = vld [vmem:[%s3 + $0x38] sm:$0xff]
      %v3297 = vld [vmem:[%s3 + $0x40] sm:$0xff]
      %v3298 = vld [vmem:[%s3 + $0x48] sm:$0xff]
      %v3299 = vld [vmem:[%s3 + $0x50] sm:$0xff]
      %v3300 = vld [vmem:[%s3 + $0x58] sm:$0xff]
      %v3301 = vld [vmem:[%s3 + $0x60] sm:$0xff]
      %v3302 = vld [vmem:[%s3 + $0x68] sm:$0xff]
      %v3303 = vld [vmem:[%s3 + $0x70] sm:$0xff]
      %v3304 = vld [vmem:[%s3 + $0x78] sm:$0xff]
      %v3305 = vld [vmem:[%s3 + $0x80] sm:$0xff]
      %v3306 = vld [vmem:[%s3 + $0x88] sm:$0xff]
      %v3307 = vld [vmem:[%s3 + $0x90] sm:$0xff]
      %v3308 = vld [vmem:[%s3 + $0x98] sm:$0xff]
      %v3309 = vld [vmem:[%s3 + $0xa0] sm:$0xff]
      %v3310 = vld [vmem:[%s3 + $0xa8] sm:$0xff]
      %v3311 = vld [vmem:[%s3 + $0xb0] sm:$0xff]
      %v3312 = vld [vmem:[%s3 + $0xb8] sm:$0xff]
      %v3313 = vld [vmem:[%s3 + $0xc0] sm:$0xff]
      %v3314 = vld [vmem:[%s3 + $0xc8] sm:$0xff]
      %v3315 = vld [vmem:[%s3 + $0xd0] sm:$0xff]
      %v3316 = vld [vmem:[%s3 + $0xd8] sm:$0xff]
      %v3317 = vld [vmem:[%s3 + $0xe0] sm:$0xff]
      %v3318 = vld [vmem:[%s3 + $0xe8] sm:$0xff]
      %v3319 = vld [vmem:[%s3 + $0xf0] sm:$0xff]
      %v3320 = vld [vmem:[%s3 + $0xf8] sm:$0xff]
      %v3321 = vld [vmem:[%s3 + $0x100] sm:$0xff]
      %v3322 = vld [vmem:[%s3 + $0x108] sm:$0xff]
      %v3323 = vld [vmem:[%s3 + $0x110] sm:$0xff]
      %v3324 = vld [vmem:[%s3 + $0x118] sm:$0xff]
      %v3325 = vld [vmem:[%s3 + $0x120] sm:$0xff]
      %v3326 = vld [vmem:[%s3 + $0x128] sm:$0xff]
      %v3327 = vld [vmem:[%s3 + $0x130] sm:$0xff]
      %v3328 = vld [vmem:[%s3 + $0x138] sm:$0xff]
      %v3329 = vld [vmem:[%s3 + $0x140] sm:$0xff]
      %v3330 = vld [vmem:[%s3 + $0x148] sm:$0xff]
      %v3331 = vld [vmem:[%s3 + $0x150] sm:$0xff]
      %v3332 = vld [vmem:[%s3 + $0x158] sm:$0xff]
      %v3333 = vld [vmem:[%s3 + $0x160] sm:$0xff]
      %v3334 = vld [vmem:[%s3 + $0x168] sm:$0xff]
      %v3335 = vld [vmem:[%s3 + $0x170] sm:$0xff]
      %v3336 = vld [vmem:[%s3 + $0x178] sm:$0xff]
      %v3337 = vld [vmem:[%s3 + $0x180] sm:$0xff]
      %v3338 = vld [vmem:[%s3 + $0x188] sm:$0xff]
      %v3339 = vld [vmem:[%s3 + $0x190] sm:$0xff]
      %v3340 = vld [vmem:[%s3 + $0x198] sm:$0xff]
      %v3341 = vld [vmem:[%s3 + $0x1a0] sm:$0xff]
      %v3342 = vld [vmem:[%s3 + $0x1a8] sm:$0xff]
      %v3343 = vld [vmem:[%s3 + $0x1b0] sm:$0xff]
      %v3344 = vld [vmem:[%s3 + $0x1b8] sm:$0xff]
      %v3345 = vld [vmem:[%s3 + $0x1c0] sm:$0xff]
      %v3346 = vld [vmem:[%s3 + $0x1c8] sm:$0xff]
      %v3347 = vld [vmem:[%s3 + $0x1d0] sm:$0xff]
      %v3348 = vld [vmem:[%s3 + $0x1d8] sm:$0xff]
      %v3349 = vld [vmem:[%s3 + $0x1e0] sm:$0xff]
      %v3350 = vld [vmem:[%s3 + $0x1e8] sm:$0xff]
      %v3351 = vld [vmem:[%s3 + $0x1f0] sm:$0xff]
      %v3352 = vld [vmem:[%s3 + $0x1f8] sm:$0xff]
      %v3353 = vld [vmem:[%s3 + $0x200] sm:$0xff]
      %v3354 = vld [vmem:[%s3 + $0x208] sm:$0xff]
      %v3355 = vld [vmem:[%s3 + $0x210] sm:$0xff]
      %v3356 = vld [vmem:[%s3 + $0x218] sm:$0xff]
      %v3357 = vld [vmem:[%s3 + $0x220] sm:$0xff]
      %v3358 = vld [vmem:[%s3 + $0x228] sm:$0xff]
      %v3359 = vld [vmem:[%s3 + $0x230] sm:$0xff]
      %v3360 = vld [vmem:[%s3 + $0x238] sm:$0xff]
      %v3361 = vld [vmem:[%s3 + $0x240] sm:$0xff]
      %v3362 = vld [vmem:[%s3 + $0x248] sm:$0xff]
      %v3363 = vld [vmem:[%s3 + $0x250] sm:$0xff]
      %v3364 = vld [vmem:[%s3 + $0x258] sm:$0xff]
      %v3365 = vld [vmem:[%s3 + $0x260] sm:$0xff]
      %v3366 = vld [vmem:[%s3 + $0x268] sm:$0xff]
      %v3367 = vld [vmem:[%s3 + $0x270] sm:$0xff]
      %v3368 = vld [vmem:[%s3 + $0x278] sm:$0xff]
      %v3369 = vld [vmem:[%s3 + $0x280] sm:$0xff]
      %v3370 = vld [vmem:[%s3 + $0x288] sm:$0xff]
      %v3371 = vld [vmem:[%s3 + $0x290] sm:$0xff]
      %v3372 = vld [vmem:[%s3 + $0x298] sm:$0xff]
      %v3373 = vld [vmem:[%s3 + $0x2a0] sm:$0xff]
      %v3374 = vld [vmem:[%s3 + $0x2a8] sm:$0xff]
      %v3375 = vld [vmem:[%s3 + $0x2b0] sm:$0xff]
      %v3376 = vld [vmem:[%s3 + $0x2b8] sm:$0xff]
      %v3377 = vld [vmem:[%s3 + $0x2c0] sm:$0xff]
      %v3378 = vld [vmem:[%s3 + $0x2c8] sm:$0xff]
      %v3379 = vld [vmem:[%s3 + $0x2d0] sm:$0xff]
      %v3380 = vld [vmem:[%s3 + $0x2d8] sm:$0xff]
      %v3381 = vld [vmem:[%s3 + $0x2e0] sm:$0xff]
      %v3382 = vld [vmem:[%s3 + $0x2e8] sm:$0xff]
      %v3383 = vld [vmem:[%s3 + $0x2f0] sm:$0xff]
      %v3384 = vld [vmem:[%s3 + $0x2f8] sm:$0xff]
      %v3385 = vld [vmem:[%s3 + $0x300] sm:$0xff]
      %v3386 = vld [vmem:[%s3 + $0x308] sm:$0xff]
      %v3387 = vld [vmem:[%s3 + $0x310] sm:$0xff]
      %v3388 = vld [vmem:[%s3 + $0x318] sm:$0xff]
      %v3389 = vld [vmem:[%s3 + $0x320] sm:$0xff]
      %v3390 = vld [vmem:[%s3 + $0x328] sm:$0xff]
      %v3391 = vld [vmem:[%s3 + $0x330] sm:$0xff]
      %v3392 = vld [vmem:[%s3 + $0x338] sm:$0xff]
      %v3393 = vld [vmem:[%s3 + $0x340] sm:$0xff]
      %v3394 = vld [vmem:[%s3 + $0x348] sm:$0xff]
      %v3395 = vld [vmem:[%s3 + $0x350] sm:$0xff]
      %v3396 = vld [vmem:[%s3 + $0x358] sm:$0x33]
      %v3505 = vunpack.c.l.b16 %v3289
      %v3506 = vunpack.c.h.b16 %v3289
      %v3507 = vunpack.c.l.b16 %v3290
      %v3508 = vunpack.c.h.b16 %v3290
      %v3509 = vunpack.c.l.b16 %v3291
      %v3510 = vunpack.c.h.b16 %v3291
      %v3511 = vunpack.c.l.b16 %v3292
      %v3512 = vunpack.c.h.b16 %v3292
      %v3513 = vunpack.c.l.b16 %v3293
      %v3514 = vunpack.c.h.b16 %v3293
      %v3515 = vunpack.c.l.b16 %v3294
      %v3516 = vunpack.c.h.b16 %v3294
      %v3517 = vunpack.c.l.b16 %v3295
      %v3518 = vunpack.c.h.b16 %v3295
      %v3519 = vunpack.c.l.b16 %v3296
      %v3520 = vunpack.c.h.b16 %v3296
      %v3521 = vunpack.c.l.b16 %v3297
      %v3522 = vunpack.c.h.b16 %v3297
      %v3523 = vunpack.c.l.b16 %v3298
      %v3524 = vunpack.c.h.b16 %v3298
      %v3525 = vunpack.c.l.b16 %v3299
      %v3526 = vunpack.c.h.b16 %v3299
      %v3527 = vunpack.c.l.b16 %v3300
      %v3528 = vunpack.c.h.b16 %v3300
      %v3529 = vunpack.c.l.b16 %v3301
      %v3530 = vunpack.c.h.b16 %v3301
      %v3531 = vunpack.c.l.b16 %v3302
      %v3532 = vunpack.c.h.b16 %v3302
      %v3533 = vunpack.c.l.b16 %v3303
      %v3534 = vunpack.c.h.b16 %v3303
      %v3535 = vunpack.c.l.b16 %v3304
      %v3536 = vunpack.c.h.b16 %v3304
      %v3537 = vunpack.c.l.b16 %v3305
      %v3538 = vunpack.c.h.b16 %v3305
      %v3539 = vunpack.c.l.b16 %v3306
      %v3540 = vunpack.c.h.b16 %v3306
      %v3541 = vunpack.c.l.b16 %v3307
      %v3542 = vunpack.c.h.b16 %v3307
      %v3543 = vunpack.c.l.b16 %v3308
      %v3544 = vunpack.c.h.b16 %v3308
      %v3545 = vunpack.c.l.b16 %v3309
      %v3546 = vunpack.c.h.b16 %v3309
      %v3547 = vunpack.c.l.b16 %v3310
      %v3548 = vunpack.c.h.b16 %v3310
      %v3549 = vunpack.c.l.b16 %v3311
      %v3550 = vunpack.c.h.b16 %v3311
      %v3551 = vunpack.c.l.b16 %v3312
      %v3552 = vunpack.c.h.b16 %v3312
      %v3553 = vunpack.c.l.b16 %v3313
      %v3554 = vunpack.c.h.b16 %v3313
      %v3555 = vunpack.c.l.b16 %v3314
      %v3556 = vunpack.c.h.b16 %v3314
      %v3557 = vunpack.c.l.b16 %v3315
      %v3558 = vunpack.c.h.b16 %v3315
      %v3559 = vunpack.c.l.b16 %v3316
      %v3560 = vunpack.c.h.b16 %v3316
      %v3561 = vunpack.c.l.b16 %v3317
      %v3562 = vunpack.c.h.b16 %v3317
      %v3563 = vunpack.c.l.b16 %v3318
      %v3564 = vunpack.c.h.b16 %v3318
      %v3565 = vunpack.c.l.b16 %v3319
      %v3566 = vunpack.c.h.b16 %v3319
      %v3567 = vunpack.c.l.b16 %v3320
      %v3568 = vunpack.c.h.b16 %v3320
      %v3569 = vunpack.c.l.b16 %v3321
      %v3570 = vunpack.c.h.b16 %v3321
      %v3571 = vunpack.c.l.b16 %v3322
      %v3572 = vunpack.c.h.b16 %v3322
      %v3573 = vunpack.c.l.b16 %v3323
      %v3574 = vunpack.c.h.b16 %v3323
      %v3575 = vunpack.c.l.b16 %v3324
      %v3576 = vunpack.c.h.b16 %v3324
      %v3577 = vunpack.c.l.b16 %v3325
      %v3578 = vunpack.c.h.b16 %v3325
      %v3579 = vunpack.c.l.b16 %v3326
      %v3580 = vunpack.c.h.b16 %v3326
      %v3581 = vunpack.c.l.b16 %v3327
      %v3582 = vunpack.c.h.b16 %v3327
      %v3583 = vunpack.c.l.b16 %v3328
      %v3584 = vunpack.c.h.b16 %v3328
      %v3585 = vunpack.c.l.b16 %v3329
      %v3586 = vunpack.c.h.b16 %v3329
      %v3587 = vunpack.c.l.b16 %v3330
      %v3588 = vunpack.c.h.b16 %v3330
      %v3589 = vunpack.c.l.b16 %v3331
      %v3590 = vunpack.c.h.b16 %v3331
      %v3591 = vunpack.c.l.b16 %v3332
      %v3592 = vunpack.c.h.b16 %v3332
      %v3593 = vunpack.c.l.b16 %v3333
      %v3594 = vunpack.c.h.b16 %v3333
      %v3595 = vunpack.c.l.b16 %v3334
      %v3596 = vunpack.c.h.b16 %v3334
      %v3597 = vunpack.c.l.b16 %v3335
      %v3598 = vunpack.c.h.b16 %v3335
      %v3599 = vunpack.c.l.b16 %v3336
      %v3600 = vunpack.c.h.b16 %v3336
      %v3601 = vunpack.c.l.b16 %v3337
      %v3602 = vunpack.c.h.b16 %v3337
      %v3603 = vunpack.c.l.b16 %v3338
      %v3604 = vunpack.c.h.b16 %v3338
      %v3605 = vunpack.c.l.b16 %v3339
      %v3606 = vunpack.c.h.b16 %v3339
      %v3607 = vunpack.c.l.b16 %v3340
      %v3608 = vunpack.c.h.b16 %v3340
      %v3609 = vunpack.c.l.b16 %v3341
      %v3610 = vunpack.c.h.b16 %v3341
      %v3611 = vunpack.c.l.b16 %v3342
      %v3612 = vunpack.c.h.b16 %v3342
      %v3613 = vunpack.c.l.b16 %v3343
      %v3614 = vunpack.c.h.b16 %v3343
      %v3615 = vunpack.c.l.b16 %v3344
      %v3616 = vunpack.c.h.b16 %v3344
      %v3617 = vunpack.c.l.b16 %v3345
      %v3618 = vunpack.c.h.b16 %v3345
      %v3619 = vunpack.c.l.b16 %v3346
      %v3620 = vunpack.c.h.b16 %v3346
      %v3621 = vunpack.c.l.b16 %v3347
      %v3622 = vunpack.c.h.b16 %v3347
      %v3623 = vunpack.c.l.b16 %v3348
      %v3624 = vunpack.c.h.b16 %v3348
      %v3625 = vunpack.c.l.b16 %v3349
      %v3626 = vunpack.c.h.b16 %v3349
      %v3627 = vunpack.c.l.b16 %v3350
      %v3628 = vunpack.c.h.b16 %v3350
      %v3629 = vunpack.c.l.b16 %v3351
      %v3630 = vunpack.c.h.b16 %v3351
      %v3631 = vunpack.c.l.b16 %v3352
      %v3632 = vunpack.c.h.b16 %v3352
      %v3633 = vunpack.c.l.b16 %v3353
      %v3634 = vunpack.c.h.b16 %v3353
      %v3635 = vunpack.c.l.b16 %v3354
      %v3636 = vunpack.c.h.b16 %v3354
      %v3637 = vunpack.c.l.b16 %v3355
      %v3638 = vunpack.c.h.b16 %v3355
      %v3639 = vunpack.c.l.b16 %v3356
      %v3640 = vunpack.c.h.b16 %v3356
      %v3641 = vunpack.c.l.b16 %v3357
      %v3642 = vunpack.c.h.b16 %v3357
      %v3643 = vunpack.c.l.b16 %v3358
      %v3644 = vunpack.c.h.b16 %v3358
      %v3645 = vunpack.c.l.b16 %v3359
      %v3646 = vunpack.c.h.b16 %v3359
      %v3647 = vunpack.c.l.b16 %v3360
      %v3648 = vunpack.c.h.b16 %v3360
      %v3649 = vunpack.c.l.b16 %v3361
      %v3650 = vunpack.c.h.b16 %v3361
      %v3651 = vunpack.c.l.b16 %v3362
      %v3652 = vunpack.c.h.b16 %v3362
      %v3653 = vunpack.c.l.b16 %v3363
      %v3654 = vunpack.c.h.b16 %v3363
      %v3655 = vunpack.c.l.b16 %v3364
      %v3656 = vunpack.c.h.b16 %v3364
      %v3657 = vunpack.c.l.b16 %v3365
      %v3658 = vunpack.c.h.b16 %v3365
      %v3659 = vunpack.c.l.b16 %v3366
      %v3660 = vunpack.c.h.b16 %v3366
      %v3661 = vunpack.c.l.b16 %v3367
      %v3662 = vunpack.c.h.b16 %v3367
      %v3663 = vunpack.c.l.b16 %v3368
      %v3664 = vunpack.c.h.b16 %v3368
      %v3665 = vunpack.c.l.b16 %v3369
      %v3666 = vunpack.c.h.b16 %v3369
      %v3667 = vunpack.c.l.b16 %v3370
      %v3668 = vunpack.c.h.b16 %v3370
      %v3669 = vunpack.c.l.b16 %v3371
      %v3670 = vunpack.c.h.b16 %v3371
      %v3671 = vunpack.c.l.b16 %v3372
      %v3672 = vunpack.c.h.b16 %v3372
      %v3673 = vunpack.c.l.b16 %v3373
      %v3674 = vunpack.c.h.b16 %v3373
      %v3675 = vunpack.c.l.b16 %v3374
      %v3676 = vunpack.c.h.b16 %v3374
      %v3677 = vunpack.c.l.b16 %v3375
      %v3678 = vunpack.c.h.b16 %v3375
      %v3679 = vunpack.c.l.b16 %v3376
      %v3680 = vunpack.c.h.b16 %v3376
      %v3681 = vunpack.c.l.b16 %v3377
      %v3682 = vunpack.c.h.b16 %v3377
      %v3683 = vunpack.c.l.b16 %v3378
      %v3684 = vunpack.c.h.b16 %v3378
      %v3685 = vunpack.c.l.b16 %v3379
      %v3686 = vunpack.c.h.b16 %v3379
      %v3687 = vunpack.c.l.b16 %v3380
      %v3688 = vunpack.c.h.b16 %v3380
      %v3689 = vunpack.c.l.b16 %v3381
      %v3690 = vunpack.c.h.b16 %v3381
      %v3691 = vunpack.c.l.b16 %v3382
      %v3692 = vunpack.c.h.b16 %v3382
      %v3693 = vunpack.c.l.b16 %v3383
      %v3694 = vunpack.c.h.b16 %v3383
      %v3695 = vunpack.c.l.b16 %v3384
      %v3696 = vunpack.c.h.b16 %v3384
      %v3697 = vunpack.c.l.b16 %v3385
      %v3698 = vunpack.c.h.b16 %v3385
      %v3699 = vunpack.c.l.b16 %v3386
      %v3700 = vunpack.c.h.b16 %v3386
      %v3701 = vunpack.c.l.b16 %v3387
      %v3702 = vunpack.c.h.b16 %v3387
      %v3703 = vunpack.c.l.b16 %v3388
      %v3704 = vunpack.c.h.b16 %v3388
      %v3705 = vunpack.c.l.b16 %v3389
      %v3706 = vunpack.c.h.b16 %v3389
      %v3707 = vunpack.c.l.b16 %v3390
      %v3708 = vunpack.c.h.b16 %v3390
      %v3709 = vunpack.c.l.b16 %v3391
      %v3710 = vunpack.c.h.b16 %v3391
      %v3711 = vunpack.c.l.b16 %v3392
      %v3712 = vunpack.c.h.b16 %v3392
      %v3713 = vunpack.c.l.b16 %v3393
      %v3714 = vunpack.c.h.b16 %v3393
      %v3715 = vunpack.c.l.b16 %v3394
      %v3716 = vunpack.c.h.b16 %v3394
      %v3717 = vunpack.c.l.b16 %v3395
      %v3718 = vunpack.c.h.b16 %v3395
      %v3719 = vunpack.c.l.b16 %v3396
      %v3720 = vunpack.c.h.b16 %v3396
      %v3721 = vpack.c.b16 %v3507, %v3505
      %v3722 = vpack.c.b16 %v3508, %v3506
      %v3723 = vpack.c.b16 %v3511, %v3509
      %v3724 = vpack.c.b16 %v3512, %v3510
      %v3725 = vpack.c.b16 %v3515, %v3513
      %v3726 = vpack.c.b16 %v3516, %v3514
      %v3727 = vpack.c.b16 %v3519, %v3517
      %v3728 = vpack.c.b16 %v3520, %v3518
      %v3729 = vpack.c.b16 %v3523, %v3521
      %v3730 = vpack.c.b16 %v3524, %v3522
      %v3731 = vpack.c.b16 %v3527, %v3525
      %v3732 = vpack.c.b16 %v3528, %v3526
      %v3733 = vpack.c.b16 %v3531, %v3529
      %v3734 = vpack.c.b16 %v3532, %v3530
      %v3735 = vpack.c.b16 %v3535, %v3533
      %v3736 = vpack.c.b16 %v3536, %v3534
      %v3737 = vpack.c.b16 %v3539, %v3537
      %v3738 = vpack.c.b16 %v3540, %v3538
      %v3739 = vpack.c.b16 %v3543, %v3541
      %v3740 = vpack.c.b16 %v3544, %v3542
      %v3741 = vpack.c.b16 %v3547, %v3545
      %v3742 = vpack.c.b16 %v3548, %v3546
      %v3743 = vpack.c.b16 %v3551, %v3549
      %v3744 = vpack.c.b16 %v3552, %v3550
      %v3745 = vpack.c.b16 %v3555, %v3553
      %v3746 = vpack.c.b16 %v3556, %v3554
      %v3747 = vpack.c.b16 %v3559, %v3557
      %v3748 = vpack.c.b16 %v3560, %v3558
      %v3749 = vpack.c.b16 %v3563, %v3561
      %v3750 = vpack.c.b16 %v3564, %v3562
      %v3751 = vpack.c.b16 %v3567, %v3565
      %v3752 = vpack.c.b16 %v3568, %v3566
      %v3753 = vpack.c.b16 %v3571, %v3569
      %v3754 = vpack.c.b16 %v3572, %v3570
      %v3755 = vpack.c.b16 %v3575, %v3573
      %v3756 = vpack.c.b16 %v3576, %v3574
      %v3757 = vpack.c.b16 %v3579, %v3577
      %v3758 = vpack.c.b16 %v3580, %v3578
      %v3759 = vpack.c.b16 %v3583, %v3581
      %v3760 = vpack.c.b16 %v3584, %v3582
      %v3761 = vpack.c.b16 %v3587, %v3585
      %v3762 = vpack.c.b16 %v3588, %v3586
      %v3763 = vpack.c.b16 %v3591, %v3589
      %v3764 = vpack.c.b16 %v3592, %v3590
      %v3765 = vpack.c.b16 %v3595, %v3593
      %v3766 = vpack.c.b16 %v3596, %v3594
      %v3767 = vpack.c.b16 %v3599, %v3597
      %v3768 = vpack.c.b16 %v3600, %v3598
      %v3769 = vpack.c.b16 %v3603, %v3601
      %v3770 = vpack.c.b16 %v3604, %v3602
      %v3771 = vpack.c.b16 %v3607, %v3605
      %v3772 = vpack.c.b16 %v3608, %v3606
      %v3773 = vpack.c.b16 %v3611, %v3609
      %v3774 = vpack.c.b16 %v3612, %v3610
      %v3775 = vpack.c.b16 %v3615, %v3613
      %v3776 = vpack.c.b16 %v3616, %v3614
      %v3777 = vpack.c.b16 %v3619, %v3617
      %v3778 = vpack.c.b16 %v3620, %v3618
      %v3779 = vpack.c.b16 %v3623, %v3621
      %v3780 = vpack.c.b16 %v3624, %v3622
      %v3781 = vpack.c.b16 %v3627, %v3625
      %v3782 = vpack.c.b16 %v3628, %v3626
      %v3783 = vpack.c.b16 %v3631, %v3629
      %v3784 = vpack.c.b16 %v3632, %v3630
      %v3785 = vpack.c.b16 %v3635, %v3633
      %v3786 = vpack.c.b16 %v3636, %v3634
      %v3787 = vpack.c.b16 %v3639, %v3637
      %v3788 = vpack.c.b16 %v3640, %v3638
      %v3789 = vpack.c.b16 %v3643, %v3641
      %v3790 = vpack.c.b16 %v3644, %v3642
      %v3791 = vpack.c.b16 %v3647, %v3645
      %v3792 = vpack.c.b16 %v3648, %v3646
      %v3793 = vpack.c.b16 %v3651, %v3649
      %v3794 = vpack.c.b16 %v3652, %v3650
      %v3795 = vpack.c.b16 %v3655, %v3653
      %v3796 = vpack.c.b16 %v3656, %v3654
      %v3797 = vpack.c.b16 %v3659, %v3657
      %v3798 = vpack.c.b16 %v3660, %v3658
      %v3799 = vpack.c.b16 %v3663, %v3661
      %v3800 = vpack.c.b16 %v3664, %v3662
      %v3801 = vpack.c.b16 %v3667, %v3665
      %v3802 = vpack.c.b16 %v3668, %v3666
      %v3803 = vpack.c.b16 %v3671, %v3669
      %v3804 = vpack.c.b16 %v3672, %v3670
      %v3805 = vpack.c.b16 %v3675, %v3673
      %v3806 = vpack.c.b16 %v3676, %v3674
      %v3807 = vpack.c.b16 %v3679, %v3677
      %v3808 = vpack.c.b16 %v3680, %v3678
      %v3809 = vpack.c.b16 %v3683, %v3681
      %v3810 = vpack.c.b16 %v3684, %v3682
      %v3811 = vpack.c.b16 %v3687, %v3685
      %v3812 = vpack.c.b16 %v3688, %v3686
      %v3813 = vpack.c.b16 %v3691, %v3689
      %v3814 = vpack.c.b16 %v3692, %v3690
      %v3815 = vpack.c.b16 %v3695, %v3693
      %v3816 = vpack.c.b16 %v3696, %v3694
      %v3817 = vpack.c.b16 %v3699, %v3697
      %v3818 = vpack.c.b16 %v3700, %v3698
      %v3819 = vpack.c.b16 %v3703, %v3701
      %v3820 = vpack.c.b16 %v3704, %v3702
      %v3821 = vpack.c.b16 %v3707, %v3705
      %v3822 = vpack.c.b16 %v3708, %v3706
      %v3823 = vpack.c.b16 %v3711, %v3709
      %v3824 = vpack.c.b16 %v3712, %v3710
      %v3825 = vpack.c.b16 %v3715, %v3713
      %v3826 = vpack.c.b16 %v3716, %v3714
      %v3827 = vpack.c.b16 %v3719, %v3717
      %v3828 = vpack.c.b16 %v3720, %v3718
      %vm3935 = vcmask 744448
      %v3937 = vsel %vm3935, %v3288, 0
      %vm3939 = vcmask 1044480
      %vm3940 = vcmask 1045504
      %v3941 = vsel %vm3939, 4294967295, 65535
      %v3942 = vsel %vm3940, %v3941, 0
      %v3944 = vand.u32 %v3827, %v3942
      %v3947 = vand.u32 %v3828, %v3942
      %3949 = vmatprep.subr.bf16.mxu0 %v3736
      %3950 = vmatpush1.bf16.msra.mxu0 %v3735
      %3951 = vmatprep.subr.bf16.mxu0 %v3734
      %3952 = vmatpush1.bf16.msra.mxu0 %v3733
      %3953 = vmatprep.subr.bf16.mxu0 %v3732
      %3954 = vmatpush1.bf16.msra.mxu0 %v3731
      %3955 = vmatprep.subr.bf16.mxu0 %v3730
      %3956 = vmatpush1.bf16.msra.mxu0 %v3729
      %3957 = vmatprep.subr.bf16.mxu0 %v3728
      %3958 = vmatpush1.bf16.msra.mxu0 %v3727
      %3959 = vmatprep.subr.bf16.mxu0 %v3726
      %3960 = vmatpush1.bf16.msra.mxu0 %v3725
      %3961 = vmatprep.subr.bf16.mxu0 %v3724
      %3962 = vmatpush1.bf16.msra.mxu0 %v3723
      %3963 = vmatprep.subr.bf16.mxu0 %v3722
      %3964 = vmatpush1.bf16.msra.mxu0 %v3721
      %3965 = vmatprep.subr.bf16.mxu0 %v3752
      %3966 = vmatpush2.bf16.msra.mxu0 %v3751
      %3967 = vmatprep.subr.bf16.mxu0 %v3750
      %3968 = vmatpush2.bf16.msra.mxu0 %v3749
      %3969 = vmatprep.subr.bf16.mxu0 %v3748
      %3970 = vmatpush2.bf16.msra.mxu0 %v3747
      %3971 = vmatprep.subr.bf16.mxu0 %v3746
      %3972 = vmatpush2.bf16.msra.mxu0 %v3745
      %3973 = vmatprep.subr.bf16.mxu0 %v3744
      %3974 = vmatpush2.bf16.msra.mxu0 %v3743
      %3975 = vmatprep.subr.bf16.mxu0 %v3742
      %3976 = vmatpush2.bf16.msra.mxu0 %v3741
      %3977 = vmatprep.subr.bf16.mxu0 %v3740
      %3978 = vmatpush2.bf16.msra.mxu0 %v3739
      %3979 = vmatprep.subr.bf16.mxu0 %v3738
      %3980 = vmatpush2.bf16.msra.mxu0 %v3737
      %3981 = vmatprep.mubr.bf16.mxu0 %v3283
      %3982 = vmatmul.mubr.bf16.gmra.mxu0 %v3282
      %v3983 = vpop.f32.mrf.mxu0
      %v3984 = vadd.f32 0.0, %v3983
      %v3985 = vpop.f32.mrf.mxu0
      %v3986 = vadd.f32 0.0, %v3985
      %v3987 = vpop.f32.mrf.mxu0
      %v3988 = vadd.f32 0.0, %v3987
      %v3989 = vpop.f32.mrf.mxu0
      %v3990 = vadd.f32 0.0, %v3989
      %3991 = vdwg.mxu0
      %3992 = vmatprep.subr.bf16.mxu0 %v3768
      %3993 = vmatpush1.bf16.msra.mxu0 %v3767
      %3994 = vmatprep.subr.bf16.mxu0 %v3766
      %3995 = vmatpush1.bf16.msra.mxu0 %v3765
      %3996 = vmatprep.subr.bf16.mxu0 %v3764
      %3997 = vmatpush1.bf16.msra.mxu0 %v3763
      %3998 = vmatprep.subr.bf16.mxu0 %v3762
      %3999 = vmatpush1.bf16.msra.mxu0 %v3761
      %4000 = vmatprep.subr.bf16.mxu0 %v3760
      %4001 = vmatpush1.bf16.msra.mxu0 %v3759
      %4002 = vmatprep.subr.bf16.mxu0 %v3758
      %4003 = vmatpush1.bf16.msra.mxu0 %v3757
      %4004 = vmatprep.subr.bf16.mxu0 %v3756
      %4005 = vmatpush1.bf16.msra.mxu0 %v3755
      %4006 = vmatprep.subr.bf16.mxu0 %v3754
      %4007 = vmatpush1.bf16.msra.mxu0 %v3753
      %4008 = vmatprep.subr.bf16.mxu0 %v3784
      %4009 = vmatpush2.bf16.msra.mxu0 %v3783
      %4010 = vmatprep.subr.bf16.mxu0 %v3782
      %4011 = vmatpush2.bf16.msra.mxu0 %v3781
      %4012 = vmatprep.subr.bf16.mxu0 %v3780
      %4013 = vmatpush2.bf16.msra.mxu0 %v3779
      %4014 = vmatprep.subr.bf16.mxu0 %v3778
      %4015 = vmatpush2.bf16.msra.mxu0 %v3777
      %4016 = vmatprep.subr.bf16.mxu0 %v3776
      %4017 = vmatpush2.bf16.msra.mxu0 %v3775
      %4018 = vmatprep.subr.bf16.mxu0 %v3774
      %4019 = vmatpush2.bf16.msra.mxu0 %v3773
      %4020 = vmatprep.subr.bf16.mxu0 %v3772
      %4021 = vmatpush2.bf16.msra.mxu0 %v3771
      %4022 = vmatprep.subr.bf16.mxu0 %v3770
      %4023 = vmatpush2.bf16.msra.mxu0 %v3769
      %4024 = vmatprep.mubr.bf16.mxu0 %v3285
      %4025 = vmatmul.mubr.bf16.gmra.mxu0 %v3284
      %v4026 = vpop.f32.mrf.mxu0
      %v4027 = vadd.f32 %v3984, %v4026
      %v4028 = vpop.f32.mrf.mxu0
      %v4029 = vadd.f32 %v3986, %v4028
      %v4030 = vpop.f32.mrf.mxu0
      %v4031 = vadd.f32 %v3988, %v4030
      %v4032 = vpop.f32.mrf.mxu0
      %v4033 = vadd.f32 %v3990, %v4032
      %4034 = vdwg.mxu0
      %4035 = vmatprep.subr.bf16.mxu0 %v3800
      %4036 = vmatpush1.bf16.msra.mxu0 %v3799
      %4037 = vmatprep.subr.bf16.mxu0 %v3798
      %4038 = vmatpush1.bf16.msra.mxu0 %v3797
      %4039 = vmatprep.subr.bf16.mxu0 %v3796
      %4040 = vmatpush1.bf16.msra.mxu0 %v3795
      %4041 = vmatprep.subr.bf16.mxu0 %v3794
      %4042 = vmatpush1.bf16.msra.mxu0 %v3793
      %4043 = vmatprep.subr.bf16.mxu0 %v3792
      %4044 = vmatpush1.bf16.msra.mxu0 %v3791
      %4045 = vmatprep.subr.bf16.mxu0 %v3790
      %4046 = vmatpush1.bf16.msra.mxu0 %v3789
      %4047 = vmatprep.subr.bf16.mxu0 %v3788
      %4048 = vmatpush1.bf16.msra.mxu0 %v3787
      %4049 = vmatprep.subr.bf16.mxu0 %v3786
      %4050 = vmatpush1.bf16.msra.mxu0 %v3785
      %4051 = vmatprep.subr.bf16.mxu0 %v3816
      %4052 = vmatpush2.bf16.msra.mxu0 %v3815
      %4053 = vmatprep.subr.bf16.mxu0 %v3814
      %4054 = vmatpush2.bf16.msra.mxu0 %v3813
      %4055 = vmatprep.subr.bf16.mxu0 %v3812
      %4056 = vmatpush2.bf16.msra.mxu0 %v3811
      %4057 = vmatprep.subr.bf16.mxu0 %v3810
      %4058 = vmatpush2.bf16.msra.mxu0 %v3809
      %4059 = vmatprep.subr.bf16.mxu0 %v3808
      %4060 = vmatpush2.bf16.msra.mxu0 %v3807
      %4061 = vmatprep.subr.bf16.mxu0 %v3806
      %4062 = vmatpush2.bf16.msra.mxu0 %v3805
      %4063 = vmatprep.subr.bf16.mxu0 %v3804
      %4064 = vmatpush2.bf16.msra.mxu0 %v3803
      %4065 = vmatprep.subr.bf16.mxu0 %v3802
      %4066 = vmatpush2.bf16.msra.mxu0 %v3801
      %4067 = vmatprep.mubr.bf16.mxu0 %v3287
      %4068 = vmatmul.mubr.bf16.gmra.mxu0 %v3286
      %v4069 = vpop.f32.mrf.mxu0
      %v4070 = vadd.f32 %v4027, %v4069
      %v4071 = vpop.f32.mrf.mxu0
      %v4072 = vadd.f32 %v4029, %v4071
      %v4073 = vpop.f32.mrf.mxu0
      %v4074 = vadd.f32 %v4031, %v4073
      %v4075 = vpop.f32.mrf.mxu0
      %v4076 = vadd.f32 %v4033, %v4075
      %4077 = vdwg.mxu0
      %4078 = vmatprep.subr.bf16.mxu0 0
      %4079 = vmatpush1.bf16.msra.mxu0 0
      %4080 = vmatprep.subr.bf16.mxu0 0
      %4081 = vmatpush1.bf16.msra.mxu0 0
      %4082 = vmatprep.subr.bf16.mxu0 %v3947
      %4083 = vmatpush1.bf16.msra.mxu0 %v3944
      %4084 = vmatprep.subr.bf16.mxu0 %v3826
      %4085 = vmatpush1.bf16.msra.mxu0 %v3825
      %4086 = vmatprep.subr.bf16.mxu0 %v3824
      %4087 = vmatpush1.bf16.msra.mxu0 %v3823
      %4088 = vmatprep.subr.bf16.mxu0 %v3822
      %4089 = vmatpush1.bf16.msra.mxu0 %v3821
      %4090 = vmatprep.subr.bf16.mxu0 %v3820
      %4091 = vmatpush1.bf16.msra.mxu0 %v3819
      %4092 = vmatprep.subr.bf16.mxu0 %v3818
      %4093 = vmatpush1.bf16.msra.mxu0 %v3817
      %4094 = vmatprep.subr.bf16.mxu0 0
      %4095 = vmatpush2.bf16.msra.mxu0 0
      %4096 = vmatprep.subr.bf16.mxu0 0
      %4097 = vmatpush2.bf16.msra.mxu0 0
      %4098 = vmatprep.subr.bf16.mxu0 0
      %4099 = vmatpush2.bf16.msra.mxu0 0
      %4100 = vmatprep.subr.bf16.mxu0 0
      %4101 = vmatpush2.bf16.msra.mxu0 0
      %4102 = vmatprep.subr.bf16.mxu0 0
      %4103 = vmatpush2.bf16.msra.mxu0 0
      %4104 = vmatprep.subr.bf16.mxu0 0
      %4105 = vmatpush2.bf16.msra.mxu0 0
      %4106 = vmatprep.subr.bf16.mxu0 0
      %4107 = vmatpush2.bf16.msra.mxu0 0
      %4108 = vmatprep.subr.bf16.mxu0 0
      %4109 = vmatpush2.bf16.msra.mxu0 0
      %4110 = vmatprep.mubr.bf16.mxu0 0
      %4111 = vmatmul.mubr.bf16.gmra.mxu0 %v3937
      %v4112 = vpop.f32.mrf.mxu0
      %v4113 = vadd.f32 %v4070, %v4112
      %v4114 = vpop.f32.mrf.mxu0
      %v4115 = vadd.f32 %v4072, %v4114
      %v4116 = vpop.f32.mrf.mxu0
      %v4117 = vadd.f32 %v4074, %v4116
      %v4118 = vpop.f32.mrf.mxu0
      %v4119 = vadd.f32 %v4076, %v4118
      %4120 = vdwg.mxu0
      %v4121 = vpack.c.bf16 %v4117, %v4113
      %v4122 = vpack.c.bf16 %v4119, %v4115
      %v4125 = vunpack.c.l.b16 %v4121
      %v4126 = vunpack.c.l.b16 %v4122
      %v4127 = vunpack.c.h.b16 %v4121
      %v4128 = vunpack.c.h.b16 %v4122
      %v4129 = vpack.c.b16 %v4126, %v4125
      %v4130 = vpack.c.b16 %v4128, %v4127
      %vm4133 = vcmask 1043456
      %vm4134 = vcmask 64516
      %vm4135 = vmor %vm4134, %vm4133
      %4136 = vst.msk [vmem:[#allocation2] sm:$0xff] %vm4135, %v4129
      %4137 = vst.msk [vmem:[#allocation2 + $0x1c] sm:$0xff] %vm4135, %v4130
      %4138 = vrot.lane.b32.xlu0 %v4129, 127
      %v4139 = vpop.permute.xlu0 %4138
      %4140 = vrot.lane.b32.xlu0 %v4130, 127
      %v4141 = vpop.permute.xlu0 %4140
      %v4142 = vrot.slane %v4139, 4
      %v4143 = vrot.slane %v4141, 4
      %v4144 = vsel %vm493, %v4139, %v4142
      %v4145 = vsel %vm493, %v4141, %v4143
      %4148 = vst.msk [vmem:[#allocation2 + $0x38] sm:$0xff] %vm4135, %v4144
      %4149 = vst.msk [vmem:[#allocation2 + $0x54] sm:$0xff] %vm4135, %v4145
      %4150 = vrot.lane.b32.xlu0 %v4129, 126
      %v4151 = vpop.permute.xlu0 %4150
      %4152 = vrot.lane.b32.xlu0 %v4130, 126
      %v4153 = vpop.permute.xlu0 %4152
      %v4154 = vrot.slane %v4151, 4
      %v4155 = vrot.slane %v4153, 4
      %v4156 = vsel %vm546, %v4151, %v4154
      %v4157 = vsel %vm546, %v4153, %v4155
      %4160 = vst.msk [vmem:[#allocation2 + $0x70] sm:$0xff] %vm4135, %v4156
      %4161 = vst.msk [vmem:[#allocation2 + $0x8c] sm:$0xff] %vm4135, %v4157
      %4162 = vrot.lane.b32.xlu0 %v4129, 125
      %v4163 = vpop.permute.xlu0 %4162
      %4164 = vrot.lane.b32.xlu0 %v4130, 125
      %v4165 = vpop.permute.xlu0 %4164
      %v4166 = vrot.slane %v4163, 4
      %v4167 = vrot.slane %v4165, 4
      %v4168 = vsel %vm599, %v4163, %v4166
      %v4169 = vsel %vm599, %v4165, %v4167
      %4172 = vst.msk [vmem:[#allocation2 + $0xa8] sm:$0xff] %vm4135, %v4168
      %4173 = vst.msk [vmem:[#allocation2 + $0xc4] sm:$0xff] %vm4135, %v4169
      %4174 = vrot.lane.b32.xlu0 %v4129, 124
      %v4175 = vpop.permute.xlu0 %4174
      %4176 = vrot.lane.b32.xlu0 %v4130, 124
      %v4177 = vpop.permute.xlu0 %4176
      %v4178 = vrot.slane %v4175, 4
      %v4179 = vrot.slane %v4177, 4
      %v4180 = vsel %vm652, %v4175, %v4178
      %v4181 = vsel %vm652, %v4177, %v4179
      %4184 = vst.msk [vmem:[#allocation2 + $0xe0] sm:$0xff] %vm4135, %v4180
      %4185 = vst.msk [vmem:[#allocation2 + $0xfc] sm:$0xff] %vm4135, %v4181
      %4186 = vrot.lane.b32.xlu0 %v4129, 114
      %v4187 = vpop.permute.xlu0 %4186
      %4188 = vrot.lane.b32.xlu0 %v4130, 114
      %v4189 = vpop.permute.xlu0 %4188
      %v4190 = vrot.slane %v4187, 4
      %v4191 = vrot.slane %v4189, 4
      %vm4192 = vcmask 932864
      %v4193 = vsel %vm4192, %v4187, %v4190
      %v4194 = vsel %vm4192, %v4189, %v4191
      %4197 = vst.msk [vmem:[#allocation2 + $0x118] sm:$0xff] %vm4135, %v4193
      %4198 = vst.msk [vmem:[#allocation2 + $0x134] sm:$0xff] %vm4135, %v4194
      %4199 = vrot.lane.b32.xlu0 %v4129, 113
      %v4200 = vpop.permute.xlu0 %4199
      %4201 = vrot.lane.b32.xlu0 %v4130, 113
      %v4202 = vpop.permute.xlu0 %4201
      %v4203 = vrot.slane %v4200, 4
      %v4204 = vrot.slane %v4202, 4
      %vm4205 = vcmask 924672
      %v4206 = vsel %vm4205, %v4200, %v4203
      %v4207 = vsel %vm4205, %v4202, %v4204
      %4210 = vst.msk [vmem:[#allocation2 + $0x150] sm:$0xff] %vm4135, %v4206
      %4211 = vst.msk [vmem:[#allocation2 + $0x16c] sm:$0xff] %vm4135, %v4207
      %4212 = vrot.lane.b32.xlu0 %v4129, 112
      %v4213 = vpop.permute.xlu0 %4212
      %4214 = vrot.lane.b32.xlu0 %v4130, 112
      %v4215 = vpop.permute.xlu0 %4214
      %v4216 = vrot.slane %v4213, 4
      %v4217 = vrot.slane %v4215, 4
      %vm4218 = vcmask 916480
      %v4219 = vsel %vm4218, %v4213, %v4216
      %v4220 = vsel %vm4218, %v4215, %v4217
      %4223 = vst.msk [vmem:[#allocation2 + $0x188] sm:$0xff] %vm4135, %v4219
      %4224 = vst.msk [vmem:[#allocation2 + $0x1a4] sm:$0xff] %vm4135, %v4220
      %4225 = vrot.lane.b32.xlu0 %v4129, 111
      %v4226 = vpop.permute.xlu0 %4225
      %4227 = vrot.lane.b32.xlu0 %v4130, 111
      %v4228 = vpop.permute.xlu0 %4227
      %v4229 = vrot.slane %v4226, 4
      %v4230 = vrot.slane %v4228, 4
      %vm4231 = vcmask 908288
      %v4232 = vsel %vm4231, %v4226, %v4229
      %v4233 = vsel %vm4231, %v4228, %v4230
      %4236 = vst.msk [vmem:[#allocation2 + $0x1c0] sm:$0xff] %vm4135, %v4232
      %4237 = vst.msk [vmem:[#allocation2 + $0x1dc] sm:$0xff] %vm4135, %v4233
      %4238 = vrot.lane.b32.xlu0 %v4129, 110
      %v4239 = vpop.permute.xlu0 %4238
      %4240 = vrot.lane.b32.xlu0 %v4130, 110
      %v4241 = vpop.permute.xlu0 %4240
      %v4242 = vrot.slane %v4239, 4
      %v4243 = vrot.slane %v4241, 4
      %vm4244 = vcmask 900096
      %v4245 = vsel %vm4244, %v4239, %v4242
      %v4246 = vsel %vm4244, %v4241, %v4243
      %4249 = vst.msk [vmem:[#allocation2 + $0x1f8] sm:$0xff] %vm4135, %v4245
      %4250 = vst.msk [vmem:[#allocation2 + $0x214] sm:$0xff] %vm4135, %v4246
      %4251 = vrot.lane.b32.xlu0 %v4129, 100
      %v4252 = vpop.permute.xlu0 %4251
      %4253 = vrot.lane.b32.xlu0 %v4130, 100
      %v4254 = vpop.permute.xlu0 %4253
      %v4255 = vrot.slane %v4252, 4
      %v4256 = vrot.slane %v4254, 4
      %vm4257 = vcmask 818176
      %v4258 = vsel %vm4257, %v4252, %v4255
      %v4259 = vsel %vm4257, %v4254, %v4256
      %4262 = vst.msk [vmem:[#allocation2 + $0x230] sm:$0xff] %vm4135, %v4258
      %4263 = vst.msk [vmem:[#allocation2 + $0x24c] sm:$0xff] %vm4135, %v4259
      %4264 = vrot.lane.b32.xlu0 %v4129, 99
      %v4265 = vpop.permute.xlu0 %4264
      %4266 = vrot.lane.b32.xlu0 %v4130, 99
      %v4267 = vpop.permute.xlu0 %4266
      %v4268 = vrot.slane %v4265, 4
      %v4269 = vrot.slane %v4267, 4
      %vm4270 = vcmask 809984
      %v4271 = vsel %vm4270, %v4265, %v4268
      %v4272 = vsel %vm4270, %v4267, %v4269
      %4275 = vst.msk [vmem:[#allocation2 + $0x268] sm:$0xff] %vm4135, %v4271
      %4276 = vst.msk [vmem:[#allocation2 + $0x284] sm:$0xff] %vm4135, %v4272
      %4277 = vrot.lane.b32.xlu0 %v4129, 98
      %v4278 = vpop.permute.xlu0 %4277
      %4279 = vrot.lane.b32.xlu0 %v4130, 98
      %v4280 = vpop.permute.xlu0 %4279
      %v4281 = vrot.slane %v4278, 4
      %v4282 = vrot.slane %v4280, 4
      %vm4283 = vcmask 801792
      %v4284 = vsel %vm4283, %v4278, %v4281
      %v4285 = vsel %vm4283, %v4280, %v4282
      %4288 = vst.msk [vmem:[#allocation2 + $0x2a0] sm:$0xff] %vm4135, %v4284
      %4289 = vst.msk [vmem:[#allocation2 + $0x2bc] sm:$0xff] %vm4135, %v4285
      %4290 = vrot.lane.b32.xlu0 %v4129, 97
      %v4291 = vpop.permute.xlu0 %4290
      %4292 = vrot.lane.b32.xlu0 %v4130, 97
      %v4293 = vpop.permute.xlu0 %4292
      %v4294 = vrot.slane %v4291, 4
      %v4295 = vrot.slane %v4293, 4
      %vm4296 = vcmask 793600
      %v4297 = vsel %vm4296, %v4291, %v4294
      %v4298 = vsel %vm4296, %v4293, %v4295
      %4301 = vst.msk [vmem:[#allocation2 + $0x2d8] sm:$0xff] %vm4135, %v4297
      %4302 = vst.msk [vmem:[#allocation2 + $0x2f4] sm:$0xff] %vm4135, %v4298
      %4303 = vrot.lane.b32.xlu0 %v4129, 96
      %v4304 = vpop.permute.xlu0 %4303
      %4305 = vrot.lane.b32.xlu0 %v4130, 96
      %v4306 = vpop.permute.xlu0 %4305
      %v4307 = vrot.slane %v4304, 4
      %v4308 = vrot.slane %v4306, 4
      %v4309 = vsel %vm705, %v4304, %v4307
      %v4310 = vsel %vm705, %v4306, %v4308
      %4313 = vst.msk [vmem:[#allocation2 + $0x310] sm:$0xff] %vm4135, %v4309
      %4314 = vst.msk [vmem:[#allocation2 + $0x32c] sm:$0xff] %vm4135, %v4310
      %4315 = vrot.lane.b32.xlu0 %v4129, 86
      %v4316 = vpop.permute.xlu0 %4315
      %4317 = vrot.lane.b32.xlu0 %v4130, 86
      %v4318 = vpop.permute.xlu0 %4317
      %v4319 = vrot.slane %v4316, 4
      %v4320 = vrot.slane %v4318, 4
      %vm4321 = vcmask 703488
      %v4322 = vsel %vm4321, %v4316, %v4319
      %v4323 = vsel %vm4321, %v4318, %v4320
      %4326 = vst.msk [vmem:[#allocation2 + $0x348] sm:$0xff] %vm4135, %v4322
      %4327 = vst.msk [vmem:[#allocation2 + $0x364] sm:$0xff] %vm4135, %v4323
      %4328 = vrot.lane.b32.xlu0 %v4129, 85
      %v4329 = vpop.permute.xlu0 %4328
      %4330 = vrot.lane.b32.xlu0 %v4130, 85
      %v4331 = vpop.permute.xlu0 %4330
      %v4332 = vrot.slane %v4329, 4
      %v4333 = vrot.slane %v4331, 4
      %vm4334 = vcmask 695296
      %v4335 = vsel %vm4334, %v4329, %v4332
      %v4336 = vsel %vm4334, %v4331, %v4333
      %4339 = vst.msk [vmem:[#allocation2 + $0x380] sm:$0xff] %vm4135, %v4335
      %4340 = vst.msk [vmem:[#allocation2 + $0x39c] sm:$0xff] %vm4135, %v4336
      %4341 = vrot.lane.b32.xlu0 %v4129, 84
      %v4342 = vpop.permute.xlu0 %4341
      %4343 = vrot.lane.b32.xlu0 %v4130, 84
      %v4344 = vpop.permute.xlu0 %4343
      %v4345 = vrot.slane %v4342, 4
      %v4346 = vrot.slane %v4344, 4
      %vm4347 = vcmask 687104
      %v4348 = vsel %vm4347, %v4342, %v4345
      %v4349 = vsel %vm4347, %v4344, %v4346
      %4352 = vst.msk [vmem:[#allocation2 + $0x3b8] sm:$0xff] %vm4135, %v4348
      %4353 = vst.msk [vmem:[#allocation2 + $0x3d4] sm:$0xff] %vm4135, %v4349
      %4354 = vrot.lane.b32.xlu0 %v4129, 83
      %v4355 = vpop.permute.xlu0 %4354
      %4356 = vrot.lane.b32.xlu0 %v4130, 83
      %v4357 = vpop.permute.xlu0 %4356
      %v4358 = vrot.slane %v4355, 4
      %v4359 = vrot.slane %v4357, 4
      %vm4360 = vcmask 678912
      %v4361 = vsel %vm4360, %v4355, %v4358
      %v4362 = vsel %vm4360, %v4357, %v4359
      %4365 = vst.msk [vmem:[#allocation2 + $0x3f0] sm:$0xff] %vm4135, %v4361
      %4366 = vst.msk [vmem:[#allocation2 + $0x40c] sm:$0xff] %vm4135, %v4362
      %4367 = vrot.lane.b32.xlu0 %v4129, 82
      %v4368 = vpop.permute.xlu0 %4367
      %4369 = vrot.lane.b32.xlu0 %v4130, 82
      %v4370 = vpop.permute.xlu0 %4369
      %v4371 = vrot.slane %v4368, 4
      %v4372 = vrot.slane %v4370, 4
      %vm4373 = vcmask 670720
      %v4374 = vsel %vm4373, %v4368, %v4371
      %v4375 = vsel %vm4373, %v4370, %v4372
      %4378 = vst.msk [vmem:[#allocation2 + $0x428] sm:$0xff] %vm4135, %v4374
      %4379 = vst.msk [vmem:[#allocation2 + $0x444] sm:$0xff] %vm4135, %v4375
      %4380 = vrot.lane.b32.xlu0 %v4129, 72
      %v4381 = vpop.permute.xlu0 %4380
      %4382 = vrot.lane.b32.xlu0 %v4130, 72
      %v4383 = vpop.permute.xlu0 %4382
      %v4384 = vrot.slane %v4381, 4
      %v4385 = vrot.slane %v4383, 4
      %vm4386 = vcmask 588800
      %v4387 = vsel %vm4386, %v4381, %v4384
      %v4388 = vsel %vm4386, %v4383, %v4385
      %4391 = vst.msk [vmem:[#allocation2 + $0x460] sm:$0xff] %vm4135, %v4387
      %4392 = vst.msk [vmem:[#allocation2 + $0x47c] sm:$0xff] %vm4135, %v4388
      %4393 = vrot.lane.b32.xlu0 %v4129, 71
      %v4394 = vpop.permute.xlu0 %4393
      %4395 = vrot.lane.b32.xlu0 %v4130, 71
      %v4396 = vpop.permute.xlu0 %4395
      %v4397 = vrot.slane %v4394, 4
      %v4398 = vrot.slane %v4396, 4
      %vm4399 = vcmask 580608
      %v4400 = vsel %vm4399, %v4394, %v4397
      %v4401 = vsel %vm4399, %v4396, %v4398
      %4404 = vst.msk [vmem:[#allocation2 + $0x498] sm:$0xff] %vm4135, %v4400
      %4405 = vst.msk [vmem:[#allocation2 + $0x4b4] sm:$0xff] %vm4135, %v4401
      %4406 = vrot.lane.b32.xlu0 %v4129, 70
      %v4407 = vpop.permute.xlu0 %4406
      %4408 = vrot.lane.b32.xlu0 %v4130, 70
      %v4409 = vpop.permute.xlu0 %4408
      %v4410 = vrot.slane %v4407, 4
      %v4411 = vrot.slane %v4409, 4
      %vm4412 = vcmask 572416
      %v4413 = vsel %vm4412, %v4407, %v4410
      %v4414 = vsel %vm4412, %v4409, %v4411
      %4417 = vst.msk [vmem:[#allocation2 + $0x4d0] sm:$0xff] %vm4135, %v4413
      %4418 = vst.msk [vmem:[#allocation2 + $0x4ec] sm:$0xff] %vm4135, %v4414
      %4419 = vrot.lane.b32.xlu0 %v4129, 69
      %v4420 = vpop.permute.xlu0 %4419
      %4421 = vrot.lane.b32.xlu0 %v4130, 69
      %v4422 = vpop.permute.xlu0 %4421
      %v4423 = vrot.slane %v4420, 4
      %v4424 = vrot.slane %v4422, 4
      %vm4425 = vcmask 564224
      %v4426 = vsel %vm4425, %v4420, %v4423
      %v4427 = vsel %vm4425, %v4422, %v4424
      %4430 = vst.msk [vmem:[#allocation2 + $0x508] sm:$0xff] %vm4135, %v4426
      %4431 = vst.msk [vmem:[#allocation2 + $0x524] sm:$0xff] %vm4135, %v4427
      %4432 = vrot.lane.b32.xlu0 %v4129, 68
      %v4433 = vpop.permute.xlu0 %4432
      %4434 = vrot.lane.b32.xlu0 %v4130, 68
      %v4435 = vpop.permute.xlu0 %4434
      %v4436 = vrot.slane %v4433, 4
      %v4437 = vrot.slane %v4435, 4
      %vm4438 = vcmask 556032
      %v4439 = vsel %vm4438, %v4433, %v4436
      %v4440 = vsel %vm4438, %v4435, %v4437
      %4443 = vst.msk [vmem:[#allocation2 + $0x540] sm:$0xff] %vm4135, %v4439
      %4444 = vst.msk [vmem:[#allocation2 + $0x55c] sm:$0xff] %vm4135, %v4440
      %v4445 = vld [vmem:[%s4] sm:$0xff]
      %v4446 = vld [vmem:[%s4 + $0x8] sm:$0xff]
      %v4447 = vld [vmem:[%s4 + $0x10] sm:$0xff]
      %v4448 = vld [vmem:[%s4 + $0x18] sm:$0xff]
      %v4449 = vld [vmem:[#allocation2] sm:$0xff]
      %v4450 = vld [vmem:[#allocation2 + $0x1c] sm:$0xff]
      %v4451 = vld [vmem:[#allocation2 + $0x38] sm:$0xff]
      %v4452 = vld [vmem:[#allocation2 + $0x54] sm:$0xff]
      %v4453 = vld [vmem:[#allocation2 + $0x70] sm:$0xff]
      %v4454 = vld [vmem:[#allocation2 + $0x8c] sm:$0xff]
      %v4455 = vld [vmem:[#allocation2 + $0xa8] sm:$0xff]
      %v4456 = vld [vmem:[#allocation2 + $0xc4] sm:$0xff]
      %v4457 = vld [vmem:[#allocation2 + $0xe0] sm:$0xff]
      %v4458 = vld [vmem:[#allocation2 + $0xfc] sm:$0xff]
      %v4459 = vld [vmem:[#allocation2 + $0x118] sm:$0xff]
      %v4460 = vld [vmem:[#allocation2 + $0x134] sm:$0xff]
      %v4461 = vld [vmem:[#allocation2 + $0x150] sm:$0xff]
      %v4462 = vld [vmem:[#allocation2 + $0x16c] sm:$0xff]
      %v4463 = vld [vmem:[#allocation2 + $0x188] sm:$0xff]
      %v4464 = vld [vmem:[#allocation2 + $0x1a4] sm:$0xff]
      %v4465 = vld [vmem:[#allocation2 + $0x1c0] sm:$0xff]
      %v4466 = vld [vmem:[#allocation2 + $0x1dc] sm:$0xff]
      %v4467 = vld [vmem:[#allocation2 + $0x1f8] sm:$0xff]
      %v4468 = vld [vmem:[#allocation2 + $0x214] sm:$0xff]
      %v4469 = vld [vmem:[#allocation2 + $0x230] sm:$0xff]
      %v4470 = vld [vmem:[#allocation2 + $0x24c] sm:$0xff]
      %v4471 = vld [vmem:[#allocation2 + $0x268] sm:$0xff]
      %v4472 = vld [vmem:[#allocation2 + $0x284] sm:$0xff]
      %v4473 = vld [vmem:[#allocation2 + $0x2a0] sm:$0xff]
      %v4474 = vld [vmem:[#allocation2 + $0x2bc] sm:$0xff]
      %v4475 = vld [vmem:[#allocation2 + $0x2d8] sm:$0xff]
      %v4476 = vld [vmem:[#allocation2 + $0x2f4] sm:$0xff]
      %v4477 = vld [vmem:[#allocation2 + $0x310] sm:$0xff]
      %v4478 = vld [vmem:[#allocation2 + $0x32c] sm:$0xff]
      %v4479 = vld [vmem:[#allocation2 + $0x348] sm:$0xff]
      %v4480 = vld [vmem:[#allocation2 + $0x364] sm:$0xff]
      %v4481 = vld [vmem:[#allocation2 + $0x380] sm:$0xff]
      %v4482 = vld [vmem:[#allocation2 + $0x39c] sm:$0xff]
      %v4483 = vld [vmem:[#allocation2 + $0x3b8] sm:$0xff]
      %v4484 = vld [vmem:[#allocation2 + $0x3d4] sm:$0xff]
      %v4485 = vld [vmem:[#allocation2 + $0x3f0] sm:$0xff]
      %v4486 = vld [vmem:[#allocation2 + $0x40c] sm:$0xff]
      %v4487 = vld [vmem:[#allocation2 + $0x428] sm:$0xff]
      %v4488 = vld [vmem:[#allocation2 + $0x444] sm:$0xff]
      %v4489 = vld [vmem:[#allocation2 + $0x460] sm:$0xff]
      %v4490 = vld [vmem:[#allocation2 + $0x47c] sm:$0xff]
      %v4491 = vld [vmem:[#allocation2 + $0x498] sm:$0xff]
      %v4492 = vld [vmem:[#allocation2 + $0x4b4] sm:$0xff]
      %v4493 = vld [vmem:[#allocation2 + $0x4d0] sm:$0xff]
      %v4494 = vld [vmem:[#allocation2 + $0x4ec] sm:$0xff]
      %v4495 = vld [vmem:[#allocation2 + $0x508] sm:$0xff]
      %v4496 = vld [vmem:[#allocation2 + $0x524] sm:$0xff]
      %v4497 = vld [vmem:[#allocation2 + $0x540] sm:$0xff]
      %v4498 = vld [vmem:[#allocation2 + $0x55c] sm:$0xff]
      %v4499 = vld [vmem:[%s5] sm:$0xff]
      %v4500 = vld [vmem:[%s5 + $0x8] sm:$0xff]
      %4502 = vset.pattern.permute.xlu0 0
      %4503 = vperm.xlu0 %4502, %v4499
      %v4504 = vpop.permute.xlu0 %4503
      %4507 = vset.pattern.permute.xlu0 0
      %4508 = vperm.xlu0 %4507, %v4500
      %v4509 = vpop.permute.xlu0 %4508
      %v4515 = vunpack.c.l.b16 %v4445
      %v4516 = vunpack.c.h.b16 %v4445
      %v4517 = vunpack.c.l.b16 %v4446
      %v4518 = vunpack.c.h.b16 %v4446
      %v4519 = vunpack.c.l.b16 %v4447
      %v4520 = vunpack.c.h.b16 %v4447
      %v4521 = vunpack.c.l.b16 %v4448
      %v4522 = vunpack.c.h.b16 %v4448
      %v4523 = vpack.c.b16 %v4519, %v4515
      %v4524 = vpack.c.b16 %v4520, %v4516
      %v4525 = vpack.c.b16 %v4521, %v4517
      %v4526 = vpack.c.b16 %v4522, %v4518
      %v4580 = vunpack.c.l.b16 %v4449
      %v4581 = vunpack.c.h.b16 %v4449
      %v4582 = vunpack.c.l.b16 %v4450
      %v4583 = vunpack.c.h.b16 %v4450
      %v4584 = vunpack.c.l.b16 %v4451
      %v4585 = vunpack.c.h.b16 %v4451
      %v4586 = vunpack.c.l.b16 %v4452
      %v4587 = vunpack.c.h.b16 %v4452
      %v4588 = vunpack.c.l.b16 %v4453
      %v4589 = vunpack.c.h.b16 %v4453
      %v4590 = vunpack.c.l.b16 %v4454
      %v4591 = vunpack.c.h.b16 %v4454
      %v4592 = vunpack.c.l.b16 %v4455
      %v4593 = vunpack.c.h.b16 %v4455
      %v4594 = vunpack.c.l.b16 %v4456
      %v4595 = vunpack.c.h.b16 %v4456
      %v4596 = vunpack.c.l.b16 %v4457
      %v4597 = vunpack.c.h.b16 %v4457
      %v4598 = vunpack.c.l.b16 %v4458
      %v4599 = vunpack.c.h.b16 %v4458
      %v4600 = vunpack.c.l.b16 %v4459
      %v4601 = vunpack.c.h.b16 %v4459
      %v4602 = vunpack.c.l.b16 %v4460
      %v4603 = vunpack.c.h.b16 %v4460
      %v4604 = vunpack.c.l.b16 %v4461
      %v4605 = vunpack.c.h.b16 %v4461
      %v4606 = vunpack.c.l.b16 %v4462
      %v4607 = vunpack.c.h.b16 %v4462
      %v4608 = vunpack.c.l.b16 %v4463
      %v4609 = vunpack.c.h.b16 %v4463
      %v4610 = vunpack.c.l.b16 %v4464
      %v4611 = vunpack.c.h.b16 %v4464
      %v4612 = vunpack.c.l.b16 %v4465
      %v4613 = vunpack.c.h.b16 %v4465
      %v4614 = vunpack.c.l.b16 %v4466
      %v4615 = vunpack.c.h.b16 %v4466
      %v4616 = vunpack.c.l.b16 %v4467
      %v4617 = vunpack.c.h.b16 %v4467
      %v4618 = vunpack.c.l.b16 %v4468
      %v4619 = vunpack.c.h.b16 %v4468
      %v4620 = vunpack.c.l.b16 %v4469
      %v4621 = vunpack.c.h.b16 %v4469
      %v4622 = vunpack.c.l.b16 %v4470
      %v4623 = vunpack.c.h.b16 %v4470
      %v4624 = vunpack.c.l.b16 %v4471
      %v4625 = vunpack.c.h.b16 %v4471
      %v4626 = vunpack.c.l.b16 %v4472
      %v4627 = vunpack.c.h.b16 %v4472
      %v4628 = vunpack.c.l.b16 %v4473
      %v4629 = vunpack.c.h.b16 %v4473
      %v4630 = vunpack.c.l.b16 %v4474
      %v4631 = vunpack.c.h.b16 %v4474
      %v4632 = vunpack.c.l.b16 %v4475
      %v4633 = vunpack.c.h.b16 %v4475
      %v4634 = vunpack.c.l.b16 %v4476
      %v4635 = vunpack.c.h.b16 %v4476
      %v4636 = vunpack.c.l.b16 %v4477
      %v4637 = vunpack.c.h.b16 %v4477
      %v4638 = vunpack.c.l.b16 %v4478
      %v4639 = vunpack.c.h.b16 %v4478
      %v4640 = vunpack.c.l.b16 %v4479
      %v4641 = vunpack.c.h.b16 %v4479
      %v4642 = vunpack.c.l.b16 %v4480
      %v4643 = vunpack.c.h.b16 %v4480
      %v4644 = vunpack.c.l.b16 %v4481
      %v4645 = vunpack.c.h.b16 %v4481
      %v4646 = vunpack.c.l.b16 %v4482
      %v4647 = vunpack.c.h.b16 %v4482
      %v4648 = vunpack.c.l.b16 %v4483
      %v4649 = vunpack.c.h.b16 %v4483
      %v4650 = vunpack.c.l.b16 %v4484
      %v4651 = vunpack.c.h.b16 %v4484
      %v4652 = vunpack.c.l.b16 %v4485
      %v4653 = vunpack.c.h.b16 %v4485
      %v4654 = vunpack.c.l.b16 %v4486
      %v4655 = vunpack.c.h.b16 %v4486
      %v4656 = vunpack.c.l.b16 %v4487
      %v4657 = vunpack.c.h.b16 %v4487
      %v4658 = vunpack.c.l.b16 %v4488
      %v4659 = vunpack.c.h.b16 %v4488
      %v4660 = vunpack.c.l.b16 %v4489
      %v4661 = vunpack.c.h.b16 %v4489
      %v4662 = vunpack.c.l.b16 %v4490
      %v4663 = vunpack.c.h.b16 %v4490
      %v4664 = vunpack.c.l.b16 %v4491
      %v4665 = vunpack.c.h.b16 %v4491
      %v4666 = vunpack.c.l.b16 %v4492
      %v4667 = vunpack.c.h.b16 %v4492
      %v4668 = vunpack.c.l.b16 %v4493
      %v4669 = vunpack.c.h.b16 %v4493
      %v4670 = vunpack.c.l.b16 %v4494
      %v4671 = vunpack.c.h.b16 %v4494
      %v4672 = vunpack.c.l.b16 %v4495
      %v4673 = vunpack.c.h.b16 %v4495
      %v4674 = vunpack.c.l.b16 %v4496
      %v4675 = vunpack.c.h.b16 %v4496
      %v4676 = vunpack.c.l.b16 %v4497
      %v4677 = vunpack.c.h.b16 %v4497
      %v4678 = vunpack.c.l.b16 %v4498
      %v4679 = vunpack.c.h.b16 %v4498
      %v4680 = vpack.c.b16 %v4582, %v4580
      %v4681 = vpack.c.b16 %v4583, %v4581
      %v4682 = vpack.c.b16 %v4586, %v4584
      %v4683 = vpack.c.b16 %v4587, %v4585
      %v4684 = vpack.c.b16 %v4590, %v4588
      %v4685 = vpack.c.b16 %v4591, %v4589
      %v4686 = vpack.c.b16 %v4594, %v4592
      %v4687 = vpack.c.b16 %v4595, %v4593
      %v4688 = vpack.c.b16 %v4598, %v4596
      %v4689 = vpack.c.b16 %v4599, %v4597
      %v4690 = vpack.c.b16 %v4602, %v4600
      %v4691 = vpack.c.b16 %v4603, %v4601
      %v4692 = vpack.c.b16 %v4606, %v4604
      %v4693 = vpack.c.b16 %v4607, %v4605
      %v4694 = vpack.c.b16 %v4610, %v4608
      %v4695 = vpack.c.b16 %v4611, %v4609
      %v4696 = vpack.c.b16 %v4614, %v4612
      %v4697 = vpack.c.b16 %v4615, %v4613
      %v4698 = vpack.c.b16 %v4618, %v4616
      %v4699 = vpack.c.b16 %v4619, %v4617
      %v4700 = vpack.c.b16 %v4622, %v4620
      %v4701 = vpack.c.b16 %v4623, %v4621
      %v4702 = vpack.c.b16 %v4626, %v4624
      %v4703 = vpack.c.b16 %v4627, %v4625
      %v4704 = vpack.c.b16 %v4630, %v4628
      %v4705 = vpack.c.b16 %v4631, %v4629
      %v4706 = vpack.c.b16 %v4634, %v4632
      %v4707 = vpack.c.b16 %v4635, %v4633
      %v4708 = vpack.c.b16 %v4638, %v4636
      %v4709 = vpack.c.b16 %v4639, %v4637
      %v4710 = vpack.c.b16 %v4642, %v4640
      %v4711 = vpack.c.b16 %v4643, %v4641
      %v4712 = vpack.c.b16 %v4646, %v4644
      %v4713 = vpack.c.b16 %v4647, %v4645
      %v4714 = vpack.c.b16 %v4650, %v4648
      %v4715 = vpack.c.b16 %v4651, %v4649
      %v4716 = vpack.c.b16 %v4654, %v4652
      %v4717 = vpack.c.b16 %v4655, %v4653
      %v4718 = vpack.c.b16 %v4658, %v4656
      %v4719 = vpack.c.b16 %v4659, %v4657
      %v4720 = vpack.c.b16 %v4662, %v4660
      %v4721 = vpack.c.b16 %v4663, %v4661
      %v4722 = vpack.c.b16 %v4666, %v4664
      %v4723 = vpack.c.b16 %v4667, %v4665
      %v4724 = vpack.c.b16 %v4670, %v4668
      %v4725 = vpack.c.b16 %v4671, %v4669
      %v4726 = vpack.c.b16 %v4674, %v4672
      %v4727 = vpack.c.b16 %v4675, %v4673
      %v4728 = vpack.c.b16 %v4678, %v4676
      %v4729 = vpack.c.b16 %v4679, %v4677
      %v4781 = vsel %vm2758, %v4526, 0
      %4783 = vmatprep.subr.bf16.mxu0 %v4695
      %4784 = vmatpush1.bf16.msra.mxu0 %v4694
      %4785 = vmatprep.subr.bf16.mxu0 %v4693
      %4786 = vmatpush1.bf16.msra.mxu0 %v4692
      %4787 = vmatprep.subr.bf16.mxu0 %v4691
      %4788 = vmatpush1.bf16.msra.mxu0 %v4690
      %4789 = vmatprep.subr.bf16.mxu0 %v4689
      %4790 = vmatpush1.bf16.msra.mxu0 %v4688
      %4791 = vmatprep.subr.bf16.mxu0 %v4687
      %4792 = vmatpush1.bf16.msra.mxu0 %v4686
      %4793 = vmatprep.subr.bf16.mxu0 %v4685
      %4794 = vmatpush1.bf16.msra.mxu0 %v4684
      %4795 = vmatprep.subr.bf16.mxu0 %v4683
      %4796 = vmatpush1.bf16.msra.mxu0 %v4682
      %4797 = vmatprep.subr.bf16.mxu0 %v4681
      %4798 = vmatpush1.bf16.msra.mxu0 %v4680
      %4799 = vmatprep.subr.bf16.mxu0 %v4711
      %4800 = vmatpush2.bf16.msra.mxu0 %v4710
      %4801 = vmatprep.subr.bf16.mxu0 %v4709
      %4802 = vmatpush2.bf16.msra.mxu0 %v4708
      %4803 = vmatprep.subr.bf16.mxu0 %v4707
      %4804 = vmatpush2.bf16.msra.mxu0 %v4706
      %4805 = vmatprep.subr.bf16.mxu0 %v4705
      %4806 = vmatpush2.bf16.msra.mxu0 %v4704
      %4807 = vmatprep.subr.bf16.mxu0 %v4703
      %4808 = vmatpush2.bf16.msra.mxu0 %v4702
      %4809 = vmatprep.subr.bf16.mxu0 %v4701
      %4810 = vmatpush2.bf16.msra.mxu0 %v4700
      %4811 = vmatprep.subr.bf16.mxu0 %v4699
      %4812 = vmatpush2.bf16.msra.mxu0 %v4698
      %4813 = vmatprep.subr.bf16.mxu0 %v4697
      %4814 = vmatpush2.bf16.msra.mxu0 %v4696
      %4815 = vmatprep.mubr.bf16.mxu0 %v4524
      %4816 = vmatmul.mubr.bf16.gmra.mxu0 %v4523
      %v4817 = vpop.f32.mrf.mxu0
      %v4818 = vadd.f32 %v4504, %v4817
      %v4819 = vpop.f32.mrf.mxu0
      %v4820 = vadd.f32 %v4504, %v4819
      %v4821 = vpop.f32.mrf.mxu0
      %v4822 = vadd.f32 %v4509, %v4821
      %v4823 = vpop.f32.mrf.mxu0
      %v4824 = vadd.f32 %v4509, %v4823
      %4825 = vdwg.mxu0
      %4826 = vmatprep.subr.bf16.mxu0 %v4727
      %4827 = vmatpush1.bf16.msra.mxu0 %v4726
      %4828 = vmatprep.subr.bf16.mxu0 %v4725
      %4829 = vmatpush1.bf16.msra.mxu0 %v4724
      %4830 = vmatprep.subr.bf16.mxu0 %v4723
      %4831 = vmatpush1.bf16.msra.mxu0 %v4722
      %4832 = vmatprep.subr.bf16.mxu0 %v4721
      %4833 = vmatpush1.bf16.msra.mxu0 %v4720
      %4834 = vmatprep.subr.bf16.mxu0 %v4719
      %4835 = vmatpush1.bf16.msra.mxu0 %v4718
      %4836 = vmatprep.subr.bf16.mxu0 %v4717
      %4837 = vmatpush1.bf16.msra.mxu0 %v4716
      %4838 = vmatprep.subr.bf16.mxu0 %v4715
      %4839 = vmatpush1.bf16.msra.mxu0 %v4714
      %4840 = vmatprep.subr.bf16.mxu0 %v4713
      %4841 = vmatpush1.bf16.msra.mxu0 %v4712
      %4842 = vmatprep.subr.bf16.mxu0 0
      %4843 = vmatpush2.bf16.msra.mxu0 0
      %4844 = vmatprep.subr.bf16.mxu0 0
      %4845 = vmatpush2.bf16.msra.mxu0 0
      %4846 = vmatprep.subr.bf16.mxu0 0
      %4847 = vmatpush2.bf16.msra.mxu0 0
      %4848 = vmatprep.subr.bf16.mxu0 0
      %4849 = vmatpush2.bf16.msra.mxu0 0
      %4850 = vmatprep.subr.bf16.mxu0 0
      %4851 = vmatpush2.bf16.msra.mxu0 0
      %4852 = vmatprep.subr.bf16.mxu0 0
      %4853 = vmatpush2.bf16.msra.mxu0 0
      %4854 = vmatprep.subr.bf16.mxu0 0
      %4855 = vmatpush2.bf16.msra.mxu0 0
      %4856 = vmatprep.subr.bf16.mxu0 %v4729
      %4857 = vmatpush2.bf16.msra.mxu0 %v4728
      %4858 = vmatprep.mubr.bf16.mxu0 %v4781
      %4859 = vmatmul.mubr.bf16.gmra.mxu0 %v4525
      %v4860 = vpop.f32.mrf.mxu0
      %v4861 = vadd.f32 %v4818, %v4860
      %v4862 = vpop.f32.mrf.mxu0
      %v4863 = vadd.f32 %v4820, %v4862
      %v4864 = vpop.f32.mrf.mxu0
      %v4865 = vadd.f32 %v4822, %v4864
      %v4866 = vpop.f32.mrf.mxu0
      %v4867 = vadd.f32 %v4824, %v4866
      %4868 = vdwg.mxu0
      %v4869 = vmax.f32 %v4861, 0.0
      %v4870 = vmax.f32 %v4863, 0.0
      %v4871 = vmax.f32 %v4865, 0.0
      %v4872 = vmax.f32 %v4867, 0.0
      %4875 = vrot.lane.b32.xlu0 %v4869, 127
      %v4876 = vpop.permute.xlu0 %4875
      %4877 = vrot.lane.b32.xlu0 %v4871, 127
      %v4878 = vpop.permute.xlu0 %4877
      %v4881 = vmax.f32 %v4869, %v4876
      %v4882 = vmax.f32 %v4871, %v4878
      %4885 = vrot.lane.b32.xlu0 %v4870, 127
      %v4886 = vpop.permute.xlu0 %4885
      %4887 = vrot.lane.b32.xlu0 %v4872, 127
      %v4888 = vpop.permute.xlu0 %4887
      %v4889 = vsel %vm3158, %v4876, %v4886
      %v4890 = vsel %vm3158, %v4878, %v4888
      %v4895 = vmax.f32 %v4869, %v4889
      %v4896 = vmax.f32 %v4870, %v4886
      %v4897 = vmax.f32 %v4871, %v4890
      %v4898 = vmax.f32 %v4872, %v4888
      %4903 = vrot.lane.b32.xlu0 %v4895, 114
      %v4904 = vpop.permute.xlu0 %4903
      %4905 = vrot.lane.b32.xlu0 %v4896, 114
      %v4906 = vpop.permute.xlu0 %4905
      %4907 = vrot.lane.b32.xlu0 %v4897, 114
      %v4908 = vpop.permute.xlu0 %4907
      %4909 = vrot.lane.b32.xlu0 %v4898, 114
      %v4910 = vpop.permute.xlu0 %4909
      %vm4911 = vcmask 932864
      %v4912 = vsel %vm4911, %v4904, %v4906
      %v4913 = vsel %vm4911, %v4908, %v4910
      %v4916 = vmax.f32 %v4881, %v4912
      %v4917 = vmax.f32 %v4882, %v4913
      %v4918 = vpack.c.bf16 %v4917, %v4916
      %v4919 = vld [vmem:[%s6] sm:$0xf]
      %v4920 = vld [vmem:[%s6 + $0x4] sm:$0xf]
      %v4921 = vld [vmem:[%s6 + $0x8] sm:$0xf]
      %v4922 = vld [vmem:[%s6 + $0xc] sm:$0xf]
      %v4923 = vld [vmem:[%s6 + $0x10] sm:$0xf]
      %v4924 = vld [vmem:[%s6 + $0x14] sm:$0xf]
      %v4925 = vld [vmem:[%s6 + $0x18] sm:$0xf]
      %v4926 = vld [vmem:[%s6 + $0x1c] sm:$0xf]
      %v4927 = vld [vmem:[%s6 + $0x20] sm:$0xf]
      %v4928 = vld [vmem:[%s6 + $0x24] sm:$0xf]
      %v4929 = vld [vmem:[%s6 + $0x28] sm:$0xf]
      %v4930 = vld [vmem:[%s6 + $0x2c] sm:$0xf]
      %v4931 = vld [vmem:[%s6 + $0x30] sm:$0xf]
      %v4932 = vld [vmem:[%s6 + $0x34] sm:$0xf]
      %v4933 = vld [vmem:[%s6 + $0x38] sm:$0xf]
      %v4934 = vld [vmem:[%s6 + $0x3c] sm:$0x1]
      %v4951 = vunpack.c.l.b16 %v4919
      %v4952 = vunpack.c.l.b16 %v4920
      %v4953 = vunpack.c.l.b16 %v4921
      %v4954 = vunpack.c.l.b16 %v4922
      %v4955 = vunpack.c.l.b16 %v4923
      %v4956 = vunpack.c.l.b16 %v4924
      %v4957 = vunpack.c.l.b16 %v4925
      %v4958 = vunpack.c.l.b16 %v4926
      %v4959 = vunpack.c.l.b16 %v4927
      %v4960 = vunpack.c.l.b16 %v4928
      %v4961 = vunpack.c.l.b16 %v4929
      %v4962 = vunpack.c.l.b16 %v4930
      %v4963 = vunpack.c.l.b16 %v4931
      %v4964 = vunpack.c.l.b16 %v4932
      %v4965 = vunpack.c.l.b16 %v4933
      %v4966 = vunpack.c.l.b16 %v4934
      %v4967 = vpack.c.b16 %v4952, %v4951
      %v4968 = vpack.c.b16 %v4954, %v4953
      %v4969 = vpack.c.b16 %v4956, %v4955
      %v4970 = vpack.c.b16 %v4958, %v4957
      %v4971 = vpack.c.b16 %v4960, %v4959
      %v4972 = vpack.c.b16 %v4962, %v4961
      %v4973 = vpack.c.b16 %v4964, %v4963
      %v4974 = vpack.c.b16 %v4966, %v4965
      %vm4982 = vcmask 990208
      %v4984 = vsel %vm4982, %v4918, 0
      %v4986 = vsel %vm4133, 4294967295, 65535
      %v4987 = vsel %vm3939, %v4986, 0
      %v4989 = vand.u32 %v4974, %v4987
      %4991 = vmatprep.subr.bf16.mxu0 0
      %4992 = vmatpush1.bf16.msra.mxu0 %v4989
      %4993 = vmatprep.subr.bf16.mxu0 0
      %4994 = vmatpush1.bf16.msra.mxu0 %v4973
      %4995 = vmatprep.subr.bf16.mxu0 0
      %4996 = vmatpush1.bf16.msra.mxu0 %v4972
      %4997 = vmatprep.subr.bf16.mxu0 0
      %4998 = vmatpush1.bf16.msra.mxu0 %v4971
      %4999 = vmatprep.subr.bf16.mxu0 0
      %5000 = vmatpush1.bf16.msra.mxu0 %v4970
      %5001 = vmatprep.subr.bf16.mxu0 0
      %5002 = vmatpush1.bf16.msra.mxu0 %v4969
      %5003 = vmatprep.subr.bf16.mxu0 0
      %5004 = vmatpush1.bf16.msra.mxu0 %v4968
      %5005 = vmatprep.subr.bf16.mxu0 0
      %5006 = vmatpush1.bf16.msra.mxu0 %v4967
      %5007 = vmatprep.subr.bf16.mxu0 0
      %5008 = vmatpush2.bf16.msra.mxu0 0
      %5009 = vmatprep.subr.bf16.mxu0 0
      %5010 = vmatpush2.bf16.msra.mxu0 0
      %5011 = vmatprep.subr.bf16.mxu0 0
      %5012 = vmatpush2.bf16.msra.mxu0 0
      %5013 = vmatprep.subr.bf16.mxu0 0
      %5014 = vmatpush2.bf16.msra.mxu0 0
      %5015 = vmatprep.subr.bf16.mxu0 0
      %5016 = vmatpush2.bf16.msra.mxu0 0
      %5017 = vmatprep.subr.bf16.mxu0 0
      %5018 = vmatpush2.bf16.msra.mxu0 0
      %5019 = vmatprep.subr.bf16.mxu0 0
      %5020 = vmatpush2.bf16.msra.mxu0 0
      %5021 = vmatprep.subr.bf16.mxu0 0
      %5022 = vmatpush2.bf16.msra.mxu0 0
      %5023 = vmatprep.mubr.bf16.mxu0 0
      %5024 = vmatmul.mubr.bf16.gmra.mxu0 %v4984
      %v5025 = vpop.f32.mrf.mxu0
      %v5026 = vadd.f32 0.0, %v5025
      %v5027 = vpop.f32.mrf.mxu0
      %v5028 = vpop.f32.mrf.mxu0
      %v5029 = vadd.f32 0.0, %v5028
      %v5030 = vpop.f32.mrf.mxu0
      %5031 = vdwg.mxu0
      %v5032 = vpack.c.bf16 %v5029, %v5026
      %v5034 = vunpack.c.l.b16 %v5032
      %v5035 = vunpack.c.h.b16 %v5032
      %v5036 = vpack.c.b16 %v5034, %v5034
      %v5037 = vpack.c.b16 %v5035, %v5035
      %vm5040 = vcmask 3072
      %5041 = vst.msk [vmem:[#allocation2] sm:$0xf] %vm5040, %v5036
      %5042 = vst.msk [vmem:[#allocation2 + $0x1c] sm:$0xf] %vm5040, %v5037
      %5043 = vrot.lane.b32.xlu0 %v5036, 127
      %v5044 = vpop.permute.xlu0 %5043
      %5045 = vrot.lane.b32.xlu0 %v5037, 127
      %v5046 = vpop.permute.xlu0 %5045
      %5049 = vst.msk [vmem:[#allocation2 + $0x38] sm:$0xf] %vm5040, %v5044
      %5050 = vst.msk [vmem:[#allocation2 + $0x54] sm:$0xf] %vm5040, %v5046
      %5051 = vrot.lane.b32.xlu0 %v5036, 126
      %v5052 = vpop.permute.xlu0 %5051
      %5053 = vrot.lane.b32.xlu0 %v5037, 126
      %v5054 = vpop.permute.xlu0 %5053
      %5057 = vst.msk [vmem:[#allocation2 + $0x70] sm:$0xf] %vm5040, %v5052
      %5058 = vst.msk [vmem:[#allocation2 + $0x8c] sm:$0xf] %vm5040, %v5054
      %5059 = vrot.lane.b32.xlu0 %v5036, 125
      %v5060 = vpop.permute.xlu0 %5059
      %5061 = vrot.lane.b32.xlu0 %v5037, 125
      %v5062 = vpop.permute.xlu0 %5061
      %5065 = vst.msk [vmem:[#allocation2 + $0xa8] sm:$0xf] %vm5040, %v5060
      %5066 = vst.msk [vmem:[#allocation2 + $0xc4] sm:$0xf] %vm5040, %v5062
      %5067 = vrot.lane.b32.xlu0 %v5036, 124
      %v5068 = vpop.permute.xlu0 %5067
      %5069 = vrot.lane.b32.xlu0 %v5037, 124
      %v5070 = vpop.permute.xlu0 %5069
      %5073 = vst.msk [vmem:[#allocation2 + $0xe0] sm:$0xf] %vm5040, %v5068
      %5074 = vst.msk [vmem:[#allocation2 + $0xfc] sm:$0xf] %vm5040, %v5070
      %5075 = vrot.lane.b32.xlu0 %v5036, 123
      %v5076 = vpop.permute.xlu0 %5075
      %5077 = vrot.lane.b32.xlu0 %v5037, 123
      %v5078 = vpop.permute.xlu0 %5077
      %5081 = vst.msk [vmem:[#allocation2 + $0x118] sm:$0xf] %vm5040, %v5076
      %5082 = vst.msk [vmem:[#allocation2 + $0x134] sm:$0xf] %vm5040, %v5078
      %5083 = vrot.lane.b32.xlu0 %v5036, 122
      %v5084 = vpop.permute.xlu0 %5083
      %5085 = vrot.lane.b32.xlu0 %v5037, 122
      %v5086 = vpop.permute.xlu0 %5085
      %5089 = vst.msk [vmem:[#allocation2 + $0x150] sm:$0xf] %vm5040, %v5084
      %5090 = vst.msk [vmem:[#allocation2 + $0x16c] sm:$0xf] %vm5040, %v5086
      %5091 = vrot.lane.b32.xlu0 %v5036, 121
      %v5092 = vpop.permute.xlu0 %5091
      %5093 = vrot.lane.b32.xlu0 %v5037, 121
      %v5094 = vpop.permute.xlu0 %5093
      %5097 = vst.msk [vmem:[#allocation2 + $0x188] sm:$0xf] %vm5040, %v5092
      %5098 = vst.msk [vmem:[#allocation2 + $0x1a4] sm:$0xf] %vm5040, %v5094
      %5099 = vrot.lane.b32.xlu0 %v5036, 120
      %v5100 = vpop.permute.xlu0 %5099
      %5101 = vrot.lane.b32.xlu0 %v5037, 120
      %v5102 = vpop.permute.xlu0 %5101
      %5105 = vst.msk [vmem:[#allocation2 + $0x1c0] sm:$0xf] %vm5040, %v5100
      %5106 = vst.msk [vmem:[#allocation2 + $0x1dc] sm:$0xf] %vm5040, %v5102
      %5107 = vrot.lane.b32.xlu0 %v5036, 119
      %v5108 = vpop.permute.xlu0 %5107
      %5109 = vrot.lane.b32.xlu0 %v5037, 119
      %v5110 = vpop.permute.xlu0 %5109
      %5113 = vst.msk [vmem:[#allocation2 + $0x1f8] sm:$0xf] %vm5040, %v5108
      %5114 = vst.msk [vmem:[#allocation2 + $0x214] sm:$0xf] %vm5040, %v5110
      %5115 = vrot.lane.b32.xlu0 %v5036, 118
      %v5116 = vpop.permute.xlu0 %5115
      %5117 = vrot.lane.b32.xlu0 %v5037, 118
      %v5118 = vpop.permute.xlu0 %5117
      %5121 = vst.msk [vmem:[#allocation2 + $0x230] sm:$0xf] %vm5040, %v5116
      %5122 = vst.msk [vmem:[#allocation2 + $0x24c] sm:$0xf] %vm5040, %v5118
      %5123 = vrot.lane.b32.xlu0 %v5036, 117
      %v5124 = vpop.permute.xlu0 %5123
      %5125 = vrot.lane.b32.xlu0 %v5037, 117
      %v5126 = vpop.permute.xlu0 %5125
      %5129 = vst.msk [vmem:[#allocation2 + $0x268] sm:$0xf] %vm5040, %v5124
      %5130 = vst.msk [vmem:[#allocation2 + $0x284] sm:$0xf] %vm5040, %v5126
      %5131 = vrot.lane.b32.xlu0 %v5036, 116
      %v5132 = vpop.permute.xlu0 %5131
      %5133 = vrot.lane.b32.xlu0 %v5037, 116
      %v5134 = vpop.permute.xlu0 %5133
      %5137 = vst.msk [vmem:[#allocation2 + $0x2a0] sm:$0xf] %vm5040, %v5132
      %5138 = vst.msk [vmem:[#allocation2 + $0x2bc] sm:$0xf] %vm5040, %v5134
      %5139 = vrot.lane.b32.xlu0 %v5036, 115
      %v5140 = vpop.permute.xlu0 %5139
      %5141 = vrot.lane.b32.xlu0 %v5037, 115
      %v5142 = vpop.permute.xlu0 %5141
      %5145 = vst.msk [vmem:[#allocation2 + $0x2d8] sm:$0xf] %vm5040, %v5140
      %5146 = vst.msk [vmem:[#allocation2 + $0x2f4] sm:$0xf] %vm5040, %v5142
      %5147 = vrot.lane.b32.xlu0 %v5036, 114
      %v5148 = vpop.permute.xlu0 %5147
      %5149 = vrot.lane.b32.xlu0 %v5037, 114
      %v5150 = vpop.permute.xlu0 %5149
      %5153 = vst.msk [vmem:[#allocation2 + $0x310] sm:$0xf] %vm5040, %v5148
      %5154 = vst.msk [vmem:[#allocation2 + $0x32c] sm:$0xf] %vm5040, %v5150
      %5155 = vrot.lane.b32.xlu0 %v5036, 113
      %v5156 = vpop.permute.xlu0 %5155
      %5157 = vrot.lane.b32.xlu0 %v5037, 113
      %v5158 = vpop.permute.xlu0 %5157
      %5161 = vst.msk [vmem:[#allocation2 + $0x348] sm:$0xf] %vm5040, %v5156
      %5162 = vst.msk [vmem:[#allocation2 + $0x364] sm:$0xf] %vm5040, %v5158
      %5163 = vrot.lane.b32.xlu0 %v5036, 112
      %v5164 = vpop.permute.xlu0 %5163
      %5165 = vrot.lane.b32.xlu0 %v5037, 112
      %v5166 = vpop.permute.xlu0 %5165
      %5169 = vst.msk [vmem:[#allocation2 + $0x380] sm:$0xf] %vm5040, %v5164
      %5170 = vst.msk [vmem:[#allocation2 + $0x39c] sm:$0xf] %vm5040, %v5166
      %5171 = vrot.lane.b32.xlu0 %v5036, 111
      %v5172 = vpop.permute.xlu0 %5171
      %5173 = vrot.lane.b32.xlu0 %v5037, 111
      %v5174 = vpop.permute.xlu0 %5173
      %5177 = vst.msk [vmem:[#allocation2 + $0x3b8] sm:$0xf] %vm5040, %v5172
      %5178 = vst.msk [vmem:[#allocation2 + $0x3d4] sm:$0xf] %vm5040, %v5174
      %5179 = vrot.lane.b32.xlu0 %v5036, 110
      %v5180 = vpop.permute.xlu0 %5179
      %5181 = vrot.lane.b32.xlu0 %v5037, 110
      %v5182 = vpop.permute.xlu0 %5181
      %5185 = vst.msk [vmem:[#allocation2 + $0x3f0] sm:$0xf] %vm5040, %v5180
      %5186 = vst.msk [vmem:[#allocation2 + $0x40c] sm:$0xf] %vm5040, %v5182
      %5187 = vrot.lane.b32.xlu0 %v5036, 109
      %v5188 = vpop.permute.xlu0 %5187
      %5189 = vrot.lane.b32.xlu0 %v5037, 109
      %v5190 = vpop.permute.xlu0 %5189
      %5193 = vst.msk [vmem:[#allocation2 + $0x428] sm:$0xf] %vm5040, %v5188
      %5194 = vst.msk [vmem:[#allocation2 + $0x444] sm:$0xf] %vm5040, %v5190
      %5195 = vrot.lane.b32.xlu0 %v5036, 108
      %v5196 = vpop.permute.xlu0 %5195
      %5197 = vrot.lane.b32.xlu0 %v5037, 108
      %v5198 = vpop.permute.xlu0 %5197
      %5201 = vst.msk [vmem:[#allocation2 + $0x460] sm:$0xf] %vm5040, %v5196
      %5202 = vst.msk [vmem:[#allocation2 + $0x47c] sm:$0xf] %vm5040, %v5198
      %5203 = vrot.lane.b32.xlu0 %v5036, 107
      %v5204 = vpop.permute.xlu0 %5203
      %5205 = vrot.lane.b32.xlu0 %v5037, 107
      %v5206 = vpop.permute.xlu0 %5205
      %5209 = vst.msk [vmem:[#allocation2 + $0x498] sm:$0xf] %vm5040, %v5204
      %5210 = vst.msk [vmem:[#allocation2 + $0x4b4] sm:$0xf] %vm5040, %v5206
      %5211 = vrot.lane.b32.xlu0 %v5036, 106
      %v5212 = vpop.permute.xlu0 %5211
      %5213 = vrot.lane.b32.xlu0 %v5037, 106
      %v5214 = vpop.permute.xlu0 %5213
      %5217 = vst.msk [vmem:[#allocation2 + $0x4d0] sm:$0xf] %vm5040, %v5212
      %5218 = vst.msk [vmem:[#allocation2 + $0x4ec] sm:$0xf] %vm5040, %v5214
      %5219 = vrot.lane.b32.xlu0 %v5036, 105
      %v5220 = vpop.permute.xlu0 %5219
      %5221 = vrot.lane.b32.xlu0 %v5037, 105
      %v5222 = vpop.permute.xlu0 %5221
      %5225 = vst.msk [vmem:[#allocation2 + $0x508] sm:$0xf] %vm5040, %v5220
      %5226 = vst.msk [vmem:[#allocation2 + $0x524] sm:$0xf] %vm5040, %v5222
      %5227 = vrot.lane.b32.xlu0 %v5036, 104
      %v5228 = vpop.permute.xlu0 %5227
      %5229 = vrot.lane.b32.xlu0 %v5037, 104
      %v5230 = vpop.permute.xlu0 %5229
      %5233 = vst.msk [vmem:[#allocation2 + $0x540] sm:$0xf] %vm5040, %v5228
      %5234 = vst.msk [vmem:[#allocation2 + $0x55c] sm:$0xf] %vm5040, %v5230
      %v5235 = vld [vmem:[%s7] sm:$0xff]
      %v5236 = vld [vmem:[%s7 + $0x8] sm:$0xff]
      %v5237 = vld [vmem:[%s7 + $0x10] sm:$0xff]
      %v5238 = vld [vmem:[%s7 + $0x18] sm:$0xff]
      %v5239 = vld [vmem:[%s7 + $0x20] sm:$0xff]
      %v5240 = vld [vmem:[%s7 + $0x28] sm:$0xff]
      %v5241 = vld [vmem:[%s7 + $0x30] sm:$0xff]
      %v5242 = vld [vmem:[%s7 + $0x38] sm:$0xff]
      %v5243 = vld [vmem:[%s7 + $0x40] sm:$0xff]
      %v5244 = vld [vmem:[%s7 + $0x48] sm:$0xff]
      %v5245 = vld [vmem:[%s7 + $0x50] sm:$0xff]
      %v5246 = vld [vmem:[%s7 + $0x58] sm:$0xff]
      %v5247 = vld [vmem:[%s7 + $0x60] sm:$0xff]
      %v5248 = vld [vmem:[%s7 + $0x68] sm:$0xff]
      %v5249 = vld [vmem:[%s7 + $0x70] sm:$0xff]
      %v5250 = vld [vmem:[%s7 + $0x78] sm:$0xff]
      %v5251 = vld [vmem:[%s7 + $0x80] sm:$0xff]
      %v5252 = vld [vmem:[%s7 + $0x88] sm:$0xff]
      %v5253 = vld [vmem:[%s7 + $0x90] sm:$0xff]
      %v5254 = vld [vmem:[%s7 + $0x98] sm:$0xff]
      %v5255 = vld [vmem:[%s7 + $0xa0] sm:$0xff]
      %v5256 = vld [vmem:[%s7 + $0xa8] sm:$0xff]
      %v5257 = vld [vmem:[%s7 + $0xb0] sm:$0xff]
      %v5258 = vld [vmem:[%s7 + $0xb8] sm:$0xff]
      %v5259 = vld [vmem:[%s7 + $0xc0] sm:$0xff]
      %v5260 = vld [vmem:[%s7 + $0xc8] sm:$0xff]
      %v5261 = vld [vmem:[%s7 + $0xd0] sm:$0xff]
      %v5262 = vld [vmem:[%s7 + $0xd8] sm:$0xff]
      %v5263 = vld [vmem:[%s7 + $0xe0] sm:$0xff]
      %v5264 = vld [vmem:[%s7 + $0xe8] sm:$0xff]
      %v5265 = vld [vmem:[%s7 + $0xf0] sm:$0xff]
      %v5266 = vld [vmem:[%s7 + $0xf8] sm:$0xff]
      %v5267 = vld [vmem:[#allocation2] sm:$0xf]
      %v5268 = vld [vmem:[#allocation2 + $0x1c] sm:$0xf]
      %v5269 = vld [vmem:[#allocation2 + $0x38] sm:$0xf]
      %v5270 = vld [vmem:[#allocation2 + $0x54] sm:$0xf]
      %v5271 = vld [vmem:[#allocation2 + $0x70] sm:$0xf]
      %v5272 = vld [vmem:[#allocation2 + $0x8c] sm:$0xf]
      %v5273 = vld [vmem:[#allocation2 + $0xa8] sm:$0xf]
      %v5274 = vld [vmem:[#allocation2 + $0xc4] sm:$0xf]
      %v5275 = vld [vmem:[#allocation2 + $0xe0] sm:$0xf]
      %v5276 = vld [vmem:[#allocation2 + $0xfc] sm:$0xf]
      %v5277 = vld [vmem:[#allocation2 + $0x118] sm:$0xf]
      %v5278 = vld [vmem:[#allocation2 + $0x134] sm:$0xf]
      %v5279 = vld [vmem:[#allocation2 + $0x150] sm:$0xf]
      %v5280 = vld [vmem:[#allocation2 + $0x16c] sm:$0xf]
      %v5281 = vld [vmem:[#allocation2 + $0x188] sm:$0xf]
      %v5282 = vld [vmem:[#allocation2 + $0x1a4] sm:$0xf]
      %v5283 = vld [vmem:[#allocation2 + $0x1c0] sm:$0xf]
      %v5284 = vld [vmem:[#allocation2 + $0x1dc] sm:$0xf]
      %v5285 = vld [vmem:[#allocation2 + $0x1f8] sm:$0xf]
      %v5286 = vld [vmem:[#allocation2 + $0x214] sm:$0xf]
      %v5287 = vld [vmem:[#allocation2 + $0x230] sm:$0xf]
      %v5288 = vld [vmem:[#allocation2 + $0x24c] sm:$0xf]
      %v5289 = vld [vmem:[#allocation2 + $0x268] sm:$0xf]
      %v5290 = vld [vmem:[#allocation2 + $0x284] sm:$0xf]
      %v5291 = vld [vmem:[#allocation2 + $0x2a0] sm:$0xf]
      %v5292 = vld [vmem:[#allocation2 + $0x2bc] sm:$0xf]
      %v5293 = vld [vmem:[#allocation2 + $0x2d8] sm:$0xf]
      %v5294 = vld [vmem:[#allocation2 + $0x2f4] sm:$0xf]
      %v5295 = vld [vmem:[#allocation2 + $0x310] sm:$0xf]
      %v5296 = vld [vmem:[#allocation2 + $0x32c] sm:$0xf]
      %v5297 = vld [vmem:[#allocation2 + $0x348] sm:$0xf]
      %v5298 = vld [vmem:[#allocation2 + $0x364] sm:$0xf]
      %v5299 = vld [vmem:[#allocation2 + $0x380] sm:$0xf]
      %v5300 = vld [vmem:[#allocation2 + $0x39c] sm:$0xf]
      %v5301 = vld [vmem:[#allocation2 + $0x3b8] sm:$0xf]
      %v5302 = vld [vmem:[#allocation2 + $0x3d4] sm:$0xf]
      %v5303 = vld [vmem:[#allocation2 + $0x3f0] sm:$0xf]
      %v5304 = vld [vmem:[#allocation2 + $0x40c] sm:$0xf]
      %v5305 = vld [vmem:[#allocation2 + $0x428] sm:$0xf]
      %v5306 = vld [vmem:[#allocation2 + $0x444] sm:$0xf]
      %v5307 = vld [vmem:[#allocation2 + $0x460] sm:$0xf]
      %v5308 = vld [vmem:[#allocation2 + $0x47c] sm:$0xf]
      %v5309 = vld [vmem:[#allocation2 + $0x498] sm:$0xf]
      %v5310 = vld [vmem:[#allocation2 + $0x4b4] sm:$0xf]
      %v5311 = vld [vmem:[#allocation2 + $0x4d0] sm:$0xf]
      %v5312 = vld [vmem:[#allocation2 + $0x4ec] sm:$0xf]
      %v5313 = vld [vmem:[#allocation2 + $0x508] sm:$0xf]
      %v5314 = vld [vmem:[#allocation2 + $0x524] sm:$0xf]
      %v5315 = vld [vmem:[#allocation2 + $0x540] sm:$0xf]
      %v5316 = vld [vmem:[#allocation2 + $0x55c] sm:$0xf]
      %v5317 = vld [vmem:[%s8] sm:$0xff]
      %v5318 = vld [vmem:[%s8 + $0x8] sm:$0xff]
      %v5319 = vld [vmem:[%s8 + $0x10] sm:$0xff]
      %v5320 = vld [vmem:[%s8 + $0x18] sm:$0xff]
      %v5321 = vld [vmem:[%s8 + $0x20] sm:$0xff]
      %v5322 = vld [vmem:[%s8 + $0x28] sm:$0xff]
      %v5323 = vld [vmem:[%s8 + $0x30] sm:$0xff]
      %v5324 = vld [vmem:[%s8 + $0x38] sm:$0xff]
      %v5325 = vld [vmem:[%s8 + $0x40] sm:$0xff]
      %v5326 = vld [vmem:[%s8 + $0x48] sm:$0xff]
      %v5327 = vld [vmem:[%s8 + $0x50] sm:$0xff]
      %v5328 = vld [vmem:[%s8 + $0x58] sm:$0xff]
      %v5329 = vld [vmem:[%s8 + $0x60] sm:$0xff]
      %v5330 = vld [vmem:[%s8 + $0x68] sm:$0xff]
      %v5331 = vld [vmem:[%s8 + $0x70] sm:$0xff]
      %v5332 = vld [vmem:[%s8 + $0x78] sm:$0xff]
      %v5365 = vunpack.c.l.b16 %v5235
      %v5366 = vunpack.c.h.b16 %v5235
      %v5367 = vunpack.c.l.b16 %v5236
      %v5368 = vunpack.c.h.b16 %v5236
      %v5369 = vunpack.c.l.b16 %v5237
      %v5370 = vunpack.c.h.b16 %v5237
      %v5371 = vunpack.c.l.b16 %v5238
      %v5372 = vunpack.c.h.b16 %v5238
      %v5373 = vunpack.c.l.b16 %v5239
      %v5374 = vunpack.c.h.b16 %v5239
      %v5375 = vunpack.c.l.b16 %v5240
      %v5376 = vunpack.c.h.b16 %v5240
      %v5377 = vunpack.c.l.b16 %v5241
      %v5378 = vunpack.c.h.b16 %v5241
      %v5379 = vunpack.c.l.b16 %v5242
      %v5380 = vunpack.c.h.b16 %v5242
      %v5381 = vunpack.c.l.b16 %v5243
      %v5382 = vunpack.c.h.b16 %v5243
      %v5383 = vunpack.c.l.b16 %v5244
      %v5384 = vunpack.c.h.b16 %v5244
      %v5385 = vunpack.c.l.b16 %v5245
      %v5386 = vunpack.c.h.b16 %v5245
      %v5387 = vunpack.c.l.b16 %v5246
      %v5388 = vunpack.c.h.b16 %v5246
      %v5389 = vunpack.c.l.b16 %v5247
      %v5390 = vunpack.c.h.b16 %v5247
      %v5391 = vunpack.c.l.b16 %v5248
      %v5392 = vunpack.c.h.b16 %v5248
      %v5393 = vunpack.c.l.b16 %v5249
      %v5394 = vunpack.c.h.b16 %v5249
      %v5395 = vunpack.c.l.b16 %v5250
      %v5396 = vunpack.c.h.b16 %v5250
      %v5397 = vunpack.c.l.b16 %v5251
      %v5398 = vunpack.c.h.b16 %v5251
      %v5399 = vunpack.c.l.b16 %v5252
      %v5400 = vunpack.c.h.b16 %v5252
      %v5401 = vunpack.c.l.b16 %v5253
      %v5402 = vunpack.c.h.b16 %v5253
      %v5403 = vunpack.c.l.b16 %v5254
      %v5404 = vunpack.c.h.b16 %v5254
      %v5405 = vunpack.c.l.b16 %v5255
      %v5406 = vunpack.c.h.b16 %v5255
      %v5407 = vunpack.c.l.b16 %v5256
      %v5408 = vunpack.c.h.b16 %v5256
      %v5409 = vunpack.c.l.b16 %v5257
      %v5410 = vunpack.c.h.b16 %v5257
      %v5411 = vunpack.c.l.b16 %v5258
      %v5412 = vunpack.c.h.b16 %v5258
      %v5413 = vunpack.c.l.b16 %v5259
      %v5414 = vunpack.c.h.b16 %v5259
      %v5415 = vunpack.c.l.b16 %v5260
      %v5416 = vunpack.c.h.b16 %v5260
      %v5417 = vunpack.c.l.b16 %v5261
      %v5418 = vunpack.c.h.b16 %v5261
      %v5419 = vunpack.c.l.b16 %v5262
      %v5420 = vunpack.c.h.b16 %v5262
      %v5421 = vunpack.c.l.b16 %v5263
      %v5422 = vunpack.c.h.b16 %v5263
      %v5423 = vunpack.c.l.b16 %v5264
      %v5424 = vunpack.c.h.b16 %v5264
      %v5425 = vunpack.c.l.b16 %v5265
      %v5426 = vunpack.c.h.b16 %v5265
      %v5427 = vunpack.c.l.b16 %v5266
      %v5428 = vunpack.c.h.b16 %v5266
      %v5429 = vpack.c.b16 %v5369, %v5365
      %v5430 = vpack.c.b16 %v5370, %v5366
      %v5431 = vpack.c.b16 %v5371, %v5367
      %v5432 = vpack.c.b16 %v5372, %v5368
      %v5433 = vpack.c.b16 %v5377, %v5373
      %v5434 = vpack.c.b16 %v5378, %v5374
      %v5435 = vpack.c.b16 %v5379, %v5375
      %v5436 = vpack.c.b16 %v5380, %v5376
      %v5437 = vpack.c.b16 %v5385, %v5381
      %v5438 = vpack.c.b16 %v5386, %v5382
      %v5439 = vpack.c.b16 %v5387, %v5383
      %v5440 = vpack.c.b16 %v5388, %v5384
      %v5441 = vpack.c.b16 %v5393, %v5389
      %v5442 = vpack.c.b16 %v5394, %v5390
      %v5443 = vpack.c.b16 %v5395, %v5391
      %v5444 = vpack.c.b16 %v5396, %v5392
      %v5445 = vpack.c.b16 %v5401, %v5397
      %v5446 = vpack.c.b16 %v5402, %v5398
      %v5447 = vpack.c.b16 %v5403, %v5399
      %v5448 = vpack.c.b16 %v5404, %v5400
      %v5449 = vpack.c.b16 %v5409, %v5405
      %v5450 = vpack.c.b16 %v5410, %v5406
      %v5451 = vpack.c.b16 %v5411, %v5407
      %v5452 = vpack.c.b16 %v5412, %v5408
      %v5453 = vpack.c.b16 %v5417, %v5413
      %v5454 = vpack.c.b16 %v5418, %v5414
      %v5455 = vpack.c.b16 %v5419, %v5415
      %v5456 = vpack.c.b16 %v5420, %v5416
      %v5457 = vpack.c.b16 %v5425, %v5421
      %v5458 = vpack.c.b16 %v5426, %v5422
      %v5459 = vpack.c.b16 %v5427, %v5423
      %v5460 = vpack.c.b16 %v5428, %v5424
      %v5535 = vunpack.c.l.b16 %v5267
      %v5536 = vunpack.c.l.b16 %v5268
      %v5537 = vunpack.c.l.b16 %v5269
      %v5538 = vunpack.c.l.b16 %v5270
      %v5539 = vunpack.c.l.b16 %v5271
      %v5540 = vunpack.c.l.b16 %v5272
      %v5541 = vunpack.c.l.b16 %v5273
      %v5542 = vunpack.c.l.b16 %v5274
      %v5543 = vunpack.c.l.b16 %v5275
      %v5544 = vunpack.c.l.b16 %v5276
      %v5545 = vunpack.c.l.b16 %v5277
      %v5546 = vunpack.c.l.b16 %v5278
      %v5547 = vunpack.c.l.b16 %v5279
      %v5548 = vunpack.c.l.b16 %v5280
      %v5549 = vunpack.c.l.b16 %v5281
      %v5550 = vunpack.c.l.b16 %v5282
      %v5551 = vunpack.c.l.b16 %v5283
      %v5552 = vunpack.c.l.b16 %v5284
      %v5553 = vunpack.c.l.b16 %v5285
      %v5554 = vunpack.c.l.b16 %v5286
      %v5555 = vunpack.c.l.b16 %v5287
      %v5556 = vunpack.c.l.b16 %v5288
      %v5557 = vunpack.c.l.b16 %v5289
      %v5558 = vunpack.c.l.b16 %v5290
      %v5559 = vunpack.c.l.b16 %v5291
      %v5560 = vunpack.c.l.b16 %v5292
      %v5561 = vunpack.c.l.b16 %v5293
      %v5562 = vunpack.c.l.b16 %v5294
      %v5563 = vunpack.c.l.b16 %v5295
      %v5564 = vunpack.c.l.b16 %v5296
      %v5565 = vunpack.c.l.b16 %v5297
      %v5566 = vunpack.c.l.b16 %v5298
      %v5567 = vunpack.c.l.b16 %v5299
      %v5568 = vunpack.c.l.b16 %v5300
      %v5569 = vunpack.c.l.b16 %v5301
      %v5570 = vunpack.c.l.b16 %v5302
      %v5571 = vunpack.c.l.b16 %v5303
      %v5572 = vunpack.c.l.b16 %v5304
      %v5573 = vunpack.c.l.b16 %v5305
      %v5574 = vunpack.c.l.b16 %v5306
      %v5575 = vunpack.c.l.b16 %v5307
      %v5576 = vunpack.c.l.b16 %v5308
      %v5577 = vunpack.c.l.b16 %v5309
      %v5578 = vunpack.c.l.b16 %v5310
      %v5579 = vunpack.c.l.b16 %v5311
      %v5580 = vunpack.c.l.b16 %v5312
      %v5581 = vunpack.c.l.b16 %v5313
      %v5582 = vunpack.c.l.b16 %v5314
      %v5583 = vunpack.c.l.b16 %v5315
      %v5584 = vunpack.c.l.b16 %v5316
      %v5585 = vpack.c.b16 %v5536, %v5535
      %v5586 = vpack.c.b16 %v5538, %v5537
      %v5587 = vpack.c.b16 %v5540, %v5539
      %v5588 = vpack.c.b16 %v5542, %v5541
      %v5589 = vpack.c.b16 %v5544, %v5543
      %v5590 = vpack.c.b16 %v5546, %v5545
      %v5591 = vpack.c.b16 %v5548, %v5547
      %v5592 = vpack.c.b16 %v5550, %v5549
      %v5593 = vpack.c.b16 %v5552, %v5551
      %v5594 = vpack.c.b16 %v5554, %v5553
      %v5595 = vpack.c.b16 %v5556, %v5555
      %v5596 = vpack.c.b16 %v5558, %v5557
      %v5597 = vpack.c.b16 %v5560, %v5559
      %v5598 = vpack.c.b16 %v5562, %v5561
      %v5599 = vpack.c.b16 %v5564, %v5563
      %v5600 = vpack.c.b16 %v5566, %v5565
      %v5601 = vpack.c.b16 %v5568, %v5567
      %v5602 = vpack.c.b16 %v5570, %v5569
      %v5603 = vpack.c.b16 %v5572, %v5571
      %v5604 = vpack.c.b16 %v5574, %v5573
      %v5605 = vpack.c.b16 %v5576, %v5575
      %v5606 = vpack.c.b16 %v5578, %v5577
      %v5607 = vpack.c.b16 %v5580, %v5579
      %v5608 = vpack.c.b16 %v5582, %v5581
      %v5609 = vpack.c.b16 %v5584, %v5583
      %v5636 = vsel %vm2758, %v5432, 0
      %v5639 = vsel %vm2758, %v5436, 0
      %v5642 = vsel %vm2758, %v5440, 0
      %v5645 = vsel %vm2758, %v5444, 0
      %v5648 = vsel %vm2758, %v5448, 0
      %v5651 = vsel %vm2758, %v5452, 0
      %v5654 = vsel %vm2758, %v5456, 0
      %v5657 = vsel %vm2758, %v5460, 0
      %5659 = vmatprep.subr.bf16.mxu0 0
      %5660 = vmatpush1.bf16.msra.mxu0 %v5592
      %5661 = vmatprep.subr.bf16.mxu0 0
      %5662 = vmatpush1.bf16.msra.mxu0 %v5591
      %5663 = vmatprep.subr.bf16.mxu0 0
      %5664 = vmatpush1.bf16.msra.mxu0 %v5590
      %5665 = vmatprep.subr.bf16.mxu0 0
      %5666 = vmatpush1.bf16.msra.mxu0 %v5589
      %5667 = vmatprep.subr.bf16.mxu0 0
      %5668 = vmatpush1.bf16.msra.mxu0 %v5588
      %5669 = vmatprep.subr.bf16.mxu0 0
      %5670 = vmatpush1.bf16.msra.mxu0 %v5587
      %5671 = vmatprep.subr.bf16.mxu0 0
      %5672 = vmatpush1.bf16.msra.mxu0 %v5586
      %5673 = vmatprep.subr.bf16.mxu0 0
      %5674 = vmatpush1.bf16.msra.mxu0 %v5585
      %5675 = vmatprep.subr.bf16.mxu0 0
      %5676 = vmatpush2.bf16.msra.mxu0 %v5600
      %5677 = vmatprep.subr.bf16.mxu0 0
      %5678 = vmatpush2.bf16.msra.mxu0 %v5599
      %5679 = vmatprep.subr.bf16.mxu0 0
      %5680 = vmatpush2.bf16.msra.mxu0 %v5598
      %5681 = vmatprep.subr.bf16.mxu0 0
      %5682 = vmatpush2.bf16.msra.mxu0 %v5597
      %5683 = vmatprep.subr.bf16.mxu0 0
      %5684 = vmatpush2.bf16.msra.mxu0 %v5596
      %5685 = vmatprep.subr.bf16.mxu0 0
      %5686 = vmatpush2.bf16.msra.mxu0 %v5595
      %5687 = vmatprep.subr.bf16.mxu0 0
      %5688 = vmatpush2.bf16.msra.mxu0 %v5594
      %5689 = vmatprep.subr.bf16.mxu0 0
      %5690 = vmatpush2.bf16.msra.mxu0 %v5593
      %5691 = vmatprep.mubr.bf16.mxu0 %v5430
      %5692 = vmatmul.mubr.bf16.gmra.mxu0 %v5429
      %v5693 = vpop.f32.mrf.mxu0
      %v5694 = vadd.f32 %v5317, %v5693
      %v5695 = vpop.f32.mrf.mxu0
      %v5696 = vpop.f32.mrf.mxu0
      %v5697 = vadd.f32 %v5318, %v5696
      %v5698 = vpop.f32.mrf.mxu0
      %5699 = vmatprep.mubr.bf16.mxu0 %v5434
      %5700 = vmatmul.mubr.bf16.gmra.mxu0 %v5433
      %v5701 = vpop.f32.mrf.mxu0
      %v5702 = vadd.f32 %v5319, %v5701
      %v5703 = vpop.f32.mrf.mxu0
      %v5704 = vpop.f32.mrf.mxu0
      %v5705 = vadd.f32 %v5320, %v5704
      %v5706 = vpop.f32.mrf.mxu0
      %5707 = vmatprep.mubr.bf16.mxu0 %v5438
      %5708 = vmatmul.mubr.bf16.gmra.mxu0 %v5437
      %v5709 = vpop.f32.mrf.mxu0
      %v5710 = vadd.f32 %v5321, %v5709
      %v5711 = vpop.f32.mrf.mxu0
      %v5712 = vpop.f32.mrf.mxu0
      %v5713 = vadd.f32 %v5322, %v5712
      %v5714 = vpop.f32.mrf.mxu0
      %5715 = vmatprep.mubr.bf16.mxu0 %v5442
      %5716 = vmatmul.mubr.bf16.gmra.mxu0 %v5441
      %v5717 = vpop.f32.mrf.mxu0
      %v5718 = vadd.f32 %v5323, %v5717
      %v5719 = vpop.f32.mrf.mxu0
      %v5720 = vpop.f32.mrf.mxu0
      %v5721 = vadd.f32 %v5324, %v5720
      %v5722 = vpop.f32.mrf.mxu0
      %5723 = vmatprep.mubr.bf16.mxu0 %v5446
      %5724 = vmatmul.mubr.bf16.gmra.mxu0 %v5445
      %v5725 = vpop.f32.mrf.mxu0
      %v5726 = vadd.f32 %v5325, %v5725
      %v5727 = vpop.f32.mrf.mxu0
      %v5728 = vpop.f32.mrf.mxu0
      %v5729 = vadd.f32 %v5326, %v5728
      %v5730 = vpop.f32.mrf.mxu0
      %5731 = vmatprep.mubr.bf16.mxu0 %v5450
      %5732 = vmatmul.mubr.bf16.gmra.mxu0 %v5449
      %v5733 = vpop.f32.mrf.mxu0
      %v5734 = vadd.f32 %v5327, %v5733
      %v5735 = vpop.f32.mrf.mxu0
      %v5736 = vpop.f32.mrf.mxu0
      %v5737 = vadd.f32 %v5328, %v5736
      %v5738 = vpop.f32.mrf.mxu0
      %5739 = vmatprep.mubr.bf16.mxu0 %v5454
      %5740 = vmatmul.mubr.bf16.gmra.mxu0 %v5453
      %v5741 = vpop.f32.mrf.mxu0
      %v5742 = vadd.f32 %v5329, %v5741
      %v5743 = vpop.f32.mrf.mxu0
      %v5744 = vpop.f32.mrf.mxu0
      %v5745 = vadd.f32 %v5330, %v5744
      %v5746 = vpop.f32.mrf.mxu0
      %5747 = vmatprep.mubr.bf16.mxu0 %v5458
      %5748 = vmatmul.mubr.bf16.gmra.mxu0 %v5457
      %v5749 = vpop.f32.mrf.mxu0
      %v5750 = vadd.f32 %v5331, %v5749
      %v5751 = vpop.f32.mrf.mxu0
      %v5752 = vpop.f32.mrf.mxu0
      %v5753 = vadd.f32 %v5332, %v5752
      %v5754 = vpop.f32.mrf.mxu0
      %5755 = vdwg.mxu0
      %5756 = vmatprep.subr.bf16.mxu0 0
      %5757 = vmatpush1.bf16.msra.mxu0 %v5608
      %5758 = vmatprep.subr.bf16.mxu0 0
      %5759 = vmatpush1.bf16.msra.mxu0 %v5607
      %5760 = vmatprep.subr.bf16.mxu0 0
      %5761 = vmatpush1.bf16.msra.mxu0 %v5606
      %5762 = vmatprep.subr.bf16.mxu0 0
      %5763 = vmatpush1.bf16.msra.mxu0 %v5605
      %5764 = vmatprep.subr.bf16.mxu0 0
      %5765 = vmatpush1.bf16.msra.mxu0 %v5604
      %5766 = vmatprep.subr.bf16.mxu0 0
      %5767 = vmatpush1.bf16.msra.mxu0 %v5603
      %5768 = vmatprep.subr.bf16.mxu0 0
      %5769 = vmatpush1.bf16.msra.mxu0 %v5602
      %5770 = vmatprep.subr.bf16.mxu0 0
      %5771 = vmatpush1.bf16.msra.mxu0 %v5601
      %5772 = vmatprep.subr.bf16.mxu0 0
      %5773 = vmatpush2.bf16.msra.mxu0 0
      %5774 = vmatprep.subr.bf16.mxu0 0
      %5775 = vmatpush2.bf16.msra.mxu0 0
      %5776 = vmatprep.subr.bf16.mxu0 0
      %5777 = vmatpush2.bf16.msra.mxu0 0
      %5778 = vmatprep.subr.bf16.mxu0 0
      %5779 = vmatpush2.bf16.msra.mxu0 0
      %5780 = vmatprep.subr.bf16.mxu0 0
      %5781 = vmatpush2.bf16.msra.mxu0 0
      %5782 = vmatprep.subr.bf16.mxu0 0
      %5783 = vmatpush2.bf16.msra.mxu0 0
      %5784 = vmatprep.subr.bf16.mxu0 0
      %5785 = vmatpush2.bf16.msra.mxu0 0
      %5786 = vmatprep.subr.bf16.mxu0 0
      %5787 = vmatpush2.bf16.msra.mxu0 %v5609
      %5788 = vmatprep.mubr.bf16.mxu0 %v5636
      %5789 = vmatmul.mubr.bf16.gmra.mxu0 %v5431
      %v5790 = vpop.f32.mrf.mxu0
      %v5791 = vadd.f32 %v5694, %v5790
      %v5792 = vpop.f32.mrf.mxu0
      %v5793 = vpop.f32.mrf.mxu0
      %v5794 = vadd.f32 %v5697, %v5793
      %v5795 = vpop.f32.mrf.mxu0
      %5796 = vmatprep.mubr.bf16.mxu0 %v5639
      %5797 = vmatmul.mubr.bf16.gmra.mxu0 %v5435
      %v5798 = vpop.f32.mrf.mxu0
      %v5799 = vadd.f32 %v5702, %v5798
      %v5800 = vpop.f32.mrf.mxu0
      %v5801 = vpop.f32.mrf.mxu0
      %v5802 = vadd.f32 %v5705, %v5801
      %v5803 = vpop.f32.mrf.mxu0
      %5804 = vmatprep.mubr.bf16.mxu0 %v5642
      %5805 = vmatmul.mubr.bf16.gmra.mxu0 %v5439
      %v5806 = vpop.f32.mrf.mxu0
      %v5807 = vadd.f32 %v5710, %v5806
      %v5808 = vpop.f32.mrf.mxu0
      %v5809 = vpop.f32.mrf.mxu0
      %v5810 = vadd.f32 %v5713, %v5809
      %v5811 = vpop.f32.mrf.mxu0
      %5812 = vmatprep.mubr.bf16.mxu0 %v5645
      %5813 = vmatmul.mubr.bf16.gmra.mxu0 %v5443
      %v5814 = vpop.f32.mrf.mxu0
      %v5815 = vadd.f32 %v5718, %v5814
      %v5816 = vpop.f32.mrf.mxu0
      %v5817 = vpop.f32.mrf.mxu0
      %v5818 = vadd.f32 %v5721, %v5817
      %v5819 = vpop.f32.mrf.mxu0
      %5820 = vmatprep.mubr.bf16.mxu0 %v5648
      %5821 = vmatmul.mubr.bf16.gmra.mxu0 %v5447
      %v5822 = vpop.f32.mrf.mxu0
      %v5823 = vadd.f32 %v5726, %v5822
      %v5824 = vpop.f32.mrf.mxu0
      %v5825 = vpop.f32.mrf.mxu0
      %v5826 = vadd.f32 %v5729, %v5825
      %v5827 = vpop.f32.mrf.mxu0
      %5828 = vmatprep.mubr.bf16.mxu0 %v5651
      %5829 = vmatmul.mubr.bf16.gmra.mxu0 %v5451
      %v5830 = vpop.f32.mrf.mxu0
      %v5831 = vadd.f32 %v5734, %v5830
      %v5832 = vpop.f32.mrf.mxu0
      %v5833 = vpop.f32.mrf.mxu0
      %v5834 = vadd.f32 %v5737, %v5833
      %v5835 = vpop.f32.mrf.mxu0
      %5836 = vmatprep.mubr.bf16.mxu0 %v5654
      %5837 = vmatmul.mubr.bf16.gmra.mxu0 %v5455
      %v5838 = vpop.f32.mrf.mxu0
      %v5839 = vadd.f32 %v5742, %v5838
      %v5840 = vpop.f32.mrf.mxu0
      %v5841 = vpop.f32.mrf.mxu0
      %v5842 = vadd.f32 %v5745, %v5841
      %v5843 = vpop.f32.mrf.mxu0
      %5844 = vmatprep.mubr.bf16.mxu0 %v5657
      %5845 = vmatmul.mubr.bf16.gmra.mxu0 %v5459
      %v5846 = vpop.f32.mrf.mxu0
      %v5847 = vadd.f32 %v5750, %v5846
      %v5848 = vpop.f32.mrf.mxu0
      %v5849 = vpop.f32.mrf.mxu0
      %v5850 = vadd.f32 %v5753, %v5849
      %v5851 = vpop.f32.mrf.mxu0
      %5852 = vdwg.mxu0
      %v5853 = vmax.f32 %v5791, 0.0
      %v5854 = vmax.f32 %v5794, 0.0
      %v5855 = vmax.f32 %v5799, 0.0
      %v5856 = vmax.f32 %v5802, 0.0
      %v5857 = vmax.f32 %v5807, 0.0
      %v5858 = vmax.f32 %v5810, 0.0
      %v5859 = vmax.f32 %v5815, 0.0
      %v5860 = vmax.f32 %v5818, 0.0
      %v5861 = vmax.f32 %v5823, 0.0
      %v5862 = vmax.f32 %v5826, 0.0
      %v5863 = vmax.f32 %v5831, 0.0
      %v5864 = vmax.f32 %v5834, 0.0
      %v5865 = vmax.f32 %v5839, 0.0
      %v5866 = vmax.f32 %v5842, 0.0
      %v5867 = vmax.f32 %v5847, 0.0
      %v5868 = vmax.f32 %v5850, 0.0
      %v5869 = vld [vmem:[%s9] sm:$0xf]
      %v5870 = vld [vmem:[%s9 + $0x4] sm:$0xf]
      %v5871 = vld [vmem:[%s9 + $0x8] sm:$0xf]
      %v5872 = vld [vmem:[%s9 + $0xc] sm:$0xf]
      %v5873 = vld [vmem:[%s9 + $0x10] sm:$0xf]
      %v5874 = vld [vmem:[%s9 + $0x14] sm:$0xf]
      %v5875 = vld [vmem:[%s9 + $0x18] sm:$0xf]
      %v5876 = vld [vmem:[%s9 + $0x1c] sm:$0xf]
      %v5877 = vld [vmem:[%s9 + $0x20] sm:$0xf]
      %v5878 = vld [vmem:[%s9 + $0x24] sm:$0xf]
      %v5879 = vld [vmem:[%s9 + $0x28] sm:$0xf]
      %v5880 = vld [vmem:[%s9 + $0x2c] sm:$0xf]
      %v5881 = vld [vmem:[%s9 + $0x30] sm:$0xf]
      %v5882 = vld [vmem:[%s9 + $0x34] sm:$0xf]
      %v5883 = vld [vmem:[%s9 + $0x38] sm:$0xf]
      %v5884 = vld [vmem:[%s9 + $0x3c] sm:$0xf]
      %v5885 = vpack.c.bf16 %v5854, %v5853
      %v5886 = vpack.c.bf16 %v5856, %v5855
      %v5887 = vpack.c.bf16 %v5858, %v5857
      %v5888 = vpack.c.bf16 %v5860, %v5859
      %v5889 = vpack.c.bf16 %v5862, %v5861
      %v5890 = vpack.c.bf16 %v5864, %v5863
      %v5891 = vpack.c.bf16 %v5866, %v5865
      %v5892 = vpack.c.bf16 %v5868, %v5867
      %v5893 = vld [vmem:[%s10] sm:$0xff]
      %v5894 = vld [vmem:[%s10 + $0x8] sm:$0xff]
      %v5895 = vld [vmem:[%s10 + $0x10] sm:$0xff]
      %v5896 = vld [vmem:[%s10 + $0x18] sm:$0xff]
      %v5897 = vld [vmem:[%s10 + $0x20] sm:$0xff]
      %v5898 = vld [vmem:[%s10 + $0x28] sm:$0xff]
      %v5899 = vld [vmem:[%s10 + $0x30] sm:$0xff]
      %v5900 = vld [vmem:[%s10 + $0x38] sm:$0xff]
      %v5901 = vld [vmem:[%s10 + $0x40] sm:$0xff]
      %v5902 = vld [vmem:[%s10 + $0x48] sm:$0xff]
      %v5903 = vld [vmem:[%s10 + $0x50] sm:$0xff]
      %v5904 = vld [vmem:[%s10 + $0x58] sm:$0xff]
      %v5905 = vld [vmem:[%s10 + $0x60] sm:$0xff]
      %v5906 = vld [vmem:[%s10 + $0x68] sm:$0xff]
      %v5907 = vld [vmem:[%s10 + $0x70] sm:$0xff]
      %v5908 = vld [vmem:[%s10 + $0x78] sm:$0xff]
      %v5925 = vunpack.c.l.b16 %v5869
      %v5926 = vunpack.c.l.b16 %v5870
      %v5927 = vunpack.c.l.b16 %v5871
      %v5928 = vunpack.c.l.b16 %v5872
      %v5929 = vunpack.c.l.b16 %v5873
      %v5930 = vunpack.c.l.b16 %v5874
      %v5931 = vunpack.c.l.b16 %v5875
      %v5932 = vunpack.c.l.b16 %v5876
      %v5933 = vunpack.c.l.b16 %v5877
      %v5934 = vunpack.c.l.b16 %v5878
      %v5935 = vunpack.c.l.b16 %v5879
      %v5936 = vunpack.c.l.b16 %v5880
      %v5937 = vunpack.c.l.b16 %v5881
      %v5938 = vunpack.c.l.b16 %v5882
      %v5939 = vunpack.c.l.b16 %v5883
      %v5940 = vunpack.c.l.b16 %v5884
      %v5941 = vpack.c.b16 %v5926, %v5925
      %v5942 = vpack.c.b16 %v5928, %v5927
      %v5943 = vpack.c.b16 %v5930, %v5929
      %v5944 = vpack.c.b16 %v5932, %v5931
      %v5945 = vpack.c.b16 %v5934, %v5933
      %v5946 = vpack.c.b16 %v5936, %v5935
      %v5947 = vpack.c.b16 %v5938, %v5937
      %v5948 = vpack.c.b16 %v5940, %v5939
      %5957 = vmatprep.subr.bf16.mxu0 0
      %5958 = vmatpush1.bf16.msra.mxu0 %v5892
      %5959 = vmatprep.subr.bf16.mxu0 0
      %5960 = vmatpush1.bf16.msra.mxu0 %v5891
      %5961 = vmatprep.subr.bf16.mxu0 0
      %5962 = vmatpush1.bf16.msra.mxu0 %v5890
      %5963 = vmatprep.subr.bf16.mxu0 0
      %5964 = vmatpush1.bf16.msra.mxu0 %v5889
      %5965 = vmatprep.subr.bf16.mxu0 0
      %5966 = vmatpush1.bf16.msra.mxu0 %v5888
      %5967 = vmatprep.subr.bf16.mxu0 0
      %5968 = vmatpush1.bf16.msra.mxu0 %v5887
      %5969 = vmatprep.subr.bf16.mxu0 0
      %5970 = vmatpush1.bf16.msra.mxu0 %v5886
      %5971 = vmatprep.subr.bf16.mxu0 0
      %5972 = vmatpush1.bf16.msra.mxu0 %v5885
      %5973 = vmatprep.subr.bf16.mxu0 0
      %5974 = vmatpush2.bf16.msra.mxu0 0
      %5975 = vmatprep.subr.bf16.mxu0 0
      %5976 = vmatpush2.bf16.msra.mxu0 0
      %5977 = vmatprep.subr.bf16.mxu0 0
      %5978 = vmatpush2.bf16.msra.mxu0 0
      %5979 = vmatprep.subr.bf16.mxu0 0
      %5980 = vmatpush2.bf16.msra.mxu0 0
      %5981 = vmatprep.subr.bf16.mxu0 0
      %5982 = vmatpush2.bf16.msra.mxu0 0
      %5983 = vmatprep.subr.bf16.mxu0 0
      %5984 = vmatpush2.bf16.msra.mxu0 0
      %5985 = vmatprep.subr.bf16.mxu0 0
      %5986 = vmatpush2.bf16.msra.mxu0 0
      %5987 = vmatprep.subr.bf16.mxu0 0
      %5988 = vmatpush2.bf16.msra.mxu0 0
      %5989 = vmatprep.mubr.bf16.mxu0 0
      %5990 = vmatmul.mubr.bf16.gmra.mxu0 %v5941
      %v5991 = vpop.f32.mrf.mxu0
      %v5992 = vadd.f32 %v5893, %v5991
      %v5993 = vpop.f32.mrf.mxu0
      %v5994 = vpop.f32.mrf.mxu0
      %v5995 = vadd.f32 %v5894, %v5994
      %v5996 = vpop.f32.mrf.mxu0
      %5997 = vmatprep.mubr.bf16.mxu0 0
      %5998 = vmatmul.mubr.bf16.gmra.mxu0 %v5942
      %v5999 = vpop.f32.mrf.mxu0
      %v6000 = vadd.f32 %v5895, %v5999
      %v6001 = vpop.f32.mrf.mxu0
      %v6002 = vpop.f32.mrf.mxu0
      %v6003 = vadd.f32 %v5896, %v6002
      %v6004 = vpop.f32.mrf.mxu0
      %6005 = vmatprep.mubr.bf16.mxu0 0
      %6006 = vmatmul.mubr.bf16.gmra.mxu0 %v5943
      %v6007 = vpop.f32.mrf.mxu0
      %v6008 = vadd.f32 %v5897, %v6007
      %v6009 = vpop.f32.mrf.mxu0
      %v6010 = vpop.f32.mrf.mxu0
      %v6011 = vadd.f32 %v5898, %v6010
      %v6012 = vpop.f32.mrf.mxu0
      %6013 = vmatprep.mubr.bf16.mxu0 0
      %6014 = vmatmul.mubr.bf16.gmra.mxu0 %v5944
      %v6015 = vpop.f32.mrf.mxu0
      %v6016 = vadd.f32 %v5899, %v6015
      %v6017 = vpop.f32.mrf.mxu0
      %v6018 = vpop.f32.mrf.mxu0
      %v6019 = vadd.f32 %v5900, %v6018
      %v6020 = vpop.f32.mrf.mxu0
      %6021 = vmatprep.mubr.bf16.mxu0 0
      %6022 = vmatmul.mubr.bf16.gmra.mxu0 %v5945
      %v6023 = vpop.f32.mrf.mxu0
      %v6024 = vadd.f32 %v5901, %v6023
      %v6025 = vpop.f32.mrf.mxu0
      %v6026 = vpop.f32.mrf.mxu0
      %v6027 = vadd.f32 %v5902, %v6026
      %v6028 = vpop.f32.mrf.mxu0
      %6029 = vmatprep.mubr.bf16.mxu0 0
      %6030 = vmatmul.mubr.bf16.gmra.mxu0 %v5946
      %v6031 = vpop.f32.mrf.mxu0
      %v6032 = vadd.f32 %v5903, %v6031
      %v6033 = vpop.f32.mrf.mxu0
      %v6034 = vpop.f32.mrf.mxu0
      %v6035 = vadd.f32 %v5904, %v6034
      %v6036 = vpop.f32.mrf.mxu0
      %6037 = vmatprep.mubr.bf16.mxu0 0
      %6038 = vmatmul.mubr.bf16.gmra.mxu0 %v5947
      %v6039 = vpop.f32.mrf.mxu0
      %v6040 = vadd.f32 %v5905, %v6039
      %v6041 = vpop.f32.mrf.mxu0
      %v6042 = vpop.f32.mrf.mxu0
      %v6043 = vadd.f32 %v5906, %v6042
      %v6044 = vpop.f32.mrf.mxu0
      %6045 = vmatprep.mubr.bf16.mxu0 0
      %6046 = vmatmul.mubr.bf16.gmra.mxu0 %v5948
      %v6047 = vpop.f32.mrf.mxu0
      %v6048 = vadd.f32 %v5907, %v6047
      %v6049 = vpop.f32.mrf.mxu0
      %v6050 = vpop.f32.mrf.mxu0
      %v6051 = vadd.f32 %v5908, %v6050
      %v6052 = vpop.f32.mrf.mxu0
      %6053 = vdwg.mxu0
      %v6054 = vmax.f32 %v5992, 0.0
      %v6055 = vmax.f32 %v5995, 0.0
      %v6056 = vmax.f32 %v6000, 0.0
      %v6057 = vmax.f32 %v6003, 0.0
      %v6058 = vmax.f32 %v6008, 0.0
      %v6059 = vmax.f32 %v6011, 0.0
      %v6060 = vmax.f32 %v6016, 0.0
      %v6061 = vmax.f32 %v6019, 0.0
      %v6062 = vmax.f32 %v6024, 0.0
      %v6063 = vmax.f32 %v6027, 0.0
      %v6064 = vmax.f32 %v6032, 0.0
      %v6065 = vmax.f32 %v6035, 0.0
      %v6066 = vmax.f32 %v6040, 0.0
      %v6067 = vmax.f32 %v6043, 0.0
      %v6068 = vmax.f32 %v6048, 0.0
      %v6069 = vmax.f32 %v6051, 0.0
      %v6070 = vld [vmem:[%s11] sm:$0xf]
      %v6071 = vld [vmem:[%s11 + $0x4] sm:$0xf]
      %v6072 = vpack.c.bf16 %v6055, %v6054
      %v6073 = vpack.c.bf16 %v6057, %v6056
      %v6074 = vpack.c.bf16 %v6059, %v6058
      %v6075 = vpack.c.bf16 %v6061, %v6060
      %v6076 = vpack.c.bf16 %v6063, %v6062
      %v6077 = vpack.c.bf16 %v6065, %v6064
      %v6078 = vpack.c.bf16 %v6067, %v6066
      %v6079 = vpack.c.bf16 %v6069, %v6068
      %v6080 = vld [vmem:[%s12] sm:$0xff]
      %v6081 = vld [vmem:[%s12 + $0x8] sm:$0xff]
      %v6084 = vunpack.c.l.b16 %v6070
      %v6085 = vunpack.c.l.b16 %v6071
      %v6086 = vpack.c.b16 %v6085, %v6084
      %6088 = vmatprep.subr.bf16.mxu0 0
      %6089 = vmatpush1.bf16.msra.mxu0 %v6079
      %6090 = vmatprep.subr.bf16.mxu0 0
      %6091 = vmatpush1.bf16.msra.mxu0 %v6078
      %6092 = vmatprep.subr.bf16.mxu0 0
      %6093 = vmatpush1.bf16.msra.mxu0 %v6077
      %6094 = vmatprep.subr.bf16.mxu0 0
      %6095 = vmatpush1.bf16.msra.mxu0 %v6076
      %6096 = vmatprep.subr.bf16.mxu0 0
      %6097 = vmatpush1.bf16.msra.mxu0 %v6075
      %6098 = vmatprep.subr.bf16.mxu0 0
      %6099 = vmatpush1.bf16.msra.mxu0 %v6074
      %6100 = vmatprep.subr.bf16.mxu0 0
      %6101 = vmatpush1.bf16.msra.mxu0 %v6073
      %6102 = vmatprep.subr.bf16.mxu0 0
      %6103 = vmatpush1.bf16.msra.mxu0 %v6072
      %6104 = vmatprep.subr.bf16.mxu0 0
      %6105 = vmatpush2.bf16.msra.mxu0 0
      %6106 = vmatprep.subr.bf16.mxu0 0
      %6107 = vmatpush2.bf16.msra.mxu0 0
      %6108 = vmatprep.subr.bf16.mxu0 0
      %6109 = vmatpush2.bf16.msra.mxu0 0
      %6110 = vmatprep.subr.bf16.mxu0 0
      %6111 = vmatpush2.bf16.msra.mxu0 0
      %6112 = vmatprep.subr.bf16.mxu0 0
      %6113 = vmatpush2.bf16.msra.mxu0 0
      %6114 = vmatprep.subr.bf16.mxu0 0
      %6115 = vmatpush2.bf16.msra.mxu0 0
      %6116 = vmatprep.subr.bf16.mxu0 0
      %6117 = vmatpush2.bf16.msra.mxu0 0
      %6118 = vmatprep.subr.bf16.mxu0 0
      %6119 = vmatpush2.bf16.msra.mxu0 0
      %6120 = vmatprep.mubr.bf16.mxu0 0
      %6121 = vmatmul.mubr.bf16.gmra.mxu0 %v6086
      %v6122 = vpop.f32.mrf.mxu0
      %v6123 = vadd.f32 %v6080, %v6122
      %v6124 = vpop.f32.mrf.mxu0
      %v6125 = vpop.f32.mrf.mxu0
      %v6126 = vadd.f32 %v6081, %v6125
      %v6127 = vpop.f32.mrf.mxu0
      %6128 = vdwg.mxu0
      %6130 = vset.pattern.permute.xlu0 0
      %6131 = vperm.xlu0 %6130, %v6123
      %v6132 = vpop.permute.xlu0 %6131
      %6135 = vset.pattern.permute.xlu0 0
      %6136 = vperm.xlu0 %6135, %v6126
      %v6137 = vpop.permute.xlu0 %6136
      %6139 = vst [vmem:[%s440] sm:$0xff] %v6132
      %6140 = vst [vmem:[%s440 + $0x8] sm:$0xff] %v6137
      %p6141 = scmp.lt.s32.totalorder %s24, 1
      %s6142 = scalar_select %p6141, %s24, 1
      %s6143 = smul.addr %s6142, 2
      %s6144 = smul.addr %s6143, 8
      %s6145 = scalar_lea.vmem %s13, %s6144
      // Predicated region
      $region73: #{convnet_forward_fn.1} parent=71 // pred_check
        %p6146 = pneg %p320
      $region74: #{convnet_forward_fn.1} parent=71 // pred_check_branch
        %6148 = sbr.rel (%p6146) target = $region76
      $region75: #{convnet_forward_fn.1} parent=71 // pred_region
        _
      $region76: #{convnet_forward_fn.1} parent=71 // pred_fallthru
        _
    $region72: #{convnet_forward_fn.1} parent=5 // pred_fallthru
      _
    %p6149 = scmp.le.s32.totalorder 2, %s19
    // Predicated region
    $region77: #{convnet_forward_fn.1} parent=5 // pred_check
      %p6150 = pneg %p6149
    $region78: #{convnet_forward_fn.1} parent=5 // pred_check_branch
      %6152 = sbr.rel (%p6150) target = $region80
    $region79: #{convnet_forward_fn.1} parent=5 // pred_region
      %s6153 = ssub.s32 %s19, 2
      // Predicated region
      $region81: #{convnet_forward_fn.1} parent=79 // pred_check
        %p6154 = pneg %p326
      $region82: #{convnet_forward_fn.1} parent=79 // pred_check_branch
        %6156 = sbr.rel (%p6154) target = $region84
      $region83: #{convnet_forward_fn.1} parent=79 // pred_region
        %p6157 = scmp.lt.s32.totalorder %s25, 1
        %s6158 = scalar_select %p6157, %s25, 1
        %s6159 = smul.addr %s6158, 2
        %s6160 = smul.addr %s6159, 8
        %s6161 = scalar_lea.vmem %s13, %s6160
      $region84: #{convnet_forward_fn.1} parent=79 // pred_fallthru
        _
    $region80: #{convnet_forward_fn.1} parent=5 // pred_fallthru
      _
  $region6: #{convnet_forward_fn.1} parent=0 // loop_footer
    %s23 = sadd.s32 1, %s19
  $region7: #{convnet_forward_fn.1} parent=0 // loop_footer_branch
    %18 = sbr.rel target = $region3
  $region8: #{convnet_forward_fn.1} parent=0 // loop_exit
    _

</llo_original>
